<compile_context>
chip_gen: v7x
topology: tpu7x:2x2x1
jax: 0.10.0
libtpu: 0.0.40
codegen_flags: <defaults>
</compile_context>

<pallas_src>
import functools
import math

import jax
import jax.numpy as jnp
from jax.experimental import pallas as pl
from jax.experimental.pallas import tpu as pltpu

EPS = 1e-5
_VMEM_LIMIT = 48 * 1024 * 1024   # > default scoped VMEM, < v7x's 64 MiB physical


def _divisor_tile(n, pref, align):
    """Largest multiple of `align` <= pref that divides n, else n (full dim)."""
    if n <= pref:
        return n
    t = (pref // align) * align
    while t >= align:
        if n % t == 0:
            return t
        t -= align
    return n


# ---------------------------------------------------------------------------
# Kernel 1: input layernorm + fused gated projections.
#   inputs : z rows [tm, C], mask [1, tm] (lane-dense), fused W [C, 4H+C]
#   outputs: a, b channel-major [H, tm] (bf16), g [tm, C] (f32)
# ---------------------------------------------------------------------------
def _proj_kernel(z_ref, mask_ref, lnw_ref, lnb_ref, w_ref, b_ref,
                 at_ref, bt_ref, g_ref):
    H = at_ref.shape[0]
    C = g_ref.shape[1]

    z = z_ref[...].astype(jnp.float32)
    mu = jnp.mean(z, axis=-1, keepdims=True)
    var = jnp.mean(jnp.square(z - mu), axis=-1, keepdims=True)
    zn = (z - mu) * jax.lax.rsqrt(var + EPS)
    zn = zn * lnw_ref[...] + lnb_ref[...]

    # one wide MXU matmul instead of five narrow ones
    y = jnp.dot(zn, w_ref[...], preferred_element_type=jnp.float32) + b_ref[...]

    a = jax.nn.sigmoid(y[:, 0:H]) * y[:, H:2 * H]                 # (tm, H)
    b = jax.nn.sigmoid(y[:, 2 * H:3 * H]) * y[:, 3 * H:4 * H]     # (tm, H)
    g = jax.nn.sigmoid(y[:, 4 * H:4 * H + C])                     # (tm, C)

    m = mask_ref[...]                                             # (1, tm)
    # channel-major store (in-tile XLU transpose) -> no HBM transpose later
    at_ref[...] = (jnp.transpose(a) * m).astype(at_ref.dtype)
    bt_ref[...] = (jnp.transpose(b) * m).astype(bt_ref.dtype)
    g_ref[...] = g.astype(g_ref.dtype)


def _projections(z2d, mask_row, ln_w, ln_b, w_all, b_all, H, tm):
    M_pad, C = z2d.shape
    K = w_all.shape[1]
    grid = (M_pad // tm,)
    return pl.pallas_call(
        _proj_kernel,
        out_shape=(jax.ShapeDtypeStruct((H, M_pad), jnp.bfloat16),
                   jax.ShapeDtypeStruct((H, M_pad), jnp.bfloat16),
                   jax.ShapeDtypeStruct((M_pad, C), jnp.float32)),
        grid_spec=pltpu.PrefetchScalarGridSpec(
            num_scalar_prefetch=0,
            grid=grid,
            in_specs=[
                pl.BlockSpec((tm, C), lambda i: (i, 0)),   # z rows
                pl.BlockSpec((1, tm), lambda i: (0, i)),   # mask (lane-dense)
                pl.BlockSpec((1, C), lambda i: (0, 0)),    # ln_in weight
                pl.BlockSpec((1, C), lambda i: (0, 0)),    # ln_in bias
                pl.BlockSpec((C, K), lambda i: (0, 0)),    # fused weight
                pl.BlockSpec((1, K), lambda i: (0, 0)),    # fused bias
            ],
            out_specs=[
                pl.BlockSpec((H, tm), lambda i: (0, i)),   # a  [H, M]
                pl.BlockSpec((H, tm), lambda i: (0, i)),   # b  [H, M]
                pl.BlockSpec((tm, C), lambda i: (i, 0)),   # g  [M, C]
            ],
        ),
        compiler_params=pltpu.CompilerParams(
            dimension_semantics=("parallel",),
            vmem_limit_bytes=_VMEM_LIMIT),
    )(z2d, mask_row, ln_w, ln_b, w_all, b_all)


# ---------------------------------------------------------------------------
# Kernel 2: triangle matmul, tiled over (h, i, j, k) with f32 accumulator.
#   a, b are channel-major [H, N, N] (bf16); output [H, N, N] (bf16).
#   outgoing: x[h,i,j] = sum_k A[h,i,k] * B[h,j,k]   (contract last dims)
#   incoming: x[h,i,j] = sum_k A[h,k,i] * B[h,k,j]   (contract first dims)
# ---------------------------------------------------------------------------
def _make_triangle_kernel(outgoing):
    dims = (((1,), (1,)), ((), ())) if outgoing else (((0,), (0,)), ((), ()))

    def kernel(a_ref, b_ref, o_ref, acc_ref):
        @pl.when(pl.program_id(3) == 0)
        def _():
            acc_ref[...] = jnp.zeros_like(acc_ref)

        acc_ref[...] += jax.lax.dot_general(
            a_ref[...], b_ref[...], dimension_numbers=dims,
            preferred_element_type=jnp.float32)

        @pl.when(pl.program_id(3) == pl.num_programs(3) - 1)
        def _():
            o_ref[...] = acc_ref[...].astype(o_ref.dtype)

    return kernel


def _triangle_matmul(a_hp, b_hp, outgoing):
    H, N, _ = a_hp.shape
    if outgoing:
        ti = _divisor_tile(N, 256, 8)
        tj = _divisor_tile(N, 256, 128)
        tk = _divisor_tile(N, 512, 128)
        a_spec = pl.BlockSpec((None, ti, tk), lambda h, i, j, k: (h, i, k))
        b_spec = pl.BlockSpec((None, tj, tk), lambda h, i, j, k: (h, j, k))
    else:
        ti = _divisor_tile(N, 256, 128)
        tj = _divisor_tile(N, 256, 128)
        tk = _divisor_tile(N, 512, 8)
        a_spec = pl.BlockSpec((None, tk, ti), lambda h, i, j, k: (h, k, i))
        b_spec = pl.BlockSpec((None, tk, tj), lambda h, i, j, k: (h, k, j))
    grid = (H, N // ti, N // tj, N // tk)
    return pl.pallas_call(
        _make_triangle_kernel(outgoing),
        out_shape=jax.ShapeDtypeStruct((H, N, N), jnp.bfloat16),
        grid_spec=pltpu.PrefetchScalarGridSpec(
            num_scalar_prefetch=0,
            grid=grid,
            in_specs=[a_spec, b_spec],
            out_specs=pl.BlockSpec((None, ti, tj), lambda h, i, j, k: (h, i, j)),
            scratch_shapes=[pltpu.VMEM((ti, tj), jnp.float32)],
        ),
        compiler_params=pltpu.CompilerParams(
            dimension_semantics=("parallel", "parallel", "parallel", "arbitrary"),
            vmem_limit_bytes=_VMEM_LIMIT),
    )(a_hp, b_hp)


# ---------------------------------------------------------------------------
# Kernel 3: output layernorm + linear_z + sigmoid-gate multiply.
#   x arrives channel-major [H, tm] (bf16); transposed in-tile.
# ---------------------------------------------------------------------------
def _output_kernel(x_ref, g_ref, lnw_ref, lnb_ref, wz_ref, bz_ref, o_ref):
    x = jnp.transpose(x_ref[...].astype(jnp.float32))      # (tm, H)
    mu = jnp.mean(x, axis=-1, keepdims=True)
    var = jnp.mean(jnp.square(x - mu), axis=-1, keepdims=True)
    xn = (x - mu) * jax.lax.rsqrt(var + EPS)
    xn = xn * lnw_ref[...] + lnb_ref[...]
    y = jnp.dot(xn, wz_ref[...], preferred_element_type=jnp.float32) + bz_ref[...]
    o_ref[...] = (y * g_ref[...].astype(jnp.float32)).astype(o_ref.dtype)


def _output(x_hm, g2d, ln_w, ln_b, w_z, b_z, tm, out_dtype):
    H, M_pad = x_hm.shape
    C = g2d.shape[-1]
    grid = (M_pad // tm,)
    return pl.pallas_call(
        _output_kernel,
        out_shape=jax.ShapeDtypeStruct((M_pad, C), out_dtype),
        grid_spec=pltpu.PrefetchScalarGridSpec(
            num_scalar_prefetch=0,
            grid=grid,
            in_specs=[
                pl.BlockSpec((H, tm), lambda i: (0, i)),   # x  [H, M]
                pl.BlockSpec((tm, C), lambda i: (i, 0)),   # g  [M, C]
                pl.BlockSpec((1, H), lambda i: (0, 0)),    # ln_out weight
                pl.BlockSpec((1, H), lambda i: (0, 0)),    # ln_out bias
                pl.BlockSpec((H, C), lambda i: (0, 0)),    # w_z
                pl.BlockSpec((1, C), lambda i: (0, 0)),    # b_z
            ],
            out_specs=pl.BlockSpec((tm, C), lambda i: (i, 0)),
        ),
        compiler_params=pltpu.CompilerParams(
            dimension_semantics=("parallel",),
            vmem_limit_bytes=_VMEM_LIMIT),
    )(x_hm, g2d, ln_w, ln_b, w_z, b_z)


# ---------------------------------------------------------------------------
# Wrapper: full TriangleMultiplicativeUpdate forward pass
# ---------------------------------------------------------------------------
@functools.partial(jax.jit, static_argnames=("outgoing",))
def triangle_multiplicative_update(z, mask, params, outgoing=True):
    N1, N2, C = z.shape
    assert N1 == N2, "triangle update expects a square pair representation"
    N = N1
    H = params["w_a_p"].shape[1]
    M = N * N

    # row tiling for kernels 1 & 3 (pad flattened rows to a tile multiple)
    tm = 1024 if M >= 1024 else ((M + 127) // 128) * 128
    M_pad = ((M + tm - 1) // tm) * tm

    z2d = z.reshape(M, C)
    mask_row = mask.reshape(1, M).astype(jnp.float32)
    if M_pad != M:
        z2d = jnp.pad(z2d, ((0, M_pad - M), (0, 0)))
        mask_row = jnp.pad(mask_row, ((0, 0), (0, M_pad - M)))

    # concatenated projection weights: [C, H|H|H|H|C]
    w_all = jnp.concatenate(
        [params["w_a_g"], params["w_a_p"], params["w_b_g"], params["w_b_p"],
         params["w_g"]], axis=1)
    b_all = jnp.concatenate(
        [params["b_a_g"], params["b_a_p"], params["b_b_g"], params["b_b_p"],
         params["b_g"]], axis=0).reshape(1, 4 * H + C)

    a_hm, b_hm, g2d = _projections(
        z2d, mask_row,
        params["ln_in_w"].reshape(1, C), params["ln_in_b"].reshape(1, C),
        w_all, b_all, H, tm)

    if M_pad != M:
        a_hm = a_hm[:, :M]
        b_hm = b_hm[:, :M]

    # free reshapes [H, M] -> [H, N, N]; channel-major layout was produced
    # directly by kernel 1, so no HBM transposes are needed here.
    x_hij = _triangle_matmul(a_hm.reshape(H, N, N), b_hm.reshape(H, N, N),
                             outgoing)                      # [H, N, N] bf16

    x_hm = x_hij.reshape(H, M)
    if M_pad != M:
        x_hm = jnp.pad(x_hm, ((0, 0), (0, M_pad - M)))

    out2d = _output(x_hm, g2d,
                    params["ln_out_w"].reshape(1, H),
                    params["ln_out_b"].reshape(1, H),
                    params["w_z"], params["b_z"].reshape(1, C),
                    tm, z.dtype)
    if M_pad != M:
        out2d = out2d[:M]
    return out2d.reshape(N, N, C)


# ---------------------------------------------------------------------------
# Plain-JAX reference (for correctness checking)
# ---------------------------------------------------------------------------
def _layer_norm(x, w, b):
    mu = jnp.mean(x, axis=-1, keepdims=True)
    var = jnp.mean(jnp.square(x - mu), axis=-1, keepdims=True)
    return (x - mu) * jax.lax.rsqrt(var + EPS) * w + b


def reference_forward(z, mask, p, outgoing=True, match_kernel_precision=False):
    hp = jax.lax.Precision.HIGHEST
    zn = _layer_norm(z, p["ln_in_w"], p["ln_in_b"])
    m = mask[..., None].astype(jnp.float32)

    def lin(w, b):
        return jnp.dot(zn, w, precision=hp) + b

    a = (jax.nn.sigmoid(lin(p["w_a_g"], p["b_a_g"]))
         * lin(p["w_a_p"], p["b_a_p"])) * m
    b = (jax.nn.sigmoid(lin(p["w_b_g"], p["b_b_g"]))
         * lin(p["w_b_p"], p["b_b_p"])) * m
    if match_kernel_precision:
        a = a.astype(jnp.bfloat16)
        b = b.astype(jnp.bfloat16)
    if outgoing:
        x = jnp.einsum("ikh,jkh->ijh", a, b, precision=hp,
                       preferred_element_type=jnp.float32)
    else:
        x = jnp.einsum("kih,kjh->ijh", a, b, precision=hp,
                       preferred_element_type=jnp.float32)
    if match_kernel_precision:
        x = x.astype(jnp.bfloat16).astype(jnp.float32)
    x = _layer_norm(x, p["ln_out_w"], p["ln_out_b"])
    x = jnp.dot(x, p["w_z"], precision=hp) + p["b_z"]
    g = jax.nn.sigmoid(jnp.dot(zn, p["w_g"], precision=hp) + p["b_g"])
    return x * g


# ---------------------------------------------------------------------------
# Deterministic synthetic parameter init (shapes from the module's __init__;
# random instead of the zero "gating"/"final" inits so the test is non-trivial)
# ---------------------------------------------------------------------------
def make_params(key, c_z, c_hidden):
    ks = jax.random.split(key, 16)

    def w(k, fan_in, fan_out):
        return (jax.random.normal(k, (fan_in, fan_out), jnp.float32)
                / math.sqrt(fan_in))

    def v(k, n, scale=0.1):
        return scale * jax.random.normal(k, (n,), jnp.float32)

    return {
        "ln_in_w": 1.0 + v(ks[0], c_z),
        "ln_in_b": v(ks[1], c_z),
        "w_a_g": w(ks[2], c_z, c_hidden), "b_a_g": v(ks[3], c_hidden),
        "w_a_p": w(ks[4], c_z, c_hidden), "b_a_p": v(ks[5], c_hidden),
        "w_b_g": w(ks[6], c_z, c_hidden), "b_b_g": v(ks[7], c_hidden),
        "w_b_p": w(ks[8], c_z, c_hidden), "b_b_p": v(ks[9], c_hidden),
        "w_g": w(ks[10], c_z, c_z), "b_g": v(ks[11], c_z),
        "ln_out_w": 1.0 + v(ks[12], c_hidden),
        "ln_out_b": v(ks[13], c_hidden),
        "w_z": w(ks[14], c_hidden, c_z), "b_z": v(ks[15], c_z),
    }


if __name__ == "__main__":
    N, C_Z, C_HIDDEN = 16, 32, 32

    key = jax.random.PRNGKey(0)
    kz, km, kp = jax.random.split(key, 3)
    z = jax.random.normal(kz, (N, N, C_Z), jnp.float32)
    mask = (jax.random.uniform(km, (N, N)) > 0.2).astype(jnp.float32)
    params = make_params(kp, C_Z, C_HIDDEN)

    out = triangle_multiplicative_update(z, mask, params, outgoing=True)
    out = jax.block_until_ready(out)
    assert out.shape == (N, N, C_Z) and out.dtype == jnp.float32

    # reference mirroring the kernel's bf16 policy for a/b/x (tight check)
    ref_bf16 = reference_forward(z, mask, params, outgoing=True,
                                 match_kernel_precision=True)
    assert jnp.allclose(out, ref_bf16, rtol=1e-2, atol=1e-2), (
        "max |diff| vs bf16-matched ref:",
        float(jnp.max(jnp.abs(out - ref_bf16))))

    # full-f32 reference (loose check; bf16 intermediates cost <~0.5%)
    ref_f32 = reference_forward(z, mask, params, outgoing=True,
                                match_kernel_precision=False)
    assert jnp.allclose(out, ref_f32, rtol=3e-2, atol=3e-2), (
        "max |diff| vs f32 ref:", float(jnp.max(jnp.abs(out - ref_f32))))

    print("KERNEL_OK")
</pallas_src>

<mosaic_0001>
module attributes {stable_mosaic.version = 11 : i64} {
  func.func @_proj_kernel(%arg0: i32, %arg1: memref<256x32xf32, #tpu.memory_space<vmem>>, %arg2: memref<1x256xf32, #tpu.memory_space<vmem>>, %arg3: memref<1x32xf32, #tpu.memory_space<vmem>>, %arg4: memref<1x32xf32, #tpu.memory_space<vmem>>, %arg5: memref<32x160xf32, #tpu.memory_space<vmem>>, %arg6: memref<1x160xf32, #tpu.memory_space<vmem>>, %arg7: memref<32x256xbf16, #tpu.memory_space<vmem>>, %arg8: memref<32x256xbf16, #tpu.memory_space<vmem>>, %arg9: memref<256x32xf32, #tpu.memory_space<vmem>>) attributes {dimension_semantics = [#tpu.dimension_semantics<parallel>], iteration_bounds = array<i64: 1>, scalar_prefetch = 0 : i64, scratch_operands = 0 : i64, tpu.core_type = #tpu.core_type<tc>, window_params = [{transform_indices = @transform_0, window_bounds = array<i64: 256, 32>}, {transform_indices = @transform_1, window_bounds = array<i64: 1, 256>}, {pipeline_mode = #tpu.pipeline_mode<synchronous>, transform_indices = @transform_2, window_bounds = array<i64: 1, 32>}, {pipeline_mode = #tpu.pipeline_mode<synchronous>, transform_indices = @transform_3, window_bounds = array<i64: 1, 32>}, {pipeline_mode = #tpu.pipeline_mode<synchronous>, transform_indices = @transform_4, window_bounds = array<i64: 32, 160>}, {pipeline_mode = #tpu.pipeline_mode<synchronous>, transform_indices = @transform_5, window_bounds = array<i64: 1, 160>}, {transform_indices = @transform_6, window_bounds = array<i64: 32, 256>}, {transform_indices = @transform_7, window_bounds = array<i64: 32, 256>}, {transform_indices = @transform_8, window_bounds = array<i64: 256, 32>}]} {
    %c0 = arith.constant 0 : index
    %c0_0 = arith.constant 0 : index
    %0 = vector.load %arg1[%c0, %c0_0] : memref<256x32xf32, #tpu.memory_space<vmem>>, vector<256x32xf32>
    %cst = arith.constant dense<0.000000e+00> : vector<256xf32>
    %1 = vector.multi_reduction <add>, %0, %cst [1] : vector<256x32xf32> to vector<256xf32>
    %2 = vector.shape_cast %1 : vector<256xf32> to vector<256x1xf32>
    %cst_1 = arith.constant 3.200000e+01 : f32
    %3 = vector.broadcast %cst_1 : f32 to vector<256x1xf32>
    %4 = arith.divf %2, %3 : vector<256x1xf32>
    %5 = vector.broadcast %4 : vector<256x1xf32> to vector<256x32xf32>
    %6 = arith.subf %0, %5 : vector<256x32xf32>
    %7 = arith.mulf %6, %6 : vector<256x32xf32>
    %cst_2 = arith.constant dense<0.000000e+00> : vector<256xf32>
    %8 = vector.multi_reduction <add>, %7, %cst_2 [1] : vector<256x32xf32> to vector<256xf32>
    %9 = vector.shape_cast %8 : vector<256xf32> to vector<256x1xf32>
    %cst_3 = arith.constant 3.200000e+01 : f32
    %10 = vector.broadcast %cst_3 : f32 to vector<256x1xf32>
    %11 = arith.divf %9, %10 : vector<256x1xf32>
    %12 = vector.broadcast %4 : vector<256x1xf32> to vector<256x32xf32>
    %13 = arith.subf %0, %12 : vector<256x32xf32>
    %cst_4 = arith.constant 9.99999974E-6 : f32
    %14 = vector.broadcast %cst_4 : f32 to vector<256x1xf32>
    %15 = arith.addf %11, %14 : vector<256x1xf32>
    %16 = math.rsqrt %15 : vector<256x1xf32>
    %17 = vector.broadcast %16 : vector<256x1xf32> to vector<256x32xf32>
    %18 = arith.mulf %13, %17 : vector<256x32xf32>
    %c0_5 = arith.constant 0 : index
    %c0_6 = arith.constant 0 : index
    %19 = vector.load %arg3[%c0_5, %c0_6] : memref<1x32xf32, #tpu.memory_space<vmem>>, vector<1x32xf32>
    %20 = vector.broadcast %19 : vector<1x32xf32> to vector<256x32xf32>
    %21 = arith.mulf %18, %20 : vector<256x32xf32>
    %c0_7 = arith.constant 0 : index
    %c0_8 = arith.constant 0 : index
    %22 = vector.load %arg4[%c0_7, %c0_8] : memref<1x32xf32, #tpu.memory_space<vmem>>, vector<1x32xf32>
    %23 = vector.broadcast %22 : vector<1x32xf32> to vector<256x32xf32>
    %24 = arith.addf %21, %23 : vector<256x32xf32>
    %c0_9 = arith.constant 0 : index
    %c0_10 = arith.constant 0 : index
    %25 = vector.load %arg5[%c0_9, %c0_10] : memref<32x160xf32, #tpu.memory_space<vmem>>, vector<32x160xf32>
    %cst_11 = arith.constant dense<0.000000e+00> : vector<256x160xf32>
    %26 = tpu.matmul %24, %25, %cst_11 {dimension_numbers = #tpu.dot_dimension_numbers<[1], [0], [0], [1], [0, 0, 1, 1], [], []>} : vector<256x32xf32>, vector<32x160xf32>, vector<256x160xf32> -> vector<256x160xf32>
    %c0_12 = arith.constant 0 : index
    %c0_13 = arith.constant 0 : index
    %27 = vector.load %arg6[%c0_12, %c0_13] : memref<1x160xf32, #tpu.memory_space<vmem>>, vector<1x160xf32>
    %28 = vector.broadcast %27 : vector<1x160xf32> to vector<256x160xf32>
    %29 = arith.addf %26, %28 : vector<256x160xf32>
    %30 = vector.extract_strided_slice %29 {offsets = [0, 0], sizes = [256, 32], strides = [1, 1]} : vector<256x160xf32> to vector<256x32xf32>
    %31 = arith.negf %30 : vector<256x32xf32>
    %32 = math.exp %31 : vector<256x32xf32>
    %cst_14 = arith.constant 1.000000e+00 : f32
    %33 = vector.broadcast %cst_14 : f32 to vector<256x32xf32>
    %34 = arith.addf %33, %32 : vector<256x32xf32>
    %35 = arith.divf %33, %34 : vector<256x32xf32>
    %36 = vector.extract_strided_slice %29 {offsets = [0, 32], sizes = [256, 32], strides = [1, 1]} : vector<256x160xf32> to vector<256x32xf32>
    %37 = arith.mulf %35, %36 : vector<256x32xf32>
    %38 = vector.extract_strided_slice %29 {offsets = [0, 64], sizes = [256, 32], strides = [1, 1]} : vector<256x160xf32> to vector<256x32xf32>
    %39 = arith.negf %38 : vector<256x32xf32>
    %40 = math.exp %39 : vector<256x32xf32>
    %cst_15 = arith.constant 1.000000e+00 : f32
    %41 = vector.broadcast %cst_15 : f32 to vector<256x32xf32>
    %42 = arith.addf %41, %40 : vector<256x32xf32>
    %43 = arith.divf %41, %42 : vector<256x32xf32>
    %44 = vector.extract_strided_slice %29 {offsets = [0, 96], sizes = [256, 32], strides = [1, 1]} : vector<256x160xf32> to vector<256x32xf32>
    %45 = arith.mulf %43, %44 : vector<256x32xf32>
    %46 = vector.extract_strided_slice %29 {offsets = [0, 128], sizes = [256, 32], strides = [1, 1]} : vector<256x160xf32> to vector<256x32xf32>
    %47 = arith.negf %46 : vector<256x32xf32>
    %48 = math.exp %47 : vector<256x32xf32>
    %cst_16 = arith.constant 1.000000e+00 : f32
    %49 = vector.broadcast %cst_16 : f32 to vector<256x32xf32>
    %50 = arith.addf %49, %48 : vector<256x32xf32>
    %51 = arith.divf %49, %50 : vector<256x32xf32>
    %c0_17 = arith.constant 0 : index
    %c0_18 = arith.constant 0 : index
    %52 = vector.load %arg2[%c0_17, %c0_18] : memref<1x256xf32, #tpu.memory_space<vmem>>, vector<1x256xf32>
    %53 = tpu.transpose %37, [1, 0] : vector<256x32xf32> -> vector<32x256xf32>
    %54 = vector.broadcast %52 : vector<1x256xf32> to vector<32x256xf32>
    %55 = arith.mulf %53, %54 : vector<32x256xf32>
    %56 = arith.truncf %55 : vector<32x256xf32> to vector<32x256xbf16>
    %c0_19 = arith.constant 0 : index
    %c0_20 = arith.constant 0 : index
    %57 = vector.load %arg7[%c0_19, %c0_20] : memref<32x256xbf16, #tpu.memory_space<vmem>>, vector<32x256xbf16>
    tpu.vector_store %arg7[%c0_19, %c0_20], %56 {strides = array<i32>} : memref<32x256xbf16, #tpu.memory_space<vmem>>, vector<32x256xbf16>,
    %58 = tpu.transpose %45, [1, 0] : vector<256x32xf32> -> vector<32x256xf32>
    %59 = vector.broadcast %52 : vector<1x256xf32> to vector<32x256xf32>
    %60 = arith.mulf %58, %59 : vector<32x256xf32>
    %61 = arith.truncf %60 : vector<32x256xf32> to vector<32x256xbf16>
    %c0_21 = arith.constant 0 : index
    %c0_22 = arith.constant 0 : index
    %62 = vector.load %arg8[%c0_21, %c0_22] : memref<32x256xbf16, #tpu.memory_space<vmem>>, vector<32x256xbf16>
    tpu.vector_store %arg8[%c0_21, %c0_22], %61 {strides = array<i32>} : memref<32x256xbf16, #tpu.memory_space<vmem>>, vector<32x256xbf16>,
    %c0_23 = arith.constant 0 : index
    %c0_24 = arith.constant 0 : index
    %63 = vector.load %arg9[%c0_23, %c0_24] : memref<256x32xf32, #tpu.memory_space<vmem>>, vector<256x32xf32>
    tpu.vector_store %arg9[%c0_23, %c0_24], %51 {strides = array<i32>} : memref<256x32xf32, #tpu.memory_space<vmem>>, vector<256x32xf32>,
    return
  }
  func.func @transform_0(%arg0: i32) -> (i32, i32) {
    %c0_i32 = arith.constant 0 : i32
    %c0_i32_0 = arith.constant 0 : i32
    return %arg0, %c0_i32 : i32, i32
  }
  func.func @transform_1(%arg0: i32) -> (i32, i32) {
    %c0_i32 = arith.constant 0 : i32
    %c0_i32_0 = arith.constant 0 : i32
    return %c0_i32, %arg0 : i32, i32
  }
  func.func @transform_2(%arg0: i32) -> (i32, i32) {
    %c0_i32 = arith.constant 0 : i32
    %c0_i32_0 = arith.constant 0 : i32
    %c0_i32_1 = arith.constant 0 : i32
    return %c0_i32, %c0_i32_0 : i32, i32
  }
  func.func @transform_3(%arg0: i32) -> (i32, i32) {
    %c0_i32 = arith.constant 0 : i32
    %c0_i32_0 = arith.constant 0 : i32
    %c0_i32_1 = arith.constant 0 : i32
    return %c0_i32, %c0_i32_0 : i32, i32
  }
  func.func @transform_4(%arg0: i32) -> (i32, i32) {
    %c0_i32 = arith.constant 0 : i32
    %c0_i32_0 = arith.constant 0 : i32
    %c0_i32_1 = arith.constant 0 : i32
    return %c0_i32, %c0_i32_0 : i32, i32
  }
  func.func @transform_5(%arg0: i32) -> (i32, i32) {
    %c0_i32 = arith.constant 0 : i32
    %c0_i32_0 = arith.constant 0 : i32
    %c0_i32_1 = arith.constant 0 : i32
    return %c0_i32, %c0_i32_0 : i32, i32
  }
  func.func @transform_6(%arg0: i32) -> (i32, i32) {
    %c0_i32 = arith.constant 0 : i32
    %c0_i32_0 = arith.constant 0 : i32
    return %c0_i32, %arg0 : i32, i32
  }
  func.func @transform_7(%arg0: i32) -> (i32, i32) {
    %c0_i32 = arith.constant 0 : i32
    %c0_i32_0 = arith.constant 0 : i32
    return %c0_i32, %arg0 : i32, i32
  }
  func.func @transform_8(%arg0: i32) -> (i32, i32) {
    %c0_i32 = arith.constant 0 : i32
    %c0_i32_0 = arith.constant 0 : i32
    return %arg0, %c0_i32 : i32, i32
  }
}

module attributes {stable_mosaic.version = 11 : i64} {
  func.func @kernel(%arg0: i32, %arg1: i32, %arg2: i32, %arg3: i32, %arg4: memref<1x16x16xbf16, #tpu.memory_space<vmem>>, %arg5: memref<1x16x16xbf16, #tpu.memory_space<vmem>>, %arg6: memref<1x16x16xbf16, #tpu.memory_space<vmem>>, %arg7: memref<16x16xf32, #tpu.memory_space<vmem>>) attributes {dimension_semantics = [#tpu.dimension_semantics<parallel>, #tpu.dimension_semantics<parallel>, #tpu.dimension_semantics<parallel>, #tpu.dimension_semantics<arbitrary>], iteration_bounds = array<i64: 32, 1, 1, 1>, scalar_prefetch = 0 : i64, scratch_operands = 1 : i64, tpu.core_type = #tpu.core_type<tc>, window_params = [{transform_indices = @transform_0, window_bounds = array<i64: 1, 16, 16>}, {transform_indices = @transform_1, window_bounds = array<i64: 1, 16, 16>}, {transform_indices = @transform_2, window_bounds = array<i64: 1, 16, 16>}]} {
    %c0_i32 = arith.constant 0 : i32
    %0 = arith.cmpi eq, %arg3, %c0_i32 : i32
    %1 = arith.extui %0 : i1 to i32
    %c0_i32_0 = arith.constant 0 : i32
    %2 = arith.cmpi ne, %1, %c0_i32_0 : i32
    scf.if %2 {
      %cst_12 = arith.constant 0.000000e+00 : f32
      %14 = vector.broadcast %cst_12 : f32 to vector<16x16xf32>
      %c0_13 = arith.constant 0 : index
      %c0_14 = arith.constant 0 : index
      %15 = vector.load %arg7[%c0_13, %c0_14] : memref<16x16xf32, #tpu.memory_space<vmem>>, vector<16x16xf32>
      tpu.vector_store %arg7[%c0_13, %c0_14], %14 {strides = array<i32>} : memref<16x16xf32, #tpu.memory_space<vmem>>, vector<16x16xf32>,
    } else {
    }
    %c0 = arith.constant 0 : index
    %c0_1 = arith.constant 0 : index
    %3 = vector.load %arg7[%c0, %c0_1] : memref<16x16xf32, #tpu.memory_space<vmem>>, vector<16x16xf32>
    %c0_2 = arith.constant 0 : index
    %c0_3 = arith.constant 0 : index
    %c0_4 = arith.constant 0 : index
    %4 = vector.load %arg4[%c0_2, %c0_3, %c0_4] : memref<1x16x16xbf16, #tpu.memory_space<vmem>>, vector<1x16x16xbf16>
    %5 = vector.shape_cast %4 : vector<1x16x16xbf16> to vector<16x16xbf16>
    %c0_5 = arith.constant 0 : index
    %c0_6 = arith.constant 0 : index
    %c0_7 = arith.constant 0 : index
    %6 = vector.load %arg5[%c0_5, %c0_6, %c0_7] : memref<1x16x16xbf16, #tpu.memory_space<vmem>>, vector<1x16x16xbf16>
    %7 = vector.shape_cast %6 : vector<1x16x16xbf16> to vector<16x16xbf16>
    %cst = arith.constant dense<0.000000e+00> : vector<16x16xf32>
    %8 = tpu.matmul %5, %7, %cst {dimension_numbers = #tpu.dot_dimension_numbers<[1], [1], [0], [0], [0, 0, 1, 0], [], []>} : vector<16x16xbf16>, vector<16x16xbf16>, vector<16x16xf32> -> vector<16x16xf32>
    %9 = arith.addf %3, %8 : vector<16x16xf32>
    %c0_8 = arith.constant 0 : index
    %c0_9 = arith.constant 0 : index
    %10 = vector.load %arg7[%c0_8, %c0_9] : memref<16x16xf32, #tpu.memory_space<vmem>>, vector<16x16xf32>
    tpu.vector_store %arg7[%c0_8, %c0_9], %9 {strides = array<i32>} : memref<16x16xf32, #tpu.memory_space<vmem>>, vector<16x16xf32>,
    %c0_i32_10 = arith.constant 0 : i32
    %11 = arith.cmpi eq, %arg3, %c0_i32_10 : i32
    %12 = arith.extui %11 : i1 to i32
    %c0_i32_11 = arith.constant 0 : i32
    %13 = arith.cmpi ne, %12, %c0_i32_11 : i32
    scf.if %13 {
      %c0_12 = arith.constant 0 : index
      %c0_13 = arith.constant 0 : index
      %14 = vector.load %arg7[%c0_12, %c0_13] : memref<16x16xf32, #tpu.memory_space<vmem>>, vector<16x16xf32>
      %15 = arith.truncf %14 : vector<16x16xf32> to vector<16x16xbf16>
      %c0_14 = arith.constant 0 : index
      %c0_15 = arith.constant 0 : index
      %c0_16 = arith.constant 0 : index
      %16 = vector.load %arg6[%c0_14, %c0_15, %c0_16] : memref<1x16x16xbf16, #tpu.memory_space<vmem>>, vector<1x16x16xbf16>
      %17 = vector.shape_cast %16 : vector<1x16x16xbf16> to vector<16x16xbf16>
      %18 = vector.shape_cast %15 : vector<16x16xbf16> to vector<1x16x16xbf16>
      tpu.vector_store %arg6[%c0_14, %c0_15, %c0_16], %18 {strides = array<i32>} : memref<1x16x16xbf16, #tpu.memory_space<vmem>>, vector<1x16x16xbf16>,
    } else {
    }
    return
  }
  func.func @transform_0(%arg0: i32, %arg1: i32, %arg2: i32, %arg3: i32) -> (i32, i32, i32) {
    %c0_i32 = arith.constant 0 : i32
    return %arg0, %arg1, %arg3 : i32, i32, i32
  }
  func.func @transform_1(%arg0: i32, %arg1: i32, %arg2: i32, %arg3: i32) -> (i32, i32, i32) {
    %c0_i32 = arith.constant 0 : i32
    return %arg0, %arg2, %arg3 : i32, i32, i32
  }
  func.func @transform_2(%arg0: i32, %arg1: i32, %arg2: i32, %arg3: i32) -> (i32, i32, i32) {
    %c0_i32 = arith.constant 0 : i32
    return %arg0, %arg1, %arg2 : i32, i32, i32
  }
}

module attributes {stable_mosaic.version = 11 : i64} {
  func.func @_output_kernel(%arg0: i32, %arg1: memref<32x256xbf16, #tpu.memory_space<vmem>>, %arg2: memref<256x32xf32, #tpu.memory_space<vmem>>, %arg3: memref<1x32xf32, #tpu.memory_space<vmem>>, %arg4: memref<1x32xf32, #tpu.memory_space<vmem>>, %arg5: memref<32x32xf32, #tpu.memory_space<vmem>>, %arg6: memref<1x32xf32, #tpu.memory_space<vmem>>, %arg7: memref<256x32xf32, #tpu.memory_space<vmem>>) attributes {dimension_semantics = [#tpu.dimension_semantics<parallel>], iteration_bounds = array<i64: 1>, scalar_prefetch = 0 : i64, scratch_operands = 0 : i64, tpu.core_type = #tpu.core_type<tc>, window_params = [{transform_indices = @transform_0, window_bounds = array<i64: 32, 256>}, {transform_indices = @transform_1, window_bounds = array<i64: 256, 32>}, {pipeline_mode = #tpu.pipeline_mode<synchronous>, transform_indices = @transform_2, window_bounds = array<i64: 1, 32>}, {pipeline_mode = #tpu.pipeline_mode<synchronous>, transform_indices = @transform_3, window_bounds = array<i64: 1, 32>}, {pipeline_mode = #tpu.pipeline_mode<synchronous>, transform_indices = @transform_4, window_bounds = array<i64: 32, 32>}, {pipeline_mode = #tpu.pipeline_mode<synchronous>, transform_indices = @transform_5, window_bounds = array<i64: 1, 32>}, {transform_indices = @transform_6, window_bounds = array<i64: 256, 32>}]} {
    %c0 = arith.constant 0 : index
    %c0_0 = arith.constant 0 : index
    %0 = vector.load %arg1[%c0, %c0_0] : memref<32x256xbf16, #tpu.memory_space<vmem>>, vector<32x256xbf16>
    %1 = arith.extf %0 : vector<32x256xbf16> to vector<32x256xf32>
    %2 = tpu.transpose %1, [1, 0] : vector<32x256xf32> -> vector<256x32xf32>
    %cst = arith.constant dense<0.000000e+00> : vector<256xf32>
    %3 = vector.multi_reduction <add>, %2, %cst [1] : vector<256x32xf32> to vector<256xf32>
    %4 = vector.shape_cast %3 : vector<256xf32> to vector<256x1xf32>
    %cst_1 = arith.constant 3.200000e+01 : f32
    %5 = vector.broadcast %cst_1 : f32 to vector<256x1xf32>
    %6 = arith.divf %4, %5 : vector<256x1xf32>
    %7 = vector.broadcast %6 : vector<256x1xf32> to vector<256x32xf32>
    %8 = arith.subf %2, %7 : vector<256x32xf32>
    %9 = arith.mulf %8, %8 : vector<256x32xf32>
    %cst_2 = arith.constant dense<0.000000e+00> : vector<256xf32>
    %10 = vector.multi_reduction <add>, %9, %cst_2 [1] : vector<256x32xf32> to vector<256xf32>
    %11 = vector.shape_cast %10 : vector<256xf32> to vector<256x1xf32>
    %cst_3 = arith.constant 3.200000e+01 : f32
    %12 = vector.broadcast %cst_3 : f32 to vector<256x1xf32>
    %13 = arith.divf %11, %12 : vector<256x1xf32>
    %14 = vector.broadcast %6 : vector<256x1xf32> to vector<256x32xf32>
    %15 = arith.subf %2, %14 : vector<256x32xf32>
    %cst_4 = arith.constant 9.99999974E-6 : f32
    %16 = vector.broadcast %cst_4 : f32 to vector<256x1xf32>
    %17 = arith.addf %13, %16 : vector<256x1xf32>
    %18 = math.rsqrt %17 : vector<256x1xf32>
    %19 = vector.broadcast %18 : vector<256x1xf32> to vector<256x32xf32>
    %20 = arith.mulf %15, %19 : vector<256x32xf32>
    %c0_5 = arith.constant 0 : index
    %c0_6 = arith.constant 0 : index
    %21 = vector.load %arg3[%c0_5, %c0_6] : memref<1x32xf32, #tpu.memory_space<vmem>>, vector<1x32xf32>
    %22 = vector.broadcast %21 : vector<1x32xf32> to vector<256x32xf32>
    %23 = arith.mulf %20, %22 : vector<256x32xf32>
    %c0_7 = arith.constant 0 : index
    %c0_8 = arith.constant 0 : index
    %24 = vector.load %arg4[%c0_7, %c0_8] : memref<1x32xf32, #tpu.memory_space<vmem>>, vector<1x32xf32>
    %25 = vector.broadcast %24 : vector<1x32xf32> to vector<256x32xf32>
    %26 = arith.addf %23, %25 : vector<256x32xf32>
    %c0_9 = arith.constant 0 : index
    %c0_10 = arith.constant 0 : index
    %27 = vector.load %arg5[%c0_9, %c0_10] : memref<32x32xf32, #tpu.memory_space<vmem>>, vector<32x32xf32>
    %cst_11 = arith.constant dense<0.000000e+00> : vector<256x32xf32>
    %28 = tpu.matmul %26, %27, %cst_11 {dimension_numbers = #tpu.dot_dimension_numbers<[1], [0], [0], [1], [0, 0, 1, 1], [], []>} : vector<256x32xf32>, vector<32x32xf32>, vector<256x32xf32> -> vector<256x32xf32>
    %c0_12 = arith.constant 0 : index
    %c0_13 = arith.constant 0 : index
    %29 = vector.load %arg6[%c0_12, %c0_13] : memref<1x32xf32, #tpu.memory_space<vmem>>, vector<1x32xf32>
    %30 = vector.broadcast %29 : vector<1x32xf32> to vector<256x32xf32>
    %31 = arith.addf %28, %30 : vector<256x32xf32>
    %c0_14 = arith.constant 0 : index
    %c0_15 = arith.constant 0 : index
    %32 = vector.load %arg2[%c0_14, %c0_15] : memref<256x32xf32, #tpu.memory_space<vmem>>, vector<256x32xf32>
    %33 = arith.mulf %31, %32 : vector<256x32xf32>
    %c0_16 = arith.constant 0 : index
    %c0_17 = arith.constant 0 : index
    %34 = vector.load %arg7[%c0_16, %c0_17] : memref<256x32xf32, #tpu.memory_space<vmem>>, vector<256x32xf32>
    tpu.vector_store %arg7[%c0_16, %c0_17], %33 {strides = array<i32>} : memref<256x32xf32, #tpu.memory_space<vmem>>, vector<256x32xf32>,
    return
  }
  func.func @transform_0(%arg0: i32) -> (i32, i32) {
    %c0_i32 = arith.constant 0 : i32
    %c0_i32_0 = arith.constant 0 : i32
    return %c0_i32, %arg0 : i32, i32
  }
  func.func @transform_1(%arg0: i32) -> (i32, i32) {
    %c0_i32 = arith.constant 0 : i32
    %c0_i32_0 = arith.constant 0 : i32
    return %arg0, %c0_i32 : i32, i32
  }
  func.func @transform_2(%arg0: i32) -> (i32, i32) {
    %c0_i32 = arith.constant 0 : i32
    %c0_i32_0 = arith.constant 0 : i32
    %c0_i32_1 = arith.constant 0 : i32
    return %c0_i32, %c0_i32_0 : i32, i32
  }
  func.func @transform_3(%arg0: i32) -> (i32, i32) {
    %c0_i32 = arith.constant 0 : i32
    %c0_i32_0 = arith.constant 0 : i32
    %c0_i32_1 = arith.constant 0 : i32
    return %c0_i32, %c0_i32_0 : i32, i32
  }
  func.func @transform_4(%arg0: i32) -> (i32, i32) {
    %c0_i32 = arith.constant 0 : i32
    %c0_i32_0 = arith.constant 0 : i32
    %c0_i32_1 = arith.constant 0 : i32
    return %c0_i32, %c0_i32_0 : i32, i32
  }
  func.func @transform_5(%arg0: i32) -> (i32, i32) {
    %c0_i32 = arith.constant 0 : i32
    %c0_i32_0 = arith.constant 0 : i32
    %c0_i32_1 = arith.constant 0 : i32
    return %c0_i32, %c0_i32_0 : i32, i32
  }
  func.func @transform_6(%arg0: i32) -> (i32, i32) {
    %c0_i32 = arith.constant 0 : i32
    %c0_i32_0 = arith.constant 0 : i32
    return %arg0, %c0_i32 : i32, i32
  }
}

</mosaic_0001>

<llo_original>
// kernel: triangle_multiplicative_update.4
$region0: #{triangle_multiplicative_update.4}
  #allocation0 [shape = 'u32[]', space=smem, size = 0x4, offset = 0x4, fixed_abs, tag = 'smem constant byte address 0x4 - core index']
  #allocation1 [shape = 'u32[144,128]{1,0:T(1,128)}', space=vmem, size = 0x12000, scoped, tag = 'internal scratch']
  #allocation2 [shape = 'f32[16,16]{1,0:T(8,128)}', space=vmem, size = 0x2000, scoped, tag = 'scratch operand']
  %s0 = inlined_call_operand.vmem [shape: bf16[32,16,16], index: 0, kind: input, shape index: {}]
  %s1 = inlined_call_operand.vmem [shape: bf16[32,16,16], index: 1, kind: input, shape index: {}]
  %s2 = inlined_call_operand.vmem [shape: bf16[32,16,16], index: 2, kind: output, shape index: {}]
  %s3 = sld [smem:[#allocation0]]
  $region49: #{triangle_multiplicative_update.4} parent=0
    _
  %s5 = ssub.s32 1, %s3
  %s6 = scalar_select 0, %s5, %s3
  loop: start=0, step=1, limit=34
  $region2: #{triangle_multiplicative_update.4} parent=0 // loop_pre_header
    _
  $region3: #{triangle_multiplicative_update.4} parent=0 // loop_header
    %s8 = sphi 0, %s12
    %p9 = scmp.ge.s32.totalorder %s8, 34
    %s15 = sphi 0, %s41
    %s16 = sphi 0, %s37
    %s17 = sphi 0, %s33
    %s18 = sphi 0, %s29
    %s19 = sphi 0, %s15
    %s20 = sphi 0, %s16
    %s21 = sphi 0, %s17
    %s22 = sphi 0, %s18
    %s23 = sphi 0, %s19
    %s24 = sphi 0, %s20
    %s25 = sphi 0, %s21
    %s26 = sphi 0, %s22
    %s48 = sphi 0, %s50
    %s51 = sphi 0, %s48
    %s52 = sphi 0, %s51
    %s68 = sphi 0, %s52
    %s78 = sphi 0, %s80
    %s81 = sphi 0, %s78
    %s82 = sphi 0, %s81
    %s98 = sphi 0, %s82
    %s108 = sphi 0, %s110
    %s111 = sphi 0, %s108
    %s112 = sphi 0, %s111
    %s128 = sphi 0, %s112
  $region4: #{triangle_multiplicative_update.4} parent=0 // loop_header_branch
    %11 = sbr.rel (%p9) target = $region8
  $region5: #{triangle_multiplicative_update.4} parent=0 // loop_body
    %s13 = ssub.s32 %s8, 1
    %s14 = ssub.s32 %s8, 2
    %s27 = sadd.s32 1, %s18
    %p28 = scmp.ge.s32.totalorder %s27, 1
    %s29 = scalar_select %p28, 0, %s27
    %s30 = sadd.s32 1, %s17
    %s31 = scalar_select %p28, %s30, %s17
    %p32 = scmp.ge.s32.totalorder %s31, 1
    %s33 = scalar_select %p32, 0, %s31
    %s34 = sadd.s32 1, %s16
    %s35 = scalar_select %p32, %s34, %s16
    %p36 = scmp.ge.s32.totalorder %s35, 1
    %s37 = scalar_select %p36, 0, %s35
    %s38 = sadd.s32 1, %s15
    %s39 = scalar_select %p36, %s38, %s15
    %p40 = scmp.ge.s32.totalorder %s39, 32
    %s41 = scalar_select %p40, 0, %s39
    %s42 = ssub.s32 %s15, %s41
    %s43 = ssub.s32 %s16, %s37
    %s44 = sor.u32 %s42, %s43
    %s45 = ssub.s32 %s18, %s29
    %s46 = sor.u32 %s44, %s45
    %p47 = scmp.eq.s32.totalorder %s46, 0
    %s49 = sadd.s32 %s48, 1
    %s50 = scalar_select %p47, %s48, %s49
    %p53 = pneg %p47
    %p54 = scmp.eq.s32.totalorder %s8, 31
    %p55 = por %p53, %p54
    %p56 = scmp.ne.s32.totalorder %s48, %s51
    %p57 = scmp.eq.s32.totalorder %s8, 0
    %p58 = por %p56, %p57
    %p59 = scmp.ne.s32.totalorder %s48, %s51
    %p60 = scmp.eq.s32.totalorder %s13, 31
    %p61 = por %p59, %p60
    %p62 = scmp.ne.s32.totalorder %s51, %s52
    %p63 = scmp.eq.s32.totalorder %s13, 0
    %p64 = por %p62, %p63
    %p65 = scmp.ne.s32.totalorder %s51, %s52
    %p66 = scmp.eq.s32.totalorder %s14, 31
    %p67 = por %p65, %p66
    %p69 = scmp.ne.s32.totalorder %s52, %s68
    %p70 = scmp.eq.s32.totalorder %s14, 0
    %p71 = por %p69, %p70
    %s72 = ssub.s32 %s15, %s41
    %s73 = ssub.s32 %s17, %s33
    %s74 = sor.u32 %s72, %s73
    %s75 = ssub.s32 %s18, %s29
    %s76 = sor.u32 %s74, %s75
    %p77 = scmp.eq.s32.totalorder %s76, 0
    %s79 = sadd.s32 %s78, 1
    %s80 = scalar_select %p77, %s78, %s79
    %p83 = pneg %p77
    %p84 = scmp.eq.s32.totalorder %s8, 31
    %p85 = por %p83, %p84
    %p86 = scmp.ne.s32.totalorder %s78, %s81
    %p87 = scmp.eq.s32.totalorder %s8, 0
    %p88 = por %p86, %p87
    %p89 = scmp.ne.s32.totalorder %s78, %s81
    %p90 = scmp.eq.s32.totalorder %s13, 31
    %p91 = por %p89, %p90
    %p92 = scmp.ne.s32.totalorder %s81, %s82
    %p93 = scmp.eq.s32.totalorder %s13, 0
    %p94 = por %p92, %p93
    %p95 = scmp.ne.s32.totalorder %s81, %s82
    %p96 = scmp.eq.s32.totalorder %s14, 31
    %p97 = por %p95, %p96
    %p99 = scmp.ne.s32.totalorder %s82, %s98
    %p100 = scmp.eq.s32.totalorder %s14, 0
    %p101 = por %p99, %p100
    %s102 = ssub.s32 %s15, %s41
    %s103 = ssub.s32 %s16, %s37
    %s104 = sor.u32 %s102, %s103
    %s105 = ssub.s32 %s17, %s33
    %s106 = sor.u32 %s104, %s105
    %p107 = scmp.eq.s32.totalorder %s106, 0
    %s109 = sadd.s32 %s108, 1
    %s110 = scalar_select %p107, %s108, %s109
    %p113 = pneg %p107
    %p114 = scmp.eq.s32.totalorder %s8, 31
    %p115 = por %p113, %p114
    %p116 = scmp.ne.s32.totalorder %s108, %s111
    %p117 = scmp.eq.s32.totalorder %s8, 0
    %p118 = por %p116, %p117
    %p119 = scmp.ne.s32.totalorder %s108, %s111
    %p120 = scmp.eq.s32.totalorder %s13, 31
    %p121 = por %p119, %p120
    %p122 = scmp.ne.s32.totalorder %s111, %s112
    %p123 = scmp.eq.s32.totalorder %s13, 0
    %p124 = por %p122, %p123
    %p125 = scmp.ne.s32.totalorder %s111, %s112
    %p126 = scmp.eq.s32.totalorder %s14, 31
    %p127 = por %p125, %p126
    %p129 = scmp.ne.s32.totalorder %s112, %s128
    %p130 = scmp.eq.s32.totalorder %s14, 0
    %p131 = por %p129, %p130
    %p132 = scmp.le.s32.totalorder 1, %s8
    %p133 = scmp.lt.s32.totalorder %s8, 33
    %p134 = pnand %p132, %p133
    %p135 = pneg %p134
    // Predicated region
    $region9: #{triangle_multiplicative_update.4} parent=5 // pred_check
      _
    $region10: #{triangle_multiplicative_update.4} parent=5 // pred_check_branch
      %137 = sbr.rel (%p134) target = $region12
    $region11: #{triangle_multiplicative_update.4} parent=5 // pred_region
      %s138 = ssub.s32 %s8, 1
    $region12: #{triangle_multiplicative_update.4} parent=5 // pred_fallthru
      _
    %p139 = scmp.lt.s32.totalorder %s8, 32
    // Predicated region
    $region13: #{triangle_multiplicative_update.4} parent=5 // pred_check
      %p140 = pneg %p139
    $region14: #{triangle_multiplicative_update.4} parent=5 // pred_check_branch
      %142 = sbr.rel (%p140) target = $region16
    $region15: #{triangle_multiplicative_update.4} parent=5 // pred_region
      // Predicated region
      $region17: #{triangle_multiplicative_update.4} parent=15 // pred_check
        %p143 = pneg %p58
      $region18: #{triangle_multiplicative_update.4} parent=15 // pred_check_branch
        %145 = sbr.rel (%p143) target = $region20
      $region19: #{triangle_multiplicative_update.4} parent=15 // pred_region
        %s146 = smul.u32 2, %s16
        %p147 = scmp.lt.s32.totalorder %s15, 31
        %s148 = scalar_select %p147, %s15, 31
        %p149 = scmp.lt.s32.totalorder %s146, 1
        %s150 = scalar_select %p149, %s146, 1
        %p151 = scmp.lt.s32.totalorder %s18, 0
        %s152 = scalar_select %p151, %s18, 0
        %s153 = sadd.s32 %s152, %s150
        %s154 = smul.addr %s148, 2
        %s155 = sadd.s32 %s153, %s154
        %s156 = smul.addr %s155, 4
        %s157 = scalar_lea.vmem %s0, %s156
        %s158 = smul.u32 2, %s16
      $region20: #{triangle_multiplicative_update.4} parent=15 // pred_fallthru
        _
      // Predicated region
      $region21: #{triangle_multiplicative_update.4} parent=15 // pred_check
        %p159 = pneg %p88
      $region22: #{triangle_multiplicative_update.4} parent=15 // pred_check_branch
        %161 = sbr.rel (%p159) target = $region24
      $region23: #{triangle_multiplicative_update.4} parent=15 // pred_region
        %s162 = smul.u32 2, %s17
        %p163 = scmp.lt.s32.totalorder %s15, 31
        %s164 = scalar_select %p163, %s15, 31
        %p165 = scmp.lt.s32.totalorder %s162, 1
        %s166 = scalar_select %p165, %s162, 1
        %p167 = scmp.lt.s32.totalorder %s18, 0
        %s168 = scalar_select %p167, %s18, 0
        %s169 = sadd.s32 %s168, %s166
        %s170 = smul.addr %s164, 2
        %s171 = sadd.s32 %s169, %s170
        %s172 = smul.addr %s171, 4
        %s173 = scalar_lea.vmem %s1, %s172
        %s174 = smul.u32 2, %s17
      $region24: #{triangle_multiplicative_update.4} parent=15 // pred_fallthru
        _
    $region16: #{triangle_multiplicative_update.4} parent=5 // pred_fallthru
      _
    %p175 = scmp.le.s32.totalorder 1, %s8
    %p176 = scmp.lt.s32.totalorder %s8, 33
    %p177 = pnand %p175, %p176
    %p178 = pneg %p177
    // Predicated region
    $region25: #{triangle_multiplicative_update.4} parent=5 // pred_check
      _
    $region26: #{triangle_multiplicative_update.4} parent=5 // pred_check_branch
      %180 = sbr.rel (%p177) target = $region28
    $region27: #{triangle_multiplicative_update.4} parent=5 // pred_region
      %s181 = ssub.s32 %s8, 1
      %s182 = smul.u32 2, %s20
      %p183 = scmp.lt.s32.totalorder %s19, 31
      %s184 = scalar_select %p183, %s19, 31
      %p185 = scmp.lt.s32.totalorder %s182, 1
      %s186 = scalar_select %p185, %s182, 1
      %p187 = scmp.lt.s32.totalorder %s22, 0
      %s188 = scalar_select %p187, %s22, 0
      %s189 = sadd.s32 %s188, %s186
      %s190 = smul.addr %s184, 2
      %s191 = sadd.s32 %s189, %s190
      %s192 = smul.addr %s191, 4
      %s193 = scalar_lea.vmem %s0, %s192
      %p194 = pneg %p64
      %p195 = pneg %p61
      %s196 = smul.u32 2, %s21
      %p197 = scmp.lt.s32.totalorder %s19, 31
      %s198 = scalar_select %p197, %s19, 31
      %p199 = scmp.lt.s32.totalorder %s196, 1
      %s200 = scalar_select %p199, %s196, 1
      %p201 = scmp.lt.s32.totalorder %s22, 0
      %s202 = scalar_select %p201, %s22, 0
      %s203 = sadd.s32 %s202, %s200
      %s204 = smul.addr %s198, 2
      %s205 = sadd.s32 %s203, %s204
      %s206 = smul.addr %s205, 4
      %s207 = scalar_lea.vmem %s1, %s206
      %p208 = pneg %p94
      %p209 = pneg %p91
      %p210 = pneg %p124
      %p211 = pneg %p121
      %s212 = smul.u32 2, %s20
      %p213 = scmp.lt.s32.totalorder %s19, 31
      %s214 = scalar_select %p213, %s19, 31
      %p215 = scmp.lt.s32.totalorder %s212, 1
      %s216 = scalar_select %p215, %s212, 1
      %p217 = scmp.lt.s32.totalorder %s21, 0
      %s218 = scalar_select %p217, %s21, 0
      %s219 = sadd.s32 %s218, %s216
      %s220 = smul.addr %s214, 2
      %s221 = sadd.s32 %s219, %s220
      %s222 = smul.addr %s221, 4
      %s223 = scalar_lea.vmem %s2, %s222
      %s224 = smul.u32 2, %s20
      %p225 = scmp.lt.s32.totalorder %s19, 31
      %s226 = scalar_select %p225, %s19, 31
      %p227 = scmp.lt.s32.totalorder %s224, 1
      %s228 = scalar_select %p227, %s224, 1
      %p229 = scmp.lt.s32.totalorder %s22, 0
      %s230 = scalar_select %p229, %s22, 0
      %s231 = sadd.s32 %s230, %s228
      %s232 = smul.addr %s226, 2
      %s233 = sadd.s32 %s231, %s232
      %s234 = smul.addr %s233, 4
      %s235 = scalar_lea.vmem %s0, %s234
      %s236 = smul.u32 2, %s20
      %s237 = smul.u32 2, %s21
      %p238 = scmp.lt.s32.totalorder %s19, 31
      %s239 = scalar_select %p238, %s19, 31
      %p240 = scmp.lt.s32.totalorder %s237, 1
      %s241 = scalar_select %p240, %s237, 1
      %p242 = scmp.lt.s32.totalorder %s22, 0
      %s243 = scalar_select %p242, %s22, 0
      %s244 = sadd.s32 %s243, %s241
      %s245 = smul.addr %s239, 2
      %s246 = sadd.s32 %s244, %s245
      %s247 = smul.addr %s246, 4
      %s248 = scalar_lea.vmem %s1, %s247
      %s249 = smul.u32 2, %s21
      %s250 = smul.u32 2, %s20
      %p251 = scmp.lt.s32.totalorder %s19, 31
      %s252 = scalar_select %p251, %s19, 31
      %p253 = scmp.lt.s32.totalorder %s250, 1
      %s254 = scalar_select %p253, %s250, 1
      %p255 = scmp.lt.s32.totalorder %s21, 0
      %s256 = scalar_select %p255, %s21, 0
      %s257 = sadd.s32 %s256, %s254
      %s258 = smul.addr %s252, 2
      %s259 = sadd.s32 %s257, %s258
      %s260 = smul.addr %s259, 4
      %s261 = scalar_lea.vmem %s2, %s260
      %s262 = smul.u32 2, %s20
      %p264 = scmp.eq.s32.totalorder %s22, 0
      // Predicated region
      $region29: #{triangle_multiplicative_update.4} parent=27 // pred_check
        %p265 = pneg %p264
      $region30: #{triangle_multiplicative_update.4} parent=27 // pred_check_branch
        %267 = sbr.rel (%p265) target = $region32
      $region31: #{triangle_multiplicative_update.4} parent=27 // pred_region
        %vm268 = vcmask 130048
        %269 = vst.msk [vmem:[#allocation2] sm:$0xff] %vm268, 0.0
        %270 = vst.msk [vmem:[#allocation2 + $0x8] sm:$0xff] %vm268, 0.0
      $region32: #{triangle_multiplicative_update.4} parent=27 // pred_fallthru
        _
      %v271 = vld [vmem:[#allocation2] sm:$0xff]
      %v272 = vld [vmem:[#allocation2 + $0x8] sm:$0xff]
      %v273 = vld [vmem:[%s235] sm:$0xf]
      %v274 = vld [vmem:[%s235 + $0x4] sm:$0xf]
      %v275 = vld [vmem:[%s248] sm:$0xf]
      %v276 = vld [vmem:[%s248 + $0x4] sm:$0xf]
      %v279 = vunpack.c.l.b16 %v273
      %v280 = vunpack.c.l.b16 %v274
      %v281 = vpack.c.b16 %v280, %v279
      %v284 = vunpack.c.l.b16 %v275
      %v285 = vunpack.c.l.b16 %v276
      %v286 = vpack.c.b16 %v285, %v284
      %vm287 = vcmask 130048
      %v289 = vsel %vm287, %v281, 0
      %v292 = vsel %vm287, %v286, 0
      %294 = vmatprep.subr.bf16.mxu0 0
      %295 = vmatpush1.bf16.xpose.msra.mxu0 %v292
      %296 = vmatprep.subr.bf16.mxu0 0
      %297 = vmatpush1.bf16.xpose.msra.mxu0 0
      %298 = vmatprep.subr.bf16.mxu0 0
      %299 = vmatpush1.bf16.xpose.msra.mxu0 0
      %300 = vmatprep.subr.bf16.mxu0 0
      %301 = vmatpush1.bf16.xpose.msra.mxu0 0
      %302 = vmatprep.subr.bf16.mxu0 0
      %303 = vmatpush1.bf16.xpose.msra.mxu0 0
      %304 = vmatprep.subr.bf16.mxu0 0
      %305 = vmatpush1.bf16.xpose.msra.mxu0 0
      %306 = vmatprep.subr.bf16.mxu0 0
      %307 = vmatpush1.bf16.xpose.msra.mxu0 0
      %308 = vmatprep.subr.bf16.mxu0 0
      %309 = vmatpush1.bf16.xpose.msra.mxu0 0
      %310 = vmatprep.subr.bf16.mxu0 0
      %311 = vmatpush1.bf16.xpose.msra.mxu0 0
      %312 = vmatprep.subr.bf16.mxu0 0
      %313 = vmatpush1.bf16.xpose.msra.mxu0 0
      %314 = vmatprep.subr.bf16.mxu0 0
      %315 = vmatpush1.bf16.xpose.msra.mxu0 0
      %316 = vmatprep.subr.bf16.mxu0 0
      %317 = vmatpush1.bf16.xpose.msra.mxu0 0
      %318 = vmatprep.subr.bf16.mxu0 0
      %319 = vmatpush1.bf16.xpose.msra.mxu0 0
      %320 = vmatprep.subr.bf16.mxu0 0
      %321 = vmatpush1.bf16.xpose.msra.mxu0 0
      %322 = vmatprep.subr.bf16.mxu0 0
      %323 = vmatpush1.bf16.xpose.msra.mxu0 0
      %324 = vmatprep.subr.bf16.mxu0 0
      %325 = vmatpush1.bf16.xpose.msra.mxu0 0
      %326 = vmatprep.mubr.bf16.mxu0 0
      %327 = vmatmul.mubr.bf16.gmra.mrb[0].mxu0 %v289
      %v328 = vpop.f32.mrb[0].mxu0
      %v329 = vadd.f32 0.0, %v328
      %v330 = vpop.f32.mrb[0].mxu0
      %v331 = vpop.f32.mrb[0].mxu0
      %v332 = vadd.f32 0.0, %v331
      %v333 = vpop.f32.mrb[0].mxu0
      %334 = vdwg.mxu0
      %v335 = vadd.f32 %v271, %v329
      %v336 = vadd.f32 %v272, %v332
      %337 = vst.msk [vmem:[#allocation2] sm:$0xff] %vm287, %v335
      %338 = vst.msk [vmem:[#allocation2 + $0x8] sm:$0xff] %vm287, %v336
      // Predicated region
      $region33: #{triangle_multiplicative_update.4} parent=27 // pred_check
        %p339 = pneg %p264
      $region34: #{triangle_multiplicative_update.4} parent=27 // pred_check_branch
        %341 = sbr.rel (%p339) target = $region36
      $region35: #{triangle_multiplicative_update.4} parent=27 // pred_region
        %v342 = vld [vmem:[#allocation2] sm:$0xff]
        %v343 = vld [vmem:[#allocation2 + $0x8] sm:$0xff]
        %v344 = vpack.c.bf16 %v343, %v342
        %v346 = vunpack.c.l.b16 %v344
        %v347 = vunpack.c.h.b16 %v344
        %v348 = vpack.c.b16 %v346, %v346
        %v349 = vpack.c.b16 %v347, %v347
        %vm352 = vcmask 125952
        %353 = vst.msk [vmem:[%s261] sm:$0xf] %vm352, %v348
        %354 = vst.msk [vmem:[%s261 + $0x4] sm:$0xf] %vm352, %v349
      $region36: #{triangle_multiplicative_update.4} parent=27 // pred_fallthru
        _
      %s355 = smul.u32 2, %s20
      %p356 = scmp.lt.s32.totalorder %s19, 31
      %s357 = scalar_select %p356, %s19, 31
      %p358 = scmp.lt.s32.totalorder %s355, 1
      %s359 = scalar_select %p358, %s355, 1
      %p360 = scmp.lt.s32.totalorder %s21, 0
      %s361 = scalar_select %p360, %s21, 0
      %s362 = sadd.s32 %s361, %s359
      %s363 = smul.addr %s357, 2
      %s364 = sadd.s32 %s362, %s363
      %s365 = smul.addr %s364, 4
      %s366 = scalar_lea.vmem %s2, %s365
      // Predicated region
      $region37: #{triangle_multiplicative_update.4} parent=27 // pred_check
        %p367 = pneg %p121
      $region38: #{triangle_multiplicative_update.4} parent=27 // pred_check_branch
        %369 = sbr.rel (%p367) target = $region40
      $region39: #{triangle_multiplicative_update.4} parent=27 // pred_region
        %s370 = smul.u32 2, %s20
      $region40: #{triangle_multiplicative_update.4} parent=27 // pred_fallthru
        _
    $region28: #{triangle_multiplicative_update.4} parent=5 // pred_fallthru
      _
    %p371 = scmp.le.s32.totalorder 2, %s8
    // Predicated region
    $region41: #{triangle_multiplicative_update.4} parent=5 // pred_check
      %p372 = pneg %p371
    $region42: #{triangle_multiplicative_update.4} parent=5 // pred_check_branch
      %374 = sbr.rel (%p372) target = $region44
    $region43: #{triangle_multiplicative_update.4} parent=5 // pred_region
      %s375 = ssub.s32 %s8, 2
      // Predicated region
      $region45: #{triangle_multiplicative_update.4} parent=43 // pred_check
        %p376 = pneg %p127
      $region46: #{triangle_multiplicative_update.4} parent=43 // pred_check_branch
        %378 = sbr.rel (%p376) target = $region48
      $region47: #{triangle_multiplicative_update.4} parent=43 // pred_region
        %s379 = smul.u32 2, %s24
        %p380 = scmp.lt.s32.totalorder %s23, 31
        %s381 = scalar_select %p380, %s23, 31
        %p382 = scmp.lt.s32.totalorder %s379, 1
        %s383 = scalar_select %p382, %s379, 1
        %p384 = scmp.lt.s32.totalorder %s25, 0
        %s385 = scalar_select %p384, %s25, 0
        %s386 = sadd.s32 %s385, %s383
        %s387 = smul.addr %s381, 2
        %s388 = sadd.s32 %s386, %s387
        %s389 = smul.addr %s388, 4
        %s390 = scalar_lea.vmem %s2, %s389
      $region48: #{triangle_multiplicative_update.4} parent=43 // pred_fallthru
        _
    $region44: #{triangle_multiplicative_update.4} parent=5 // pred_fallthru
      _
  $region6: #{triangle_multiplicative_update.4} parent=0 // loop_footer
    %s12 = sadd.s32 1, %s8
  $region7: #{triangle_multiplicative_update.4} parent=0 // loop_footer_branch
    %7 = sbr.rel target = $region3
  $region8: #{triangle_multiplicative_update.4} parent=0 // loop_exit
    _

// kernel: triangle_multiplicative_update.3
$region0: #{triangle_multiplicative_update.3}
  #allocation0 [shape = 'u32[]', space=smem, size = 0x4, offset = 0x4, fixed_abs, tag = 'smem constant byte address 0x4 - core index']
  #allocation1 [shape = 'u32[144,128]{1,0:T(1,128)}', space=vmem, size = 0x12000, scoped, tag = 'internal scratch']
  %s0 = inlined_call_operand.vmem [shape: f32[256,32], index: 0, kind: input, shape index: {}]
  %s1 = inlined_call_operand.vmem [shape: f32[1,256], index: 1, kind: input, shape index: {}]
  %s2 = inlined_call_operand.hbm [shape: f32[1,32], index: 2, kind: input, shape index: {}]
  %s3 = inlined_call_operand.hbm [shape: f32[1,32], index: 3, kind: input, shape index: {}]
  %s4 = inlined_call_operand.vmem [shape: f32[32,160], index: 4, kind: input, shape index: {}]
  %s5 = inlined_call_operand.vmem [shape: f32[1,160], index: 5, kind: input, shape index: {}]
  %s6 = inlined_call_operand.vmem [shape: bf16[32,256], index: 6, kind: output, shape index: {0}]
  %s7 = inlined_call_operand.vmem [shape: bf16[32,256], index: 7, kind: output, shape index: {1}]
  %s8 = inlined_call_operand.vmem [shape: f32[256,32], index: 8, kind: output, shape index: {2}]
  %9 = xla_tuple %s6, %s7, %s8
  %s10 = sld [smem:[#allocation0]]
  $region58: #{triangle_multiplicative_update.3} parent=0
    _
  %s12 = ssub.s32 1, %s10
  %s13 = scalar_select 0, %s12, %s10
  $region1: #{triangle_multiplicative_update.3} parent=0
    #allocation2 [shape = 'u8[512]{0}', space=vmem, size = 0x400, scoped, tag = 'input window, operand 2, single buffered']
    #allocation3 [shape = 's32[1]{0}', space=sflag, size = 0x4, scoped, tag = 'scoped memory for triangle_multiplicative_update.3']
    #allocation4 [shape = 'u8[512]{0}', space=vmem, size = 0x400, scoped, tag = 'input window, operand 3, single buffered']
    #allocation5 [shape = 's32[1]{0}', space=sflag, size = 0x4, scoped, tag = 'scoped memory for triangle_multiplicative_update.3']
    %14 = vsyncpa [#allocation3], 0
    %15 = vsyncpa [#allocation5], 0
    // Predicated region
    $region2: #{triangle_multiplicative_update.3} parent=1 // pred_check
      _
    $region3: #{triangle_multiplicative_update.3} parent=1 // pred_check_branch
      %17 = sbr.rel (0) target = $region5
    $region4: #{triangle_multiplicative_update.3} parent=1 // pred_region
      _
    $region5: #{triangle_multiplicative_update.3} parent=1 // pred_fallthru
      _
    // Predicated region
    $region6: #{triangle_multiplicative_update.3} parent=1 // pred_check
      _
    $region7: #{triangle_multiplicative_update.3} parent=1 // pred_check_branch
      %19 = sbr.rel (0) target = $region9
    $region8: #{triangle_multiplicative_update.3} parent=1 // pred_region
      _
    $region9: #{triangle_multiplicative_update.3} parent=1 // pred_fallthru
      _
    // Predicated region
    $region10: #{triangle_multiplicative_update.3} parent=1 // pred_check
      _
    $region11: #{triangle_multiplicative_update.3} parent=1 // pred_check_branch
      %21 = sbr.rel (0) target = $region13
    $region12: #{triangle_multiplicative_update.3} parent=1 // pred_region
      %s23 = ssub.s32 16, 16
      %24 = vsyncadd [#allocation3], %s23
      %s26 = sshll.u32 [#allocation2], 4
      %s27 = int_to_ptr.vmem [resolvable:$true] %s26
      %29 = dma.hbm_to_vmem [thread:$0]  %s2, 16, %s27, [#allocation3]
    $region13: #{triangle_multiplicative_update.3} parent=1 // pred_fallthru
      _
    // Predicated region
    $region14: #{triangle_multiplicative_update.3} parent=1 // pred_check
      _
    $region15: #{triangle_multiplicative_update.3} parent=1 // pred_check_branch
      %31 = sbr.rel (0) target = $region17
    $region16: #{triangle_multiplicative_update.3} parent=1 // pred_region
      %s33 = ssub.s32 16, 16
      %34 = vsyncadd [#allocation5], %s33
      %s36 = sshll.u32 [#allocation4], 4
      %s37 = int_to_ptr.vmem [resolvable:$true] %s36
      %39 = dma.hbm_to_vmem [thread:$0]  %s3, 16, %s37, [#allocation5]
    $region17: #{triangle_multiplicative_update.3} parent=1 // pred_fallthru
      _
    // Predicated region
    $region18: #{triangle_multiplicative_update.3} parent=1 // pred_check
      _
    $region19: #{triangle_multiplicative_update.3} parent=1 // pred_check_branch
      %41 = sbr.rel (0) target = $region21
    $region20: #{triangle_multiplicative_update.3} parent=1 // pred_region
      _
    $region21: #{triangle_multiplicative_update.3} parent=1 // pred_fallthru
      _
    // Predicated region
    $region22: #{triangle_multiplicative_update.3} parent=1 // pred_check
      _
    $region23: #{triangle_multiplicative_update.3} parent=1 // pred_check_branch
      %43 = sbr.rel (0) target = $region25
    $region24: #{triangle_multiplicative_update.3} parent=1 // pred_region
      _
    $region25: #{triangle_multiplicative_update.3} parent=1 // pred_fallthru
      _
    // Predicated region
    $region26: #{triangle_multiplicative_update.3} parent=1 // pred_check
      _
    $region27: #{triangle_multiplicative_update.3} parent=1 // pred_check_branch
      %45 = sbr.rel (0) target = $region29
    $region28: #{triangle_multiplicative_update.3} parent=1 // pred_region
      %46 = dma.done [#allocation3], 16
    $region29: #{triangle_multiplicative_update.3} parent=1 // pred_fallthru
      _
    // Predicated region
    $region30: #{triangle_multiplicative_update.3} parent=1 // pred_check
      _
    $region31: #{triangle_multiplicative_update.3} parent=1 // pred_check_branch
      %48 = sbr.rel (0) target = $region33
    $region32: #{triangle_multiplicative_update.3} parent=1 // pred_region
      %49 = dma.done [#allocation5], 16
    $region33: #{triangle_multiplicative_update.3} parent=1 // pred_fallthru
      _
    %v50 = vld [vmem:[%s0] sm:$0xff]
    %v51 = vld [vmem:[%s0 + $0x8] sm:$0xff]
    %v52 = vld [vmem:[%s0 + $0x10] sm:$0xff]
    %v53 = vld [vmem:[%s0 + $0x18] sm:$0xff]
    %v54 = vld [vmem:[%s0 + $0x20] sm:$0xff]
    %v55 = vld [vmem:[%s0 + $0x28] sm:$0xff]
    %v56 = vld [vmem:[%s0 + $0x30] sm:$0xff]
    %v57 = vld [vmem:[%s0 + $0x38] sm:$0xff]
    %v58 = vld [vmem:[%s0 + $0x40] sm:$0xff]
    %v59 = vld [vmem:[%s0 + $0x48] sm:$0xff]
    %v60 = vld [vmem:[%s0 + $0x50] sm:$0xff]
    %v61 = vld [vmem:[%s0 + $0x58] sm:$0xff]
    %v62 = vld [vmem:[%s0 + $0x60] sm:$0xff]
    %v63 = vld [vmem:[%s0 + $0x68] sm:$0xff]
    %v64 = vld [vmem:[%s0 + $0x70] sm:$0xff]
    %v65 = vld [vmem:[%s0 + $0x78] sm:$0xff]
    %v66 = vld [vmem:[%s0 + $0x80] sm:$0xff]
    %v67 = vld [vmem:[%s0 + $0x88] sm:$0xff]
    %v68 = vld [vmem:[%s0 + $0x90] sm:$0xff]
    %v69 = vld [vmem:[%s0 + $0x98] sm:$0xff]
    %v70 = vld [vmem:[%s0 + $0xa0] sm:$0xff]
    %v71 = vld [vmem:[%s0 + $0xa8] sm:$0xff]
    %v72 = vld [vmem:[%s0 + $0xb0] sm:$0xff]
    %v73 = vld [vmem:[%s0 + $0xb8] sm:$0xff]
    %v74 = vld [vmem:[%s0 + $0xc0] sm:$0xff]
    %v75 = vld [vmem:[%s0 + $0xc8] sm:$0xff]
    %v76 = vld [vmem:[%s0 + $0xd0] sm:$0xff]
    %v77 = vld [vmem:[%s0 + $0xd8] sm:$0xff]
    %v78 = vld [vmem:[%s0 + $0xe0] sm:$0xff]
    %v79 = vld [vmem:[%s0 + $0xe8] sm:$0xff]
    %v80 = vld [vmem:[%s0 + $0xf0] sm:$0xff]
    %v81 = vld [vmem:[%s0 + $0xf8] sm:$0xff]
    %vm82 = vcmask 261120
    %v83 = vsel %vm82, %v50, 0.0
    %84 = vadd.xlane.f32.xlu0 %v83
    %v85 = vpop.xlane.xlu0 %84
    %v86 = vsel %vm82, %v51, 0.0
    %87 = vadd.xlane.f32.xlu0 %v86
    %v88 = vpop.xlane.xlu0 %87
    %v89 = vsel %vm82, %v52, 0.0
    %90 = vadd.xlane.f32.xlu0 %v89
    %v91 = vpop.xlane.xlu0 %90
    %v92 = vsel %vm82, %v53, 0.0
    %93 = vadd.xlane.f32.xlu0 %v92
    %v94 = vpop.xlane.xlu0 %93
    %v95 = vsel %vm82, %v54, 0.0
    %96 = vadd.xlane.f32.xlu0 %v95
    %v97 = vpop.xlane.xlu0 %96
    %v98 = vsel %vm82, %v55, 0.0
    %99 = vadd.xlane.f32.xlu0 %v98
    %v100 = vpop.xlane.xlu0 %99
    %v101 = vsel %vm82, %v56, 0.0
    %102 = vadd.xlane.f32.xlu0 %v101
    %v103 = vpop.xlane.xlu0 %102
    %v104 = vsel %vm82, %v57, 0.0
    %105 = vadd.xlane.f32.xlu0 %v104
    %v106 = vpop.xlane.xlu0 %105
    %v107 = vsel %vm82, %v58, 0.0
    %108 = vadd.xlane.f32.xlu0 %v107
    %v109 = vpop.xlane.xlu0 %108
    %v110 = vsel %vm82, %v59, 0.0
    %111 = vadd.xlane.f32.xlu0 %v110
    %v112 = vpop.xlane.xlu0 %111
    %v113 = vsel %vm82, %v60, 0.0
    %114 = vadd.xlane.f32.xlu0 %v113
    %v115 = vpop.xlane.xlu0 %114
    %v116 = vsel %vm82, %v61, 0.0
    %117 = vadd.xlane.f32.xlu0 %v116
    %v118 = vpop.xlane.xlu0 %117
    %v119 = vsel %vm82, %v62, 0.0
    %120 = vadd.xlane.f32.xlu0 %v119
    %v121 = vpop.xlane.xlu0 %120
    %v122 = vsel %vm82, %v63, 0.0
    %123 = vadd.xlane.f32.xlu0 %v122
    %v124 = vpop.xlane.xlu0 %123
    %v125 = vsel %vm82, %v64, 0.0
    %126 = vadd.xlane.f32.xlu0 %v125
    %v127 = vpop.xlane.xlu0 %126
    %v128 = vsel %vm82, %v65, 0.0
    %129 = vadd.xlane.f32.xlu0 %v128
    %v130 = vpop.xlane.xlu0 %129
    %v131 = vsel %vm82, %v66, 0.0
    %132 = vadd.xlane.f32.xlu0 %v131
    %v133 = vpop.xlane.xlu0 %132
    %v134 = vsel %vm82, %v67, 0.0
    %135 = vadd.xlane.f32.xlu0 %v134
    %v136 = vpop.xlane.xlu0 %135
    %v137 = vsel %vm82, %v68, 0.0
    %138 = vadd.xlane.f32.xlu0 %v137
    %v139 = vpop.xlane.xlu0 %138
    %v140 = vsel %vm82, %v69, 0.0
    %141 = vadd.xlane.f32.xlu0 %v140
    %v142 = vpop.xlane.xlu0 %141
    %v143 = vsel %vm82, %v70, 0.0
    %144 = vadd.xlane.f32.xlu0 %v143
    %v145 = vpop.xlane.xlu0 %144
    %v146 = vsel %vm82, %v71, 0.0
    %147 = vadd.xlane.f32.xlu0 %v146
    %v148 = vpop.xlane.xlu0 %147
    %v149 = vsel %vm82, %v72, 0.0
    %150 = vadd.xlane.f32.xlu0 %v149
    %v151 = vpop.xlane.xlu0 %150
    %v152 = vsel %vm82, %v73, 0.0
    %153 = vadd.xlane.f32.xlu0 %v152
    %v154 = vpop.xlane.xlu0 %153
    %v155 = vsel %vm82, %v74, 0.0
    %156 = vadd.xlane.f32.xlu0 %v155
    %v157 = vpop.xlane.xlu0 %156
    %v158 = vsel %vm82, %v75, 0.0
    %159 = vadd.xlane.f32.xlu0 %v158
    %v160 = vpop.xlane.xlu0 %159
    %v161 = vsel %vm82, %v76, 0.0
    %162 = vadd.xlane.f32.xlu0 %v161
    %v163 = vpop.xlane.xlu0 %162
    %v164 = vsel %vm82, %v77, 0.0
    %165 = vadd.xlane.f32.xlu0 %v164
    %v166 = vpop.xlane.xlu0 %165
    %v167 = vsel %vm82, %v78, 0.0
    %168 = vadd.xlane.f32.xlu0 %v167
    %v169 = vpop.xlane.xlu0 %168
    %v170 = vsel %vm82, %v79, 0.0
    %171 = vadd.xlane.f32.xlu0 %v170
    %v172 = vpop.xlane.xlu0 %171
    %v173 = vsel %vm82, %v80, 0.0
    %174 = vadd.xlane.f32.xlu0 %v173
    %v175 = vpop.xlane.xlu0 %174
    %v176 = vsel %vm82, %v81, 0.0
    %177 = vadd.xlane.f32.xlu0 %v176
    %v178 = vpop.xlane.xlu0 %177
    %v179 = vrcp.pop 32.0
    %v180 = vmul.f32 %v85, %v179
    %v181 = vmul.f32 %v88, %v179
    %v182 = vmul.f32 %v91, %v179
    %v183 = vmul.f32 %v94, %v179
    %v184 = vmul.f32 %v97, %v179
    %v185 = vmul.f32 %v100, %v179
    %v186 = vmul.f32 %v103, %v179
    %v187 = vmul.f32 %v106, %v179
    %v188 = vmul.f32 %v109, %v179
    %v189 = vmul.f32 %v112, %v179
    %v190 = vmul.f32 %v115, %v179
    %v191 = vmul.f32 %v118, %v179
    %v192 = vmul.f32 %v121, %v179
    %v193 = vmul.f32 %v124, %v179
    %v194 = vmul.f32 %v127, %v179
    %v195 = vmul.f32 %v130, %v179
    %v196 = vmul.f32 %v133, %v179
    %v197 = vmul.f32 %v136, %v179
    %v198 = vmul.f32 %v139, %v179
    %v199 = vmul.f32 %v142, %v179
    %v200 = vmul.f32 %v145, %v179
    %v201 = vmul.f32 %v148, %v179
    %v202 = vmul.f32 %v151, %v179
    %v203 = vmul.f32 %v154, %v179
    %v204 = vmul.f32 %v157, %v179
    %v205 = vmul.f32 %v160, %v179
    %v206 = vmul.f32 %v163, %v179
    %v207 = vmul.f32 %v166, %v179
    %v208 = vmul.f32 %v169, %v179
    %v209 = vmul.f32 %v172, %v179
    %v210 = vmul.f32 %v175, %v179
    %v211 = vmul.f32 %v178, %v179
    %v212 = vsub.f32 %v50, %v180
    %v213 = vsub.f32 %v51, %v181
    %v214 = vsub.f32 %v52, %v182
    %v215 = vsub.f32 %v53, %v183
    %v216 = vsub.f32 %v54, %v184
    %v217 = vsub.f32 %v55, %v185
    %v218 = vsub.f32 %v56, %v186
    %v219 = vsub.f32 %v57, %v187
    %v220 = vsub.f32 %v58, %v188
    %v221 = vsub.f32 %v59, %v189
    %v222 = vsub.f32 %v60, %v190
    %v223 = vsub.f32 %v61, %v191
    %v224 = vsub.f32 %v62, %v192
    %v225 = vsub.f32 %v63, %v193
    %v226 = vsub.f32 %v64, %v194
    %v227 = vsub.f32 %v65, %v195
    %v228 = vsub.f32 %v66, %v196
    %v229 = vsub.f32 %v67, %v197
    %v230 = vsub.f32 %v68, %v198
    %v231 = vsub.f32 %v69, %v199
    %v232 = vsub.f32 %v70, %v200
    %v233 = vsub.f32 %v71, %v201
    %v234 = vsub.f32 %v72, %v202
    %v235 = vsub.f32 %v73, %v203
    %v236 = vsub.f32 %v74, %v204
    %v237 = vsub.f32 %v75, %v205
    %v238 = vsub.f32 %v76, %v206
    %v239 = vsub.f32 %v77, %v207
    %v240 = vsub.f32 %v78, %v208
    %v241 = vsub.f32 %v79, %v209
    %v242 = vsub.f32 %v80, %v210
    %v243 = vsub.f32 %v81, %v211
    %v244 = vmul.f32 %v212, %v212
    %v245 = vmul.f32 %v213, %v213
    %v246 = vmul.f32 %v214, %v214
    %v247 = vmul.f32 %v215, %v215
    %v248 = vmul.f32 %v216, %v216
    %v249 = vmul.f32 %v217, %v217
    %v250 = vmul.f32 %v218, %v218
    %v251 = vmul.f32 %v219, %v219
    %v252 = vmul.f32 %v220, %v220
    %v253 = vmul.f32 %v221, %v221
    %v254 = vmul.f32 %v222, %v222
    %v255 = vmul.f32 %v223, %v223
    %v256 = vmul.f32 %v224, %v224
    %v257 = vmul.f32 %v225, %v225
    %v258 = vmul.f32 %v226, %v226
    %v259 = vmul.f32 %v227, %v227
    %v260 = vmul.f32 %v228, %v228
    %v261 = vmul.f32 %v229, %v229
    %v262 = vmul.f32 %v230, %v230
    %v263 = vmul.f32 %v231, %v231
    %v264 = vmul.f32 %v232, %v232
    %v265 = vmul.f32 %v233, %v233
    %v266 = vmul.f32 %v234, %v234
    %v267 = vmul.f32 %v235, %v235
    %v268 = vmul.f32 %v236, %v236
    %v269 = vmul.f32 %v237, %v237
    %v270 = vmul.f32 %v238, %v238
    %v271 = vmul.f32 %v239, %v239
    %v272 = vmul.f32 %v240, %v240
    %v273 = vmul.f32 %v241, %v241
    %v274 = vmul.f32 %v242, %v242
    %v275 = vmul.f32 %v243, %v243
    %v276 = vsel %vm82, %v244, 0.0
    %277 = vadd.xlane.f32.xlu0 %v276
    %v278 = vpop.xlane.xlu0 %277
    %v279 = vsel %vm82, %v245, 0.0
    %280 = vadd.xlane.f32.xlu0 %v279
    %v281 = vpop.xlane.xlu0 %280
    %v282 = vsel %vm82, %v246, 0.0
    %283 = vadd.xlane.f32.xlu0 %v282
    %v284 = vpop.xlane.xlu0 %283
    %v285 = vsel %vm82, %v247, 0.0
    %286 = vadd.xlane.f32.xlu0 %v285
    %v287 = vpop.xlane.xlu0 %286
    %v288 = vsel %vm82, %v248, 0.0
    %289 = vadd.xlane.f32.xlu0 %v288
    %v290 = vpop.xlane.xlu0 %289
    %v291 = vsel %vm82, %v249, 0.0
    %292 = vadd.xlane.f32.xlu0 %v291
    %v293 = vpop.xlane.xlu0 %292
    %v294 = vsel %vm82, %v250, 0.0
    %295 = vadd.xlane.f32.xlu0 %v294
    %v296 = vpop.xlane.xlu0 %295
    %v297 = vsel %vm82, %v251, 0.0
    %298 = vadd.xlane.f32.xlu0 %v297
    %v299 = vpop.xlane.xlu0 %298
    %v300 = vsel %vm82, %v252, 0.0
    %301 = vadd.xlane.f32.xlu0 %v300
    %v302 = vpop.xlane.xlu0 %301
    %v303 = vsel %vm82, %v253, 0.0
    %304 = vadd.xlane.f32.xlu0 %v303
    %v305 = vpop.xlane.xlu0 %304
    %v306 = vsel %vm82, %v254, 0.0
    %307 = vadd.xlane.f32.xlu0 %v306
    %v308 = vpop.xlane.xlu0 %307
    %v309 = vsel %vm82, %v255, 0.0
    %310 = vadd.xlane.f32.xlu0 %v309
    %v311 = vpop.xlane.xlu0 %310
    %v312 = vsel %vm82, %v256, 0.0
    %313 = vadd.xlane.f32.xlu0 %v312
    %v314 = vpop.xlane.xlu0 %313
    %v315 = vsel %vm82, %v257, 0.0
    %316 = vadd.xlane.f32.xlu0 %v315
    %v317 = vpop.xlane.xlu0 %316
    %v318 = vsel %vm82, %v258, 0.0
    %319 = vadd.xlane.f32.xlu0 %v318
    %v320 = vpop.xlane.xlu0 %319
    %v321 = vsel %vm82, %v259, 0.0
    %322 = vadd.xlane.f32.xlu0 %v321
    %v323 = vpop.xlane.xlu0 %322
    %v324 = vsel %vm82, %v260, 0.0
    %325 = vadd.xlane.f32.xlu0 %v324
    %v326 = vpop.xlane.xlu0 %325
    %v327 = vsel %vm82, %v261, 0.0
    %328 = vadd.xlane.f32.xlu0 %v327
    %v329 = vpop.xlane.xlu0 %328
    %v330 = vsel %vm82, %v262, 0.0
    %331 = vadd.xlane.f32.xlu0 %v330
    %v332 = vpop.xlane.xlu0 %331
    %v333 = vsel %vm82, %v263, 0.0
    %334 = vadd.xlane.f32.xlu0 %v333
    %v335 = vpop.xlane.xlu0 %334
    %v336 = vsel %vm82, %v264, 0.0
    %337 = vadd.xlane.f32.xlu0 %v336
    %v338 = vpop.xlane.xlu0 %337
    %v339 = vsel %vm82, %v265, 0.0
    %340 = vadd.xlane.f32.xlu0 %v339
    %v341 = vpop.xlane.xlu0 %340
    %v342 = vsel %vm82, %v266, 0.0
    %343 = vadd.xlane.f32.xlu0 %v342
    %v344 = vpop.xlane.xlu0 %343
    %v345 = vsel %vm82, %v267, 0.0
    %346 = vadd.xlane.f32.xlu0 %v345
    %v347 = vpop.xlane.xlu0 %346
    %v348 = vsel %vm82, %v268, 0.0
    %349 = vadd.xlane.f32.xlu0 %v348
    %v350 = vpop.xlane.xlu0 %349
    %v351 = vsel %vm82, %v269, 0.0
    %352 = vadd.xlane.f32.xlu0 %v351
    %v353 = vpop.xlane.xlu0 %352
    %v354 = vsel %vm82, %v270, 0.0
    %355 = vadd.xlane.f32.xlu0 %v354
    %v356 = vpop.xlane.xlu0 %355
    %v357 = vsel %vm82, %v271, 0.0
    %358 = vadd.xlane.f32.xlu0 %v357
    %v359 = vpop.xlane.xlu0 %358
    %v360 = vsel %vm82, %v272, 0.0
    %361 = vadd.xlane.f32.xlu0 %v360
    %v362 = vpop.xlane.xlu0 %361
    %v363 = vsel %vm82, %v273, 0.0
    %364 = vadd.xlane.f32.xlu0 %v363
    %v365 = vpop.xlane.xlu0 %364
    %v366 = vsel %vm82, %v274, 0.0
    %367 = vadd.xlane.f32.xlu0 %v366
    %v368 = vpop.xlane.xlu0 %367
    %v369 = vsel %vm82, %v275, 0.0
    %370 = vadd.xlane.f32.xlu0 %v369
    %v371 = vpop.xlane.xlu0 %370
    %v372 = vmul.f32 %v278, %v179
    %v373 = vmul.f32 %v281, %v179
    %v374 = vmul.f32 %v284, %v179
    %v375 = vmul.f32 %v287, %v179
    %v376 = vmul.f32 %v290, %v179
    %v377 = vmul.f32 %v293, %v179
    %v378 = vmul.f32 %v296, %v179
    %v379 = vmul.f32 %v299, %v179
    %v380 = vmul.f32 %v302, %v179
    %v381 = vmul.f32 %v305, %v179
    %v382 = vmul.f32 %v308, %v179
    %v383 = vmul.f32 %v311, %v179
    %v384 = vmul.f32 %v314, %v179
    %v385 = vmul.f32 %v317, %v179
    %v386 = vmul.f32 %v320, %v179
    %v387 = vmul.f32 %v323, %v179
    %v388 = vmul.f32 %v326, %v179
    %v389 = vmul.f32 %v329, %v179
    %v390 = vmul.f32 %v332, %v179
    %v391 = vmul.f32 %v335, %v179
    %v392 = vmul.f32 %v338, %v179
    %v393 = vmul.f32 %v341, %v179
    %v394 = vmul.f32 %v344, %v179
    %v395 = vmul.f32 %v347, %v179
    %v396 = vmul.f32 %v350, %v179
    %v397 = vmul.f32 %v353, %v179
    %v398 = vmul.f32 %v356, %v179
    %v399 = vmul.f32 %v359, %v179
    %v400 = vmul.f32 %v362, %v179
    %v401 = vmul.f32 %v365, %v179
    %v402 = vmul.f32 %v368, %v179
    %v403 = vmul.f32 %v371, %v179
    %v404 = vadd.f32 %v372, 1e-05
    %v405 = vadd.f32 %v373, 1e-05
    %v406 = vadd.f32 %v374, 1e-05
    %v407 = vadd.f32 %v375, 1e-05
    %v408 = vadd.f32 %v376, 1e-05
    %v409 = vadd.f32 %v377, 1e-05
    %v410 = vadd.f32 %v378, 1e-05
    %v411 = vadd.f32 %v379, 1e-05
    %v412 = vadd.f32 %v380, 1e-05
    %v413 = vadd.f32 %v381, 1e-05
    %v414 = vadd.f32 %v382, 1e-05
    %v415 = vadd.f32 %v383, 1e-05
    %v416 = vadd.f32 %v384, 1e-05
    %v417 = vadd.f32 %v385, 1e-05
    %v418 = vadd.f32 %v386, 1e-05
    %v419 = vadd.f32 %v387, 1e-05
    %v420 = vadd.f32 %v388, 1e-05
    %v421 = vadd.f32 %v389, 1e-05
    %v422 = vadd.f32 %v390, 1e-05
    %v423 = vadd.f32 %v391, 1e-05
    %v424 = vadd.f32 %v392, 1e-05
    %v425 = vadd.f32 %v393, 1e-05
    %v426 = vadd.f32 %v394, 1e-05
    %v427 = vadd.f32 %v395, 1e-05
    %v428 = vadd.f32 %v396, 1e-05
    %v429 = vadd.f32 %v397, 1e-05
    %v430 = vadd.f32 %v398, 1e-05
    %v431 = vadd.f32 %v399, 1e-05
    %v432 = vadd.f32 %v400, 1e-05
    %v433 = vadd.f32 %v401, 1e-05
    %v434 = vadd.f32 %v402, 1e-05
    %v435 = vadd.f32 %v403, 1e-05
    %v436 = vrsqrt.pop %v404
    %v437 = vrsqrt.pop %v405
    %v438 = vrsqrt.pop %v406
    %v439 = vrsqrt.pop %v407
    %v440 = vrsqrt.pop %v408
    %v441 = vrsqrt.pop %v409
    %v442 = vrsqrt.pop %v410
    %v443 = vrsqrt.pop %v411
    %v444 = vrsqrt.pop %v412
    %v445 = vrsqrt.pop %v413
    %v446 = vrsqrt.pop %v414
    %v447 = vrsqrt.pop %v415
    %v448 = vrsqrt.pop %v416
    %v449 = vrsqrt.pop %v417
    %v450 = vrsqrt.pop %v418
    %v451 = vrsqrt.pop %v419
    %v452 = vrsqrt.pop %v420
    %v453 = vrsqrt.pop %v421
    %v454 = vrsqrt.pop %v422
    %v455 = vrsqrt.pop %v423
    %v456 = vrsqrt.pop %v424
    %v457 = vrsqrt.pop %v425
    %v458 = vrsqrt.pop %v426
    %v459 = vrsqrt.pop %v427
    %v460 = vrsqrt.pop %v428
    %v461 = vrsqrt.pop %v429
    %v462 = vrsqrt.pop %v430
    %v463 = vrsqrt.pop %v431
    %v464 = vrsqrt.pop %v432
    %v465 = vrsqrt.pop %v433
    %v466 = vrsqrt.pop %v434
    %v467 = vrsqrt.pop %v435
    %v468 = vmul.f32 %v212, %v436
    %v469 = vmul.f32 %v213, %v437
    %v470 = vmul.f32 %v214, %v438
    %v471 = vmul.f32 %v215, %v439
    %v472 = vmul.f32 %v216, %v440
    %v473 = vmul.f32 %v217, %v441
    %v474 = vmul.f32 %v218, %v442
    %v475 = vmul.f32 %v219, %v443
    %v476 = vmul.f32 %v220, %v444
    %v477 = vmul.f32 %v221, %v445
    %v478 = vmul.f32 %v222, %v446
    %v479 = vmul.f32 %v223, %v447
    %v480 = vmul.f32 %v224, %v448
    %v481 = vmul.f32 %v225, %v449
    %v482 = vmul.f32 %v226, %v450
    %v483 = vmul.f32 %v227, %v451
    %v484 = vmul.f32 %v228, %v452
    %v485 = vmul.f32 %v229, %v453
    %v486 = vmul.f32 %v230, %v454
    %v487 = vmul.f32 %v231, %v455
    %v488 = vmul.f32 %v232, %v456
    %v489 = vmul.f32 %v233, %v457
    %v490 = vmul.f32 %v234, %v458
    %v491 = vmul.f32 %v235, %v459
    %v492 = vmul.f32 %v236, %v460
    %v493 = vmul.f32 %v237, %v461
    %v494 = vmul.f32 %v238, %v462
    %v495 = vmul.f32 %v239, %v463
    %v496 = vmul.f32 %v240, %v464
    %v497 = vmul.f32 %v241, %v465
    %v498 = vmul.f32 %v242, %v466
    %v499 = vmul.f32 %v243, %v467
    %v500 = vld [vmem:[#allocation2] sm:$0x1]
    %v502 = vlaneseq
    %v503 = vshrl.u32 %v502, 7
    %v504 = vsub.s32 0, %v503
    %v505 = vrot.slane %v500, %v504
    %v507 = vmul.f32 %v468, %v505
    %v508 = vmul.f32 %v469, %v505
    %v509 = vmul.f32 %v470, %v505
    %v510 = vmul.f32 %v471, %v505
    %v511 = vmul.f32 %v472, %v505
    %v512 = vmul.f32 %v473, %v505
    %v513 = vmul.f32 %v474, %v505
    %v514 = vmul.f32 %v475, %v505
    %v515 = vmul.f32 %v476, %v505
    %v516 = vmul.f32 %v477, %v505
    %v517 = vmul.f32 %v478, %v505
    %v518 = vmul.f32 %v479, %v505
    %v519 = vmul.f32 %v480, %v505
    %v520 = vmul.f32 %v481, %v505
    %v521 = vmul.f32 %v482, %v505
    %v522 = vmul.f32 %v483, %v505
    %v523 = vmul.f32 %v484, %v505
    %v524 = vmul.f32 %v485, %v505
    %v525 = vmul.f32 %v486, %v505
    %v526 = vmul.f32 %v487, %v505
    %v527 = vmul.f32 %v488, %v505
    %v528 = vmul.f32 %v489, %v505
    %v529 = vmul.f32 %v490, %v505
    %v530 = vmul.f32 %v491, %v505
    %v531 = vmul.f32 %v492, %v505
    %v532 = vmul.f32 %v493, %v505
    %v533 = vmul.f32 %v494, %v505
    %v534 = vmul.f32 %v495, %v505
    %v535 = vmul.f32 %v496, %v505
    %v536 = vmul.f32 %v497, %v505
    %v537 = vmul.f32 %v498, %v505
    %v538 = vmul.f32 %v499, %v505
    %v539 = vld [vmem:[#allocation4] sm:$0x1]
    %v541 = vlaneseq
    %v542 = vshrl.u32 %v541, 7
    %v543 = vsub.s32 0, %v542
    %v544 = vrot.slane %v539, %v543
    %v546 = vadd.f32 %v507, %v544
    %v547 = vadd.f32 %v508, %v544
    %v548 = vadd.f32 %v509, %v544
    %v549 = vadd.f32 %v510, %v544
    %v550 = vadd.f32 %v511, %v544
    %v551 = vadd.f32 %v512, %v544
    %v552 = vadd.f32 %v513, %v544
    %v553 = vadd.f32 %v514, %v544
    %v554 = vadd.f32 %v515, %v544
    %v555 = vadd.f32 %v516, %v544
    %v556 = vadd.f32 %v517, %v544
    %v557 = vadd.f32 %v518, %v544
    %v558 = vadd.f32 %v519, %v544
    %v559 = vadd.f32 %v520, %v544
    %v560 = vadd.f32 %v521, %v544
    %v561 = vadd.f32 %v522, %v544
    %v562 = vadd.f32 %v523, %v544
    %v563 = vadd.f32 %v524, %v544
    %v564 = vadd.f32 %v525, %v544
    %v565 = vadd.f32 %v526, %v544
    %v566 = vadd.f32 %v527, %v544
    %v567 = vadd.f32 %v528, %v544
    %v568 = vadd.f32 %v529, %v544
    %v569 = vadd.f32 %v530, %v544
    %v570 = vadd.f32 %v531, %v544
    %v571 = vadd.f32 %v532, %v544
    %v572 = vadd.f32 %v533, %v544
    %v573 = vadd.f32 %v534, %v544
    %v574 = vadd.f32 %v535, %v544
    %v575 = vadd.f32 %v536, %v544
    %v576 = vadd.f32 %v537, %v544
    %v577 = vadd.f32 %v538, %v544
    %v578 = vld [vmem:[%s4] sm:$0xff]
    %v579 = vld [vmem:[%s4 + $0x8] sm:$0xff]
    %v580 = vld [vmem:[%s4 + $0x10] sm:$0xff]
    %v581 = vld [vmem:[%s4 + $0x18] sm:$0xff]
    %v582 = vld [vmem:[%s4 + $0x20] sm:$0xff]
    %v583 = vld [vmem:[%s4 + $0x28] sm:$0xff]
    %v584 = vld [vmem:[%s4 + $0x30] sm:$0xff]
    %v585 = vld [vmem:[%s4 + $0x38] sm:$0xff]
    %v586 = vld [vmem:[%s5] sm:$0x3]
    %v588 = vlaneseq
    %v589 = vshrl.u32 %v588, 7
    %v590 = vsub.s32 0, %v589
    %v591 = vrot.slane %v586, %v590
    %v592 = vlaneseq
    %v593 = vshrl.u32 %v592, 7
    %v594 = vsub.s32 1, %v593
    %v595 = vrot.slane %v586, %v594
    %v599 = vsel %vm82, %v546, 0
    %v602 = vsel %vm82, %v547, 0
    %v605 = vsel %vm82, %v548, 0
    %v608 = vsel %vm82, %v549, 0
    %v611 = vsel %vm82, %v550, 0
    %v614 = vsel %vm82, %v551, 0
    %v617 = vsel %vm82, %v552, 0
    %v620 = vsel %vm82, %v553, 0
    %v623 = vsel %vm82, %v554, 0
    %v626 = vsel %vm82, %v555, 0
    %v629 = vsel %vm82, %v556, 0
    %v632 = vsel %vm82, %v557, 0
    %v635 = vsel %vm82, %v558, 0
    %v638 = vsel %vm82, %v559, 0
    %v641 = vsel %vm82, %v560, 0
    %v644 = vsel %vm82, %v561, 0
    %v647 = vsel %vm82, %v562, 0
    %v650 = vsel %vm82, %v563, 0
    %v653 = vsel %vm82, %v564, 0
    %v656 = vsel %vm82, %v565, 0
    %v659 = vsel %vm82, %v566, 0
    %v662 = vsel %vm82, %v567, 0
    %v665 = vsel %vm82, %v568, 0
    %v668 = vsel %vm82, %v569, 0
    %v671 = vsel %vm82, %v570, 0
    %v674 = vsel %vm82, %v571, 0
    %v677 = vsel %vm82, %v572, 0
    %v680 = vsel %vm82, %v573, 0
    %v683 = vsel %vm82, %v574, 0
    %v686 = vsel %vm82, %v575, 0
    %v689 = vsel %vm82, %v576, 0
    %v692 = vsel %vm82, %v577, 0
    %694 = vmatprep.subr.mxu0 %v579
    %695 = vmatpush1.msra.mxu0 %v578
    %696 = vmatprep.subr.mxu0 %v581
    %697 = vmatpush1.msra.mxu0 %v580
    %698 = vmatprep.subr.mxu0 %v583
    %699 = vmatpush1.msra.mxu0 %v582
    %700 = vmatprep.subr.mxu0 %v585
    %701 = vmatpush1.msra.mxu0 %v584
    %702 = vmatprep.subr.mxu0 0.0
    %703 = vmatpush1.msra.mxu0 0.0
    %704 = vmatprep.subr.mxu0 0.0
    %705 = vmatpush1.msra.mxu0 0.0
    %706 = vmatprep.subr.mxu0 0.0
    %707 = vmatpush1.msra.mxu0 0.0
    %708 = vmatprep.subr.mxu0 0.0
    %709 = vmatpush1.msra.mxu0 0.0
    %710 = vmatprep.subr.mxu0 0.0
    %711 = vmatpush1.msra.mxu0 0.0
    %712 = vmatprep.subr.mxu0 0.0
    %713 = vmatpush1.msra.mxu0 0.0
    %714 = vmatprep.subr.mxu0 0.0
    %715 = vmatpush1.msra.mxu0 0.0
    %716 = vmatprep.subr.mxu0 0.0
    %717 = vmatpush1.msra.mxu0 0.0
    %718 = vmatprep.subr.mxu0 0.0
    %719 = vmatpush1.msra.mxu0 0.0
    %720 = vmatprep.subr.mxu0 0.0
    %721 = vmatpush1.msra.mxu0 0.0
    %722 = vmatprep.subr.mxu0 0.0
    %723 = vmatpush1.msra.mxu0 0.0
    %724 = vmatprep.subr.mxu0 0.0
    %725 = vmatpush1.msra.mxu0 0.0
    %726 = vmatprep.subr.mxu0 0.0
    %727 = vmatpush1.msra.mxu0 0.0
    %728 = vmatprep.subr.mxu0 0.0
    %729 = vmatpush1.msra.mxu0 0.0
    %730 = vmatprep.subr.mxu0 0.0
    %731 = vmatpush1.msra.mxu0 0.0
    %732 = vmatprep.subr.mxu0 0.0
    %733 = vmatpush1.msra.mxu0 0.0
    %734 = vmatprep.subr.mxu0 0.0
    %735 = vmatpush1.msra.mxu0 0.0
    %736 = vmatprep.subr.mxu0 0.0
    %737 = vmatpush1.msra.mxu0 0.0
    %738 = vmatprep.subr.mxu0 0.0
    %739 = vmatpush1.msra.mxu0 0.0
    %740 = vmatprep.subr.mxu0 0.0
    %741 = vmatpush1.msra.mxu0 0.0
    %742 = vmatprep.subr.mxu0 0.0
    %743 = vmatpush1.msra.mxu0 0.0
    %744 = vmatprep.subr.mxu0 0.0
    %745 = vmatpush1.msra.mxu0 0.0
    %746 = vmatprep.subr.mxu0 0.0
    %747 = vmatpush1.msra.mxu0 0.0
    %748 = vmatprep.subr.mxu0 0.0
    %749 = vmatpush1.msra.mxu0 0.0
    %750 = vmatprep.subr.mxu0 0.0
    %751 = vmatpush1.msra.mxu0 0.0
    %752 = vmatprep.subr.mxu0 0.0
    %753 = vmatpush1.msra.mxu0 0.0
    %754 = vmatprep.subr.mxu0 0.0
    %755 = vmatpush1.msra.mxu0 0.0
    %756 = vmatprep.subr.mxu0 0.0
    %757 = vmatpush1.msra.mxu0 0.0
    %758 = vmatprep.mubr.f32.mxu0 0.0
    %759 = vmatmul.mubr.f32.gmra.mrb[0].mxu0 %v599
    %v760 = vpop.f32.mrb[0].mxu0
    %v761 = vadd.f32 %v591, %v760
    %v762 = vpop.f32.mrb[0].mxu0
    %v763 = vadd.f32 %v595, %v762
    %764 = vmatprep.mubr.f32.mxu0 0.0
    %765 = vmatmul.mubr.f32.gmra.mrb[0].mxu0 %v602
    %v766 = vpop.f32.mrb[0].mxu0
    %v767 = vadd.f32 %v591, %v766
    %v768 = vpop.f32.mrb[0].mxu0
    %v769 = vadd.f32 %v595, %v768
    %770 = vmatprep.mubr.f32.mxu0 0.0
    %771 = vmatmul.mubr.f32.gmra.mrb[0].mxu0 %v605
    %v772 = vpop.f32.mrb[0].mxu0
    %v773 = vadd.f32 %v591, %v772
    %v774 = vpop.f32.mrb[0].mxu0
    %v775 = vadd.f32 %v595, %v774
    %776 = vmatprep.mubr.f32.mxu0 0.0
    %777 = vmatmul.mubr.f32.gmra.mrb[0].mxu0 %v608
    %v778 = vpop.f32.mrb[0].mxu0
    %v779 = vadd.f32 %v591, %v778
    %v780 = vpop.f32.mrb[0].mxu0
    %v781 = vadd.f32 %v595, %v780
    %782 = vmatprep.mubr.f32.mxu0 0.0
    %783 = vmatmul.mubr.f32.gmra.mrb[0].mxu0 %v611
    %v784 = vpop.f32.mrb[0].mxu0
    %v785 = vadd.f32 %v591, %v784
    %v786 = vpop.f32.mrb[0].mxu0
    %v787 = vadd.f32 %v595, %v786
    %788 = vmatprep.mubr.f32.mxu0 0.0
    %789 = vmatmul.mubr.f32.gmra.mrb[0].mxu0 %v614
    %v790 = vpop.f32.mrb[0].mxu0
    %v791 = vadd.f32 %v591, %v790
    %v792 = vpop.f32.mrb[0].mxu0
    %v793 = vadd.f32 %v595, %v792
    %794 = vmatprep.mubr.f32.mxu0 0.0
    %795 = vmatmul.mubr.f32.gmra.mrb[0].mxu0 %v617
    %v796 = vpop.f32.mrb[0].mxu0
    %v797 = vadd.f32 %v591, %v796
    %v798 = vpop.f32.mrb[0].mxu0
    %v799 = vadd.f32 %v595, %v798
    %800 = vmatprep.mubr.f32.mxu0 0.0
    %801 = vmatmul.mubr.f32.gmra.mrb[0].mxu0 %v620
    %v802 = vpop.f32.mrb[0].mxu0
    %v803 = vadd.f32 %v591, %v802
    %v804 = vpop.f32.mrb[0].mxu0
    %v805 = vadd.f32 %v595, %v804
    %806 = vmatprep.mubr.f32.mxu0 0.0
    %807 = vmatmul.mubr.f32.gmra.mrb[0].mxu0 %v623
    %v808 = vpop.f32.mrb[0].mxu0
    %v809 = vadd.f32 %v591, %v808
    %v810 = vpop.f32.mrb[0].mxu0
    %v811 = vadd.f32 %v595, %v810
    %812 = vmatprep.mubr.f32.mxu0 0.0
    %813 = vmatmul.mubr.f32.gmra.mrb[0].mxu0 %v626
    %v814 = vpop.f32.mrb[0].mxu0
    %v815 = vadd.f32 %v591, %v814
    %v816 = vpop.f32.mrb[0].mxu0
    %v817 = vadd.f32 %v595, %v816
    %818 = vmatprep.mubr.f32.mxu0 0.0
    %819 = vmatmul.mubr.f32.gmra.mrb[0].mxu0 %v629
    %v820 = vpop.f32.mrb[0].mxu0
    %v821 = vadd.f32 %v591, %v820
    %v822 = vpop.f32.mrb[0].mxu0
    %v823 = vadd.f32 %v595, %v822
    %824 = vmatprep.mubr.f32.mxu0 0.0
    %825 = vmatmul.mubr.f32.gmra.mrb[0].mxu0 %v632
    %v826 = vpop.f32.mrb[0].mxu0
    %v827 = vadd.f32 %v591, %v826
    %v828 = vpop.f32.mrb[0].mxu0
    %v829 = vadd.f32 %v595, %v828
    %830 = vmatprep.mubr.f32.mxu0 0.0
    %831 = vmatmul.mubr.f32.gmra.mrb[0].mxu0 %v635
    %v832 = vpop.f32.mrb[0].mxu0
    %v833 = vadd.f32 %v591, %v832
    %v834 = vpop.f32.mrb[0].mxu0
    %v835 = vadd.f32 %v595, %v834
    %836 = vmatprep.mubr.f32.mxu0 0.0
    %837 = vmatmul.mubr.f32.gmra.mrb[0].mxu0 %v638
    %v838 = vpop.f32.mrb[0].mxu0
    %v839 = vadd.f32 %v591, %v838
    %v840 = vpop.f32.mrb[0].mxu0
    %v841 = vadd.f32 %v595, %v840
    %842 = vmatprep.mubr.f32.mxu0 0.0
    %843 = vmatmul.mubr.f32.gmra.mrb[0].mxu0 %v641
    %v844 = vpop.f32.mrb[0].mxu0
    %v845 = vadd.f32 %v591, %v844
    %v846 = vpop.f32.mrb[0].mxu0
    %v847 = vadd.f32 %v595, %v846
    %848 = vmatprep.mubr.f32.mxu0 0.0
    %849 = vmatmul.mubr.f32.gmra.mrb[0].mxu0 %v644
    %v850 = vpop.f32.mrb[0].mxu0
    %v851 = vadd.f32 %v591, %v850
    %v852 = vpop.f32.mrb[0].mxu0
    %v853 = vadd.f32 %v595, %v852
    %854 = vmatprep.mubr.f32.mxu0 0.0
    %855 = vmatmul.mubr.f32.gmra.mrb[0].mxu0 %v647
    %v856 = vpop.f32.mrb[0].mxu0
    %v857 = vadd.f32 %v591, %v856
    %v858 = vpop.f32.mrb[0].mxu0
    %v859 = vadd.f32 %v595, %v858
    %860 = vmatprep.mubr.f32.mxu0 0.0
    %861 = vmatmul.mubr.f32.gmra.mrb[0].mxu0 %v650
    %v862 = vpop.f32.mrb[0].mxu0
    %v863 = vadd.f32 %v591, %v862
    %v864 = vpop.f32.mrb[0].mxu0
    %v865 = vadd.f32 %v595, %v864
    %866 = vmatprep.mubr.f32.mxu0 0.0
    %867 = vmatmul.mubr.f32.gmra.mrb[0].mxu0 %v653
    %v868 = vpop.f32.mrb[0].mxu0
    %v869 = vadd.f32 %v591, %v868
    %v870 = vpop.f32.mrb[0].mxu0
    %v871 = vadd.f32 %v595, %v870
    %872 = vmatprep.mubr.f32.mxu0 0.0
    %873 = vmatmul.mubr.f32.gmra.mrb[0].mxu0 %v656
    %v874 = vpop.f32.mrb[0].mxu0
    %v875 = vadd.f32 %v591, %v874
    %v876 = vpop.f32.mrb[0].mxu0
    %v877 = vadd.f32 %v595, %v876
    %878 = vmatprep.mubr.f32.mxu0 0.0
    %879 = vmatmul.mubr.f32.gmra.mrb[0].mxu0 %v659
    %v880 = vpop.f32.mrb[0].mxu0
    %v881 = vadd.f32 %v591, %v880
    %v882 = vpop.f32.mrb[0].mxu0
    %v883 = vadd.f32 %v595, %v882
    %884 = vmatprep.mubr.f32.mxu0 0.0
    %885 = vmatmul.mubr.f32.gmra.mrb[0].mxu0 %v662
    %v886 = vpop.f32.mrb[0].mxu0
    %v887 = vadd.f32 %v591, %v886
    %v888 = vpop.f32.mrb[0].mxu0
    %v889 = vadd.f32 %v595, %v888
    %890 = vmatprep.mubr.f32.mxu0 0.0
    %891 = vmatmul.mubr.f32.gmra.mrb[0].mxu0 %v665
    %v892 = vpop.f32.mrb[0].mxu0
    %v893 = vadd.f32 %v591, %v892
    %v894 = vpop.f32.mrb[0].mxu0
    %v895 = vadd.f32 %v595, %v894
    %896 = vmatprep.mubr.f32.mxu0 0.0
    %897 = vmatmul.mubr.f32.gmra.mrb[0].mxu0 %v668
    %v898 = vpop.f32.mrb[0].mxu0
    %v899 = vadd.f32 %v591, %v898
    %v900 = vpop.f32.mrb[0].mxu0
    %v901 = vadd.f32 %v595, %v900
    %902 = vmatprep.mubr.f32.mxu0 0.0
    %903 = vmatmul.mubr.f32.gmra.mrb[0].mxu0 %v671
    %v904 = vpop.f32.mrb[0].mxu0
    %v905 = vadd.f32 %v591, %v904
    %v906 = vpop.f32.mrb[0].mxu0
    %v907 = vadd.f32 %v595, %v906
    %908 = vmatprep.mubr.f32.mxu0 0.0
    %909 = vmatmul.mubr.f32.gmra.mrb[0].mxu0 %v674
    %v910 = vpop.f32.mrb[0].mxu0
    %v911 = vadd.f32 %v591, %v910
    %v912 = vpop.f32.mrb[0].mxu0
    %v913 = vadd.f32 %v595, %v912
    %914 = vmatprep.mubr.f32.mxu0 0.0
    %915 = vmatmul.mubr.f32.gmra.mrb[0].mxu0 %v677
    %v916 = vpop.f32.mrb[0].mxu0
    %v917 = vadd.f32 %v591, %v916
    %v918 = vpop.f32.mrb[0].mxu0
    %v919 = vadd.f32 %v595, %v918
    %920 = vmatprep.mubr.f32.mxu0 0.0
    %921 = vmatmul.mubr.f32.gmra.mrb[0].mxu0 %v680
    %v922 = vpop.f32.mrb[0].mxu0
    %v923 = vadd.f32 %v591, %v922
    %v924 = vpop.f32.mrb[0].mxu0
    %v925 = vadd.f32 %v595, %v924
    %926 = vmatprep.mubr.f32.mxu0 0.0
    %927 = vmatmul.mubr.f32.gmra.mrb[0].mxu0 %v683
    %v928 = vpop.f32.mrb[0].mxu0
    %v929 = vadd.f32 %v591, %v928
    %v930 = vpop.f32.mrb[0].mxu0
    %v931 = vadd.f32 %v595, %v930
    %932 = vmatprep.mubr.f32.mxu0 0.0
    %933 = vmatmul.mubr.f32.gmra.mrb[0].mxu0 %v686
    %v934 = vpop.f32.mrb[0].mxu0
    %v935 = vadd.f32 %v591, %v934
    %v936 = vpop.f32.mrb[0].mxu0
    %v937 = vadd.f32 %v595, %v936
    %938 = vmatprep.mubr.f32.mxu0 0.0
    %939 = vmatmul.mubr.f32.gmra.mrb[0].mxu0 %v689
    %v940 = vpop.f32.mrb[0].mxu0
    %v941 = vadd.f32 %v591, %v940
    %v942 = vpop.f32.mrb[0].mxu0
    %v943 = vadd.f32 %v595, %v942
    %944 = vmatprep.mubr.f32.mxu0 0.0
    %945 = vmatmul.mubr.f32.gmra.mrb[0].mxu0 %v692
    %v946 = vpop.f32.mrb[0].mxu0
    %v947 = vadd.f32 %v591, %v946
    %v948 = vpop.f32.mrb[0].mxu0
    %v949 = vadd.f32 %v595, %v948
    %950 = vdwg.mxu0
    %v951 = vxor.u32 %v761, 2147483648
    %v952 = vxor.u32 %v767, 2147483648
    %v953 = vxor.u32 %v773, 2147483648
    %v954 = vxor.u32 %v779, 2147483648
    %v955 = vxor.u32 %v785, 2147483648
    %v956 = vxor.u32 %v791, 2147483648
    %v957 = vxor.u32 %v797, 2147483648
    %v958 = vxor.u32 %v803, 2147483648
    %v959 = vxor.u32 %v809, 2147483648
    %v960 = vxor.u32 %v815, 2147483648
    %v961 = vxor.u32 %v821, 2147483648
    %v962 = vxor.u32 %v827, 2147483648
    %v963 = vxor.u32 %v833, 2147483648
    %v964 = vxor.u32 %v839, 2147483648
    %v965 = vxor.u32 %v845, 2147483648
    %v966 = vxor.u32 %v851, 2147483648
    %v967 = vxor.u32 %v857, 2147483648
    %v968 = vxor.u32 %v863, 2147483648
    %v969 = vxor.u32 %v869, 2147483648
    %v970 = vxor.u32 %v875, 2147483648
    %v971 = vxor.u32 %v881, 2147483648
    %v972 = vxor.u32 %v887, 2147483648
    %v973 = vxor.u32 %v893, 2147483648
    %v974 = vxor.u32 %v899, 2147483648
    %v975 = vxor.u32 %v905, 2147483648
    %v976 = vxor.u32 %v911, 2147483648
    %v977 = vxor.u32 %v917, 2147483648
    %v978 = vxor.u32 %v923, 2147483648
    %v979 = vxor.u32 %v929, 2147483648
    %v980 = vxor.u32 %v935, 2147483648
    %v981 = vxor.u32 %v941, 2147483648
    %v982 = vxor.u32 %v947, 2147483648
    %v983 = vmul.f32 %v951, 1.442695
    %v984 = vpow.pop %v983
    %v985 = vmul.f32 %v952, 1.442695
    %v986 = vpow.pop %v985
    %v987 = vmul.f32 %v953, 1.442695
    %v988 = vpow.pop %v987
    %v989 = vmul.f32 %v954, 1.442695
    %v990 = vpow.pop %v989
    %v991 = vmul.f32 %v955, 1.442695
    %v992 = vpow.pop %v991
    %v993 = vmul.f32 %v956, 1.442695
    %v994 = vpow.pop %v993
    %v995 = vmul.f32 %v957, 1.442695
    %v996 = vpow.pop %v995
    %v997 = vmul.f32 %v958, 1.442695
    %v998 = vpow.pop %v997
    %v999 = vmul.f32 %v959, 1.442695
    %v1000 = vpow.pop %v999
    %v1001 = vmul.f32 %v960, 1.442695
    %v1002 = vpow.pop %v1001
    %v1003 = vmul.f32 %v961, 1.442695
    %v1004 = vpow.pop %v1003
    %v1005 = vmul.f32 %v962, 1.442695
    %v1006 = vpow.pop %v1005
    %v1007 = vmul.f32 %v963, 1.442695
    %v1008 = vpow.pop %v1007
    %v1009 = vmul.f32 %v964, 1.442695
    %v1010 = vpow.pop %v1009
    %v1011 = vmul.f32 %v965, 1.442695
    %v1012 = vpow.pop %v1011
    %v1013 = vmul.f32 %v966, 1.442695
    %v1014 = vpow.pop %v1013
    %v1015 = vmul.f32 %v967, 1.442695
    %v1016 = vpow.pop %v1015
    %v1017 = vmul.f32 %v968, 1.442695
    %v1018 = vpow.pop %v1017
    %v1019 = vmul.f32 %v969, 1.442695
    %v1020 = vpow.pop %v1019
    %v1021 = vmul.f32 %v970, 1.442695
    %v1022 = vpow.pop %v1021
    %v1023 = vmul.f32 %v971, 1.442695
    %v1024 = vpow.pop %v1023
    %v1025 = vmul.f32 %v972, 1.442695
    %v1026 = vpow.pop %v1025
    %v1027 = vmul.f32 %v973, 1.442695
    %v1028 = vpow.pop %v1027
    %v1029 = vmul.f32 %v974, 1.442695
    %v1030 = vpow.pop %v1029
    %v1031 = vmul.f32 %v975, 1.442695
    %v1032 = vpow.pop %v1031
    %v1033 = vmul.f32 %v976, 1.442695
    %v1034 = vpow.pop %v1033
    %v1035 = vmul.f32 %v977, 1.442695
    %v1036 = vpow.pop %v1035
    %v1037 = vmul.f32 %v978, 1.442695
    %v1038 = vpow.pop %v1037
    %v1039 = vmul.f32 %v979, 1.442695
    %v1040 = vpow.pop %v1039
    %v1041 = vmul.f32 %v980, 1.442695
    %v1042 = vpow.pop %v1041
    %v1043 = vmul.f32 %v981, 1.442695
    %v1044 = vpow.pop %v1043
    %v1045 = vmul.f32 %v982, 1.442695
    %v1046 = vpow.pop %v1045
    %v1047 = vadd.f32 %v984, 1.0
    %v1048 = vadd.f32 %v986, 1.0
    %v1049 = vadd.f32 %v988, 1.0
    %v1050 = vadd.f32 %v990, 1.0
    %v1051 = vadd.f32 %v992, 1.0
    %v1052 = vadd.f32 %v994, 1.0
    %v1053 = vadd.f32 %v996, 1.0
    %v1054 = vadd.f32 %v998, 1.0
    %v1055 = vadd.f32 %v1000, 1.0
    %v1056 = vadd.f32 %v1002, 1.0
    %v1057 = vadd.f32 %v1004, 1.0
    %v1058 = vadd.f32 %v1006, 1.0
    %v1059 = vadd.f32 %v1008, 1.0
    %v1060 = vadd.f32 %v1010, 1.0
    %v1061 = vadd.f32 %v1012, 1.0
    %v1062 = vadd.f32 %v1014, 1.0
    %v1063 = vadd.f32 %v1016, 1.0
    %v1064 = vadd.f32 %v1018, 1.0
    %v1065 = vadd.f32 %v1020, 1.0
    %v1066 = vadd.f32 %v1022, 1.0
    %v1067 = vadd.f32 %v1024, 1.0
    %v1068 = vadd.f32 %v1026, 1.0
    %v1069 = vadd.f32 %v1028, 1.0
    %v1070 = vadd.f32 %v1030, 1.0
    %v1071 = vadd.f32 %v1032, 1.0
    %v1072 = vadd.f32 %v1034, 1.0
    %v1073 = vadd.f32 %v1036, 1.0
    %v1074 = vadd.f32 %v1038, 1.0
    %v1075 = vadd.f32 %v1040, 1.0
    %v1076 = vadd.f32 %v1042, 1.0
    %v1077 = vadd.f32 %v1044, 1.0
    %v1078 = vadd.f32 %v1046, 1.0
    %v1079 = vrcp.pop %v1047
    %v1080 = vmul.f32 1.0, %v1079
    %v1081 = vrcp.pop %v1048
    %v1082 = vmul.f32 1.0, %v1081
    %v1083 = vrcp.pop %v1049
    %v1084 = vmul.f32 1.0, %v1083
    %v1085 = vrcp.pop %v1050
    %v1086 = vmul.f32 1.0, %v1085
    %v1087 = vrcp.pop %v1051
    %v1088 = vmul.f32 1.0, %v1087
    %v1089 = vrcp.pop %v1052
    %v1090 = vmul.f32 1.0, %v1089
    %v1091 = vrcp.pop %v1053
    %v1092 = vmul.f32 1.0, %v1091
    %v1093 = vrcp.pop %v1054
    %v1094 = vmul.f32 1.0, %v1093
    %v1095 = vrcp.pop %v1055
    %v1096 = vmul.f32 1.0, %v1095
    %v1097 = vrcp.pop %v1056
    %v1098 = vmul.f32 1.0, %v1097
    %v1099 = vrcp.pop %v1057
    %v1100 = vmul.f32 1.0, %v1099
    %v1101 = vrcp.pop %v1058
    %v1102 = vmul.f32 1.0, %v1101
    %v1103 = vrcp.pop %v1059
    %v1104 = vmul.f32 1.0, %v1103
    %v1105 = vrcp.pop %v1060
    %v1106 = vmul.f32 1.0, %v1105
    %v1107 = vrcp.pop %v1061
    %v1108 = vmul.f32 1.0, %v1107
    %v1109 = vrcp.pop %v1062
    %v1110 = vmul.f32 1.0, %v1109
    %v1111 = vrcp.pop %v1063
    %v1112 = vmul.f32 1.0, %v1111
    %v1113 = vrcp.pop %v1064
    %v1114 = vmul.f32 1.0, %v1113
    %v1115 = vrcp.pop %v1065
    %v1116 = vmul.f32 1.0, %v1115
    %v1117 = vrcp.pop %v1066
    %v1118 = vmul.f32 1.0, %v1117
    %v1119 = vrcp.pop %v1067
    %v1120 = vmul.f32 1.0, %v1119
    %v1121 = vrcp.pop %v1068
    %v1122 = vmul.f32 1.0, %v1121
    %v1123 = vrcp.pop %v1069
    %v1124 = vmul.f32 1.0, %v1123
    %v1125 = vrcp.pop %v1070
    %v1126 = vmul.f32 1.0, %v1125
    %v1127 = vrcp.pop %v1071
    %v1128 = vmul.f32 1.0, %v1127
    %v1129 = vrcp.pop %v1072
    %v1130 = vmul.f32 1.0, %v1129
    %v1131 = vrcp.pop %v1073
    %v1132 = vmul.f32 1.0, %v1131
    %v1133 = vrcp.pop %v1074
    %v1134 = vmul.f32 1.0, %v1133
    %v1135 = vrcp.pop %v1075
    %v1136 = vmul.f32 1.0, %v1135
    %v1137 = vrcp.pop %v1076
    %v1138 = vmul.f32 1.0, %v1137
    %v1139 = vrcp.pop %v1077
    %v1140 = vmul.f32 1.0, %v1139
    %v1141 = vrcp.pop %v1078
    %v1142 = vmul.f32 1.0, %v1141
    %1175 = vrot.lane.b32.xlu0 %v761, 96
    %v1176 = vpop.permute.xlu0 %1175
    %1177 = vrot.lane.b32.xlu0 %v767, 96
    %v1178 = vpop.permute.xlu0 %1177
    %1179 = vrot.lane.b32.xlu0 %v773, 96
    %v1180 = vpop.permute.xlu0 %1179
    %1181 = vrot.lane.b32.xlu0 %v779, 96
    %v1182 = vpop.permute.xlu0 %1181
    %1183 = vrot.lane.b32.xlu0 %v785, 96
    %v1184 = vpop.permute.xlu0 %1183
    %1185 = vrot.lane.b32.xlu0 %v791, 96
    %v1186 = vpop.permute.xlu0 %1185
    %1187 = vrot.lane.b32.xlu0 %v797, 96
    %v1188 = vpop.permute.xlu0 %1187
    %1189 = vrot.lane.b32.xlu0 %v803, 96
    %v1190 = vpop.permute.xlu0 %1189
    %1191 = vrot.lane.b32.xlu0 %v809, 96
    %v1192 = vpop.permute.xlu0 %1191
    %1193 = vrot.lane.b32.xlu0 %v815, 96
    %v1194 = vpop.permute.xlu0 %1193
    %1195 = vrot.lane.b32.xlu0 %v821, 96
    %v1196 = vpop.permute.xlu0 %1195
    %1197 = vrot.lane.b32.xlu0 %v827, 96
    %v1198 = vpop.permute.xlu0 %1197
    %1199 = vrot.lane.b32.xlu0 %v833, 96
    %v1200 = vpop.permute.xlu0 %1199
    %1201 = vrot.lane.b32.xlu0 %v839, 96
    %v1202 = vpop.permute.xlu0 %1201
    %1203 = vrot.lane.b32.xlu0 %v845, 96
    %v1204 = vpop.permute.xlu0 %1203
    %1205 = vrot.lane.b32.xlu0 %v851, 96
    %v1206 = vpop.permute.xlu0 %1205
    %1207 = vrot.lane.b32.xlu0 %v857, 96
    %v1208 = vpop.permute.xlu0 %1207
    %1209 = vrot.lane.b32.xlu0 %v863, 96
    %v1210 = vpop.permute.xlu0 %1209
    %1211 = vrot.lane.b32.xlu0 %v869, 96
    %v1212 = vpop.permute.xlu0 %1211
    %1213 = vrot.lane.b32.xlu0 %v875, 96
    %v1214 = vpop.permute.xlu0 %1213
    %1215 = vrot.lane.b32.xlu0 %v881, 96
    %v1216 = vpop.permute.xlu0 %1215
    %1217 = vrot.lane.b32.xlu0 %v887, 96
    %v1218 = vpop.permute.xlu0 %1217
    %1219 = vrot.lane.b32.xlu0 %v893, 96
    %v1220 = vpop.permute.xlu0 %1219
    %1221 = vrot.lane.b32.xlu0 %v899, 96
    %v1222 = vpop.permute.xlu0 %1221
    %1223 = vrot.lane.b32.xlu0 %v905, 96
    %v1224 = vpop.permute.xlu0 %1223
    %1225 = vrot.lane.b32.xlu0 %v911, 96
    %v1226 = vpop.permute.xlu0 %1225
    %1227 = vrot.lane.b32.xlu0 %v917, 96
    %v1228 = vpop.permute.xlu0 %1227
    %1229 = vrot.lane.b32.xlu0 %v923, 96
    %v1230 = vpop.permute.xlu0 %1229
    %1231 = vrot.lane.b32.xlu0 %v929, 96
    %v1232 = vpop.permute.xlu0 %1231
    %1233 = vrot.lane.b32.xlu0 %v935, 96
    %v1234 = vpop.permute.xlu0 %1233
    %1235 = vrot.lane.b32.xlu0 %v941, 96
    %v1236 = vpop.permute.xlu0 %1235
    %1237 = vrot.lane.b32.xlu0 %v947, 96
    %v1238 = vpop.permute.xlu0 %1237
    %v1271 = vmul.f32 %v1080, %v1176
    %v1272 = vmul.f32 %v1082, %v1178
    %v1273 = vmul.f32 %v1084, %v1180
    %v1274 = vmul.f32 %v1086, %v1182
    %v1275 = vmul.f32 %v1088, %v1184
    %v1276 = vmul.f32 %v1090, %v1186
    %v1277 = vmul.f32 %v1092, %v1188
    %v1278 = vmul.f32 %v1094, %v1190
    %v1279 = vmul.f32 %v1096, %v1192
    %v1280 = vmul.f32 %v1098, %v1194
    %v1281 = vmul.f32 %v1100, %v1196
    %v1282 = vmul.f32 %v1102, %v1198
    %v1283 = vmul.f32 %v1104, %v1200
    %v1284 = vmul.f32 %v1106, %v1202
    %v1285 = vmul.f32 %v1108, %v1204
    %v1286 = vmul.f32 %v1110, %v1206
    %v1287 = vmul.f32 %v1112, %v1208
    %v1288 = vmul.f32 %v1114, %v1210
    %v1289 = vmul.f32 %v1116, %v1212
    %v1290 = vmul.f32 %v1118, %v1214
    %v1291 = vmul.f32 %v1120, %v1216
    %v1292 = vmul.f32 %v1122, %v1218
    %v1293 = vmul.f32 %v1124, %v1220
    %v1294 = vmul.f32 %v1126, %v1222
    %v1295 = vmul.f32 %v1128, %v1224
    %v1296 = vmul.f32 %v1130, %v1226
    %v1297 = vmul.f32 %v1132, %v1228
    %v1298 = vmul.f32 %v1134, %v1230
    %v1299 = vmul.f32 %v1136, %v1232
    %v1300 = vmul.f32 %v1138, %v1234
    %v1301 = vmul.f32 %v1140, %v1236
    %v1302 = vmul.f32 %v1142, %v1238
    %v1303 = vxor.u32 %v763, 2147483648
    %v1304 = vxor.u32 %v769, 2147483648
    %v1305 = vxor.u32 %v775, 2147483648
    %v1306 = vxor.u32 %v781, 2147483648
    %v1307 = vxor.u32 %v787, 2147483648
    %v1308 = vxor.u32 %v793, 2147483648
    %v1309 = vxor.u32 %v799, 2147483648
    %v1310 = vxor.u32 %v805, 2147483648
    %v1311 = vxor.u32 %v811, 2147483648
    %v1312 = vxor.u32 %v817, 2147483648
    %v1313 = vxor.u32 %v823, 2147483648
    %v1314 = vxor.u32 %v829, 2147483648
    %v1315 = vxor.u32 %v835, 2147483648
    %v1316 = vxor.u32 %v841, 2147483648
    %v1317 = vxor.u32 %v847, 2147483648
    %v1318 = vxor.u32 %v853, 2147483648
    %v1319 = vxor.u32 %v859, 2147483648
    %v1320 = vxor.u32 %v865, 2147483648
    %v1321 = vxor.u32 %v871, 2147483648
    %v1322 = vxor.u32 %v877, 2147483648
    %v1323 = vxor.u32 %v883, 2147483648
    %v1324 = vxor.u32 %v889, 2147483648
    %v1325 = vxor.u32 %v895, 2147483648
    %v1326 = vxor.u32 %v901, 2147483648
    %v1327 = vxor.u32 %v907, 2147483648
    %v1328 = vxor.u32 %v913, 2147483648
    %v1329 = vxor.u32 %v919, 2147483648
    %v1330 = vxor.u32 %v925, 2147483648
    %v1331 = vxor.u32 %v931, 2147483648
    %v1332 = vxor.u32 %v937, 2147483648
    %v1333 = vxor.u32 %v943, 2147483648
    %v1334 = vxor.u32 %v949, 2147483648
    %v1335 = vmul.f32 %v1303, 1.442695
    %v1336 = vpow.pop %v1335
    %v1337 = vmul.f32 %v1304, 1.442695
    %v1338 = vpow.pop %v1337
    %v1339 = vmul.f32 %v1305, 1.442695
    %v1340 = vpow.pop %v1339
    %v1341 = vmul.f32 %v1306, 1.442695
    %v1342 = vpow.pop %v1341
    %v1343 = vmul.f32 %v1307, 1.442695
    %v1344 = vpow.pop %v1343
    %v1345 = vmul.f32 %v1308, 1.442695
    %v1346 = vpow.pop %v1345
    %v1347 = vmul.f32 %v1309, 1.442695
    %v1348 = vpow.pop %v1347
    %v1349 = vmul.f32 %v1310, 1.442695
    %v1350 = vpow.pop %v1349
    %v1351 = vmul.f32 %v1311, 1.442695
    %v1352 = vpow.pop %v1351
    %v1353 = vmul.f32 %v1312, 1.442695
    %v1354 = vpow.pop %v1353
    %v1355 = vmul.f32 %v1313, 1.442695
    %v1356 = vpow.pop %v1355
    %v1357 = vmul.f32 %v1314, 1.442695
    %v1358 = vpow.pop %v1357
    %v1359 = vmul.f32 %v1315, 1.442695
    %v1360 = vpow.pop %v1359
    %v1361 = vmul.f32 %v1316, 1.442695
    %v1362 = vpow.pop %v1361
    %v1363 = vmul.f32 %v1317, 1.442695
    %v1364 = vpow.pop %v1363
    %v1365 = vmul.f32 %v1318, 1.442695
    %v1366 = vpow.pop %v1365
    %v1367 = vmul.f32 %v1319, 1.442695
    %v1368 = vpow.pop %v1367
    %v1369 = vmul.f32 %v1320, 1.442695
    %v1370 = vpow.pop %v1369
    %v1371 = vmul.f32 %v1321, 1.442695
    %v1372 = vpow.pop %v1371
    %v1373 = vmul.f32 %v1322, 1.442695
    %v1374 = vpow.pop %v1373
    %v1375 = vmul.f32 %v1323, 1.442695
    %v1376 = vpow.pop %v1375
    %v1377 = vmul.f32 %v1324, 1.442695
    %v1378 = vpow.pop %v1377
    %v1379 = vmul.f32 %v1325, 1.442695
    %v1380 = vpow.pop %v1379
    %v1381 = vmul.f32 %v1326, 1.442695
    %v1382 = vpow.pop %v1381
    %v1383 = vmul.f32 %v1327, 1.442695
    %v1384 = vpow.pop %v1383
    %v1385 = vmul.f32 %v1328, 1.442695
    %v1386 = vpow.pop %v1385
    %v1387 = vmul.f32 %v1329, 1.442695
    %v1388 = vpow.pop %v1387
    %v1389 = vmul.f32 %v1330, 1.442695
    %v1390 = vpow.pop %v1389
    %v1391 = vmul.f32 %v1331, 1.442695
    %v1392 = vpow.pop %v1391
    %v1393 = vmul.f32 %v1332, 1.442695
    %v1394 = vpow.pop %v1393
    %v1395 = vmul.f32 %v1333, 1.442695
    %v1396 = vpow.pop %v1395
    %v1397 = vmul.f32 %v1334, 1.442695
    %v1398 = vpow.pop %v1397
    %v1399 = vadd.f32 %v1336, 1.0
    %v1400 = vadd.f32 %v1338, 1.0
    %v1401 = vadd.f32 %v1340, 1.0
    %v1402 = vadd.f32 %v1342, 1.0
    %v1403 = vadd.f32 %v1344, 1.0
    %v1404 = vadd.f32 %v1346, 1.0
    %v1405 = vadd.f32 %v1348, 1.0
    %v1406 = vadd.f32 %v1350, 1.0
    %v1407 = vadd.f32 %v1352, 1.0
    %v1408 = vadd.f32 %v1354, 1.0
    %v1409 = vadd.f32 %v1356, 1.0
    %v1410 = vadd.f32 %v1358, 1.0
    %v1411 = vadd.f32 %v1360, 1.0
    %v1412 = vadd.f32 %v1362, 1.0
    %v1413 = vadd.f32 %v1364, 1.0
    %v1414 = vadd.f32 %v1366, 1.0
    %v1415 = vadd.f32 %v1368, 1.0
    %v1416 = vadd.f32 %v1370, 1.0
    %v1417 = vadd.f32 %v1372, 1.0
    %v1418 = vadd.f32 %v1374, 1.0
    %v1419 = vadd.f32 %v1376, 1.0
    %v1420 = vadd.f32 %v1378, 1.0
    %v1421 = vadd.f32 %v1380, 1.0
    %v1422 = vadd.f32 %v1382, 1.0
    %v1423 = vadd.f32 %v1384, 1.0
    %v1424 = vadd.f32 %v1386, 1.0
    %v1425 = vadd.f32 %v1388, 1.0
    %v1426 = vadd.f32 %v1390, 1.0
    %v1427 = vadd.f32 %v1392, 1.0
    %v1428 = vadd.f32 %v1394, 1.0
    %v1429 = vadd.f32 %v1396, 1.0
    %v1430 = vadd.f32 %v1398, 1.0
    %v1431 = vrcp.pop %v1399
    %v1432 = vmul.f32 1.0, %v1431
    %v1433 = vrcp.pop %v1400
    %v1434 = vmul.f32 1.0, %v1433
    %v1435 = vrcp.pop %v1401
    %v1436 = vmul.f32 1.0, %v1435
    %v1437 = vrcp.pop %v1402
    %v1438 = vmul.f32 1.0, %v1437
    %v1439 = vrcp.pop %v1403
    %v1440 = vmul.f32 1.0, %v1439
    %v1441 = vrcp.pop %v1404
    %v1442 = vmul.f32 1.0, %v1441
    %v1443 = vrcp.pop %v1405
    %v1444 = vmul.f32 1.0, %v1443
    %v1445 = vrcp.pop %v1406
    %v1446 = vmul.f32 1.0, %v1445
    %v1447 = vrcp.pop %v1407
    %v1448 = vmul.f32 1.0, %v1447
    %v1449 = vrcp.pop %v1408
    %v1450 = vmul.f32 1.0, %v1449
    %v1451 = vrcp.pop %v1409
    %v1452 = vmul.f32 1.0, %v1451
    %v1453 = vrcp.pop %v1410
    %v1454 = vmul.f32 1.0, %v1453
    %v1455 = vrcp.pop %v1411
    %v1456 = vmul.f32 1.0, %v1455
    %v1457 = vrcp.pop %v1412
    %v1458 = vmul.f32 1.0, %v1457
    %v1459 = vrcp.pop %v1413
    %v1460 = vmul.f32 1.0, %v1459
    %v1461 = vrcp.pop %v1414
    %v1462 = vmul.f32 1.0, %v1461
    %v1463 = vrcp.pop %v1415
    %v1464 = vmul.f32 1.0, %v1463
    %v1465 = vrcp.pop %v1416
    %v1466 = vmul.f32 1.0, %v1465
    %v1467 = vrcp.pop %v1417
    %v1468 = vmul.f32 1.0, %v1467
    %v1469 = vrcp.pop %v1418
    %v1470 = vmul.f32 1.0, %v1469
    %v1471 = vrcp.pop %v1419
    %v1472 = vmul.f32 1.0, %v1471
    %v1473 = vrcp.pop %v1420
    %v1474 = vmul.f32 1.0, %v1473
    %v1475 = vrcp.pop %v1421
    %v1476 = vmul.f32 1.0, %v1475
    %v1477 = vrcp.pop %v1422
    %v1478 = vmul.f32 1.0, %v1477
    %v1479 = vrcp.pop %v1423
    %v1480 = vmul.f32 1.0, %v1479
    %v1481 = vrcp.pop %v1424
    %v1482 = vmul.f32 1.0, %v1481
    %v1483 = vrcp.pop %v1425
    %v1484 = vmul.f32 1.0, %v1483
    %v1485 = vrcp.pop %v1426
    %v1486 = vmul.f32 1.0, %v1485
    %v1487 = vrcp.pop %v1427
    %v1488 = vmul.f32 1.0, %v1487
    %v1489 = vrcp.pop %v1428
    %v1490 = vmul.f32 1.0, %v1489
    %v1491 = vrcp.pop %v1429
    %v1492 = vmul.f32 1.0, %v1491
    %v1493 = vrcp.pop %v1430
    %v1494 = vmul.f32 1.0, %v1493
    %v1495 = vld [vmem:[%s1] sm:$0x3]
    %1496 = vxpose.xlu0.b32.start [1/16] %v1271, 128
    %1497 = vxpose.xlu0.b32.cont [2/16] %v1272, 128
    %1498 = vxpose.xlu0.b32.cont [3/16] %v1273, 128
    %1499 = vxpose.xlu0.b32.cont [4/16] %v1274, 128
    %1500 = vxpose.xlu0.b32.cont [5/16] %v1275, 128
    %1501 = vxpose.xlu0.b32.cont [6/16] %v1276, 128
    %1502 = vxpose.xlu0.b32.cont [7/16] %v1277, 128
    %1503 = vxpose.xlu0.b32.cont [8/16] %v1278, 128
    %1504 = vxpose.xlu0.b32.cont [9/16] %v1279, 128
    %1505 = vxpose.xlu0.b32.cont [10/16] %v1280, 128
    %1506 = vxpose.xlu0.b32.cont [11/16] %v1281, 128
    %1507 = vxpose.xlu0.b32.cont [12/16] %v1282, 128
    %1508 = vxpose.xlu0.b32.cont [13/16] %v1283, 128
    %1509 = vxpose.xlu0.b32.cont [14/16] %v1284, 128
    %1510 = vxpose.xlu0.b32.cont [15/16] %v1285, 128
    %1511 = vxpose.xlu0.b32.end [16/16] %v1286, 128
    %v1512 = vpop.trf.xlu0
    %v1513 = vpop.trf.xlu0
    %v1514 = vpop.trf.xlu0
    %v1515 = vpop.trf.xlu0
    %v1516 = vpop.trf.xlu0
    %v1517 = vpop.trf.xlu0
    %v1518 = vpop.trf.xlu0
    %v1519 = vpop.trf.xlu0
    %v1520 = vpop.trf.xlu0
    %v1521 = vpop.trf.xlu0
    %v1522 = vpop.trf.xlu0
    %v1523 = vpop.trf.xlu0
    %v1524 = vpop.trf.xlu0
    %v1525 = vpop.trf.xlu0
    %v1526 = vpop.trf.xlu0
    %v1527 = vpop.trf.xlu0
    %1528 = vxpose.xlu0.b32.start [1/16] %v1287, 128
    %1529 = vxpose.xlu0.b32.cont [2/16] %v1288, 128
    %1530 = vxpose.xlu0.b32.cont [3/16] %v1289, 128
    %1531 = vxpose.xlu0.b32.cont [4/16] %v1290, 128
    %1532 = vxpose.xlu0.b32.cont [5/16] %v1291, 128
    %1533 = vxpose.xlu0.b32.cont [6/16] %v1292, 128
    %1534 = vxpose.xlu0.b32.cont [7/16] %v1293, 128
    %1535 = vxpose.xlu0.b32.cont [8/16] %v1294, 128
    %1536 = vxpose.xlu0.b32.cont [9/16] %v1295, 128
    %1537 = vxpose.xlu0.b32.cont [10/16] %v1296, 128
    %1538 = vxpose.xlu0.b32.cont [11/16] %v1297, 128
    %1539 = vxpose.xlu0.b32.cont [12/16] %v1298, 128
    %1540 = vxpose.xlu0.b32.cont [13/16] %v1299, 128
    %1541 = vxpose.xlu0.b32.cont [14/16] %v1300, 128
    %1542 = vxpose.xlu0.b32.cont [15/16] %v1301, 128
    %1543 = vxpose.xlu0.b32.end [16/16] %v1302, 128
    %v1544 = vpop.trf.xlu0
    %v1545 = vpop.trf.xlu0
    %v1546 = vpop.trf.xlu0
    %v1547 = vpop.trf.xlu0
    %v1548 = vpop.trf.xlu0
    %v1549 = vpop.trf.xlu0
    %v1550 = vpop.trf.xlu0
    %v1551 = vpop.trf.xlu0
    %v1552 = vpop.trf.xlu0
    %v1553 = vpop.trf.xlu0
    %v1554 = vpop.trf.xlu0
    %v1555 = vpop.trf.xlu0
    %v1556 = vpop.trf.xlu0
    %v1557 = vpop.trf.xlu0
    %v1558 = vpop.trf.xlu0
    %v1559 = vpop.trf.xlu0
    %v1561 = vlaneseq
    %v1562 = vshrl.u32 %v1561, 7
    %v1563 = vsub.s32 0, %v1562
    %v1564 = vrot.slane %v1495, %v1563
    %v1565 = vlaneseq
    %v1566 = vshrl.u32 %v1565, 7
    %v1567 = vsub.s32 1, %v1566
    %v1568 = vrot.slane %v1495, %v1567
    %v1571 = vmul.f32 %v1512, %v1564
    %v1572 = vmul.f32 %v1544, %v1568
    %v1573 = vmul.f32 %v1513, %v1564
    %v1574 = vmul.f32 %v1545, %v1568
    %v1575 = vmul.f32 %v1514, %v1564
    %v1576 = vmul.f32 %v1546, %v1568
    %v1577 = vmul.f32 %v1515, %v1564
    %v1578 = vmul.f32 %v1547, %v1568
    %v1579 = vpack.c.bf16 %v1573, %v1571
    %v1580 = vpack.c.bf16 %v1574, %v1572
    %v1581 = vpack.c.bf16 %v1577, %v1575
    %v1582 = vpack.c.bf16 %v1578, %v1576
    %v1587 = vunpack.c.l.b16 %v1579
    %v1588 = vunpack.c.l.b16 %v1580
    %v1589 = vunpack.c.h.b16 %v1579
    %v1590 = vunpack.c.h.b16 %v1580
    %v1591 = vunpack.c.l.b16 %v1581
    %v1592 = vunpack.c.l.b16 %v1582
    %v1593 = vunpack.c.h.b16 %v1581
    %v1594 = vunpack.c.h.b16 %v1582
    %v1595 = vpack.c.b16 %v1588, %v1587
    %v1596 = vpack.c.b16 %v1590, %v1589
    %v1597 = vpack.c.b16 %v1592, %v1591
    %v1598 = vpack.c.b16 %v1594, %v1593
    %1603 = vst [vmem:[%s6] sm:$0xff] %v1595
    %1604 = vst [vmem:[%s6 + $0x8] sm:$0xff] %v1596
    %1605 = vst [vmem:[%s6 + $0x10] sm:$0xff] %v1597
    %1606 = vst [vmem:[%s6 + $0x18] sm:$0xff] %v1598
    %1639 = vrot.lane.b32.xlu0 %v1271, 64
    %v1640 = vpop.permute.xlu0 %1639
    %1641 = vrot.lane.b32.xlu0 %v1272, 64
    %v1642 = vpop.permute.xlu0 %1641
    %1643 = vrot.lane.b32.xlu0 %v1273, 64
    %v1644 = vpop.permute.xlu0 %1643
    %1645 = vrot.lane.b32.xlu0 %v1274, 64
    %v1646 = vpop.permute.xlu0 %1645
    %1647 = vrot.lane.b32.xlu0 %v1275, 64
    %v1648 = vpop.permute.xlu0 %1647
    %1649 = vrot.lane.b32.xlu0 %v1276, 64
    %v1650 = vpop.permute.xlu0 %1649
    %1651 = vrot.lane.b32.xlu0 %v1277, 64
    %v1652 = vpop.permute.xlu0 %1651
    %1653 = vrot.lane.b32.xlu0 %v1278, 64
    %v1654 = vpop.permute.xlu0 %1653
    %1655 = vrot.lane.b32.xlu0 %v1279, 64
    %v1656 = vpop.permute.xlu0 %1655
    %1657 = vrot.lane.b32.xlu0 %v1280, 64
    %v1658 = vpop.permute.xlu0 %1657
    %1659 = vrot.lane.b32.xlu0 %v1281, 64
    %v1660 = vpop.permute.xlu0 %1659
    %1661 = vrot.lane.b32.xlu0 %v1282, 64
    %v1662 = vpop.permute.xlu0 %1661
    %1663 = vrot.lane.b32.xlu0 %v1283, 64
    %v1664 = vpop.permute.xlu0 %1663
    %1665 = vrot.lane.b32.xlu0 %v1284, 64
    %v1666 = vpop.permute.xlu0 %1665
    %1667 = vrot.lane.b32.xlu0 %v1285, 64
    %v1668 = vpop.permute.xlu0 %1667
    %1669 = vrot.lane.b32.xlu0 %v1286, 64
    %v1670 = vpop.permute.xlu0 %1669
    %1671 = vrot.lane.b32.xlu0 %v1287, 64
    %v1672 = vpop.permute.xlu0 %1671
    %1673 = vrot.lane.b32.xlu0 %v1288, 64
    %v1674 = vpop.permute.xlu0 %1673
    %1675 = vrot.lane.b32.xlu0 %v1289, 64
    %v1676 = vpop.permute.xlu0 %1675
    %1677 = vrot.lane.b32.xlu0 %v1290, 64
    %v1678 = vpop.permute.xlu0 %1677
    %1679 = vrot.lane.b32.xlu0 %v1291, 64
    %v1680 = vpop.permute.xlu0 %1679
    %1681 = vrot.lane.b32.xlu0 %v1292, 64
    %v1682 = vpop.permute.xlu0 %1681
    %1683 = vrot.lane.b32.xlu0 %v1293, 64
    %v1684 = vpop.permute.xlu0 %1683
    %1685 = vrot.lane.b32.xlu0 %v1294, 64
    %v1686 = vpop.permute.xlu0 %1685
    %1687 = vrot.lane.b32.xlu0 %v1295, 64
    %v1688 = vpop.permute.xlu0 %1687
    %1689 = vrot.lane.b32.xlu0 %v1296, 64
    %v1690 = vpop.permute.xlu0 %1689
    %1691 = vrot.lane.b32.xlu0 %v1297, 64
    %v1692 = vpop.permute.xlu0 %1691
    %1693 = vrot.lane.b32.xlu0 %v1298, 64
    %v1694 = vpop.permute.xlu0 %1693
    %1695 = vrot.lane.b32.xlu0 %v1299, 64
    %v1696 = vpop.permute.xlu0 %1695
    %1697 = vrot.lane.b32.xlu0 %v1300, 64
    %v1698 = vpop.permute.xlu0 %1697
    %1699 = vrot.lane.b32.xlu0 %v1301, 64
    %v1700 = vpop.permute.xlu0 %1699
    %1701 = vrot.lane.b32.xlu0 %v1302, 64
    %v1702 = vpop.permute.xlu0 %1701
    %1735 = vxpose.xlu0.b32.start [1/16] %v1640, 128
    %1736 = vxpose.xlu0.b32.cont [2/16] %v1642, 128
    %1737 = vxpose.xlu0.b32.cont [3/16] %v1644, 128
    %1738 = vxpose.xlu0.b32.cont [4/16] %v1646, 128
    %1739 = vxpose.xlu0.b32.cont [5/16] %v1648, 128
    %1740 = vxpose.xlu0.b32.cont [6/16] %v1650, 128
    %1741 = vxpose.xlu0.b32.cont [7/16] %v1652, 128
    %1742 = vxpose.xlu0.b32.cont [8/16] %v1654, 128
    %1743 = vxpose.xlu0.b32.cont [9/16] %v1656, 128
    %1744 = vxpose.xlu0.b32.cont [10/16] %v1658, 128
    %1745 = vxpose.xlu0.b32.cont [11/16] %v1660, 128
    %1746 = vxpose.xlu0.b32.cont [12/16] %v1662, 128
    %1747 = vxpose.xlu0.b32.cont [13/16] %v1664, 128
    %1748 = vxpose.xlu0.b32.cont [14/16] %v1666, 128
    %1749 = vxpose.xlu0.b32.cont [15/16] %v1668, 128
    %1750 = vxpose.xlu0.b32.end [16/16] %v1670, 128
    %v1751 = vpop.trf.xlu0
    %v1752 = vpop.trf.xlu0
    %v1753 = vpop.trf.xlu0
    %v1754 = vpop.trf.xlu0
    %v1755 = vpop.trf.xlu0
    %v1756 = vpop.trf.xlu0
    %v1757 = vpop.trf.xlu0
    %v1758 = vpop.trf.xlu0
    %v1759 = vpop.trf.xlu0
    %v1760 = vpop.trf.xlu0
    %v1761 = vpop.trf.xlu0
    %v1762 = vpop.trf.xlu0
    %v1763 = vpop.trf.xlu0
    %v1764 = vpop.trf.xlu0
    %v1765 = vpop.trf.xlu0
    %v1766 = vpop.trf.xlu0
    %1767 = vxpose.xlu0.b32.start [1/16] %v1672, 128
    %1768 = vxpose.xlu0.b32.cont [2/16] %v1674, 128
    %1769 = vxpose.xlu0.b32.cont [3/16] %v1676, 128
    %1770 = vxpose.xlu0.b32.cont [4/16] %v1678, 128
    %1771 = vxpose.xlu0.b32.cont [5/16] %v1680, 128
    %1772 = vxpose.xlu0.b32.cont [6/16] %v1682, 128
    %1773 = vxpose.xlu0.b32.cont [7/16] %v1684, 128
    %1774 = vxpose.xlu0.b32.cont [8/16] %v1686, 128
    %1775 = vxpose.xlu0.b32.cont [9/16] %v1688, 128
    %1776 = vxpose.xlu0.b32.cont [10/16] %v1690, 128
    %1777 = vxpose.xlu0.b32.cont [11/16] %v1692, 128
    %1778 = vxpose.xlu0.b32.cont [12/16] %v1694, 128
    %1779 = vxpose.xlu0.b32.cont [13/16] %v1696, 128
    %1780 = vxpose.xlu0.b32.cont [14/16] %v1698, 128
    %1781 = vxpose.xlu0.b32.cont [15/16] %v1700, 128
    %1782 = vxpose.xlu0.b32.end [16/16] %v1702, 128
    %v1783 = vpop.trf.xlu0
    %v1784 = vpop.trf.xlu0
    %v1785 = vpop.trf.xlu0
    %v1786 = vpop.trf.xlu0
    %v1787 = vpop.trf.xlu0
    %v1788 = vpop.trf.xlu0
    %v1789 = vpop.trf.xlu0
    %v1790 = vpop.trf.xlu0
    %v1791 = vpop.trf.xlu0
    %v1792 = vpop.trf.xlu0
    %v1793 = vpop.trf.xlu0
    %v1794 = vpop.trf.xlu0
    %v1795 = vpop.trf.xlu0
    %v1796 = vpop.trf.xlu0
    %v1797 = vpop.trf.xlu0
    %v1798 = vpop.trf.xlu0
    %v1799 = vmul.f32 %v1751, %v1564
    %v1800 = vmul.f32 %v1783, %v1568
    %v1801 = vmul.f32 %v1752, %v1564
    %v1802 = vmul.f32 %v1784, %v1568
    %v1803 = vmul.f32 %v1753, %v1564
    %v1804 = vmul.f32 %v1785, %v1568
    %v1805 = vmul.f32 %v1754, %v1564
    %v1806 = vmul.f32 %v1786, %v1568
    %v1807 = vpack.c.bf16 %v1801, %v1799
    %v1808 = vpack.c.bf16 %v1802, %v1800
    %v1809 = vpack.c.bf16 %v1805, %v1803
    %v1810 = vpack.c.bf16 %v1806, %v1804
    %v1815 = vunpack.c.l.b16 %v1807
    %v1816 = vunpack.c.l.b16 %v1808
    %v1817 = vunpack.c.h.b16 %v1807
    %v1818 = vunpack.c.h.b16 %v1808
    %v1819 = vunpack.c.l.b16 %v1809
    %v1820 = vunpack.c.l.b16 %v1810
    %v1821 = vunpack.c.h.b16 %v1809
    %v1822 = vunpack.c.h.b16 %v1810
    %v1823 = vpack.c.b16 %v1816, %v1815
    %v1824 = vpack.c.b16 %v1818, %v1817
    %v1825 = vpack.c.b16 %v1820, %v1819
    %v1826 = vpack.c.b16 %v1822, %v1821
    %1831 = vst [vmem:[%s7] sm:$0xff] %v1823
    %1832 = vst [vmem:[%s7 + $0x8] sm:$0xff] %v1824
    %1833 = vst [vmem:[%s7 + $0x10] sm:$0xff] %v1825
    %1834 = vst [vmem:[%s7 + $0x18] sm:$0xff] %v1826
    %1835 = vst.msk [vmem:[%s8] sm:$0xff] %vm82, %v1432
    %1836 = vst.msk [vmem:[%s8 + $0x8] sm:$0xff] %vm82, %v1434
    %1837 = vst.msk [vmem:[%s8 + $0x10] sm:$0xff] %vm82, %v1436
    %1838 = vst.msk [vmem:[%s8 + $0x18] sm:$0xff] %vm82, %v1438
    %1839 = vst.msk [vmem:[%s8 + $0x20] sm:$0xff] %vm82, %v1440
    %1840 = vst.msk [vmem:[%s8 + $0x28] sm:$0xff] %vm82, %v1442
    %1841 = vst.msk [vmem:[%s8 + $0x30] sm:$0xff] %vm82, %v1444
    %1842 = vst.msk [vmem:[%s8 + $0x38] sm:$0xff] %vm82, %v1446
    %1843 = vst.msk [vmem:[%s8 + $0x40] sm:$0xff] %vm82, %v1448
    %1844 = vst.msk [vmem:[%s8 + $0x48] sm:$0xff] %vm82, %v1450
    %1845 = vst.msk [vmem:[%s8 + $0x50] sm:$0xff] %vm82, %v1452
    %1846 = vst.msk [vmem:[%s8 + $0x58] sm:$0xff] %vm82, %v1454
    %1847 = vst.msk [vmem:[%s8 + $0x60] sm:$0xff] %vm82, %v1456
    %1848 = vst.msk [vmem:[%s8 + $0x68] sm:$0xff] %vm82, %v1458
    %1849 = vst.msk [vmem:[%s8 + $0x70] sm:$0xff] %vm82, %v1460
    %1850 = vst.msk [vmem:[%s8 + $0x78] sm:$0xff] %vm82, %v1462
    %1851 = vst.msk [vmem:[%s8 + $0x80] sm:$0xff] %vm82, %v1464
    %1852 = vst.msk [vmem:[%s8 + $0x88] sm:$0xff] %vm82, %v1466
    %1853 = vst.msk [vmem:[%s8 + $0x90] sm:$0xff] %vm82, %v1468
    %1854 = vst.msk [vmem:[%s8 + $0x98] sm:$0xff] %vm82, %v1470
    %1855 = vst.msk [vmem:[%s8 + $0xa0] sm:$0xff] %vm82, %v1472
    %1856 = vst.msk [vmem:[%s8 + $0xa8] sm:$0xff] %vm82, %v1474
    %1857 = vst.msk [vmem:[%s8 + $0xb0] sm:$0xff] %vm82, %v1476
    %1858 = vst.msk [vmem:[%s8 + $0xb8] sm:$0xff] %vm82, %v1478
    %1859 = vst.msk [vmem:[%s8 + $0xc0] sm:$0xff] %vm82, %v1480
    %1860 = vst.msk [vmem:[%s8 + $0xc8] sm:$0xff] %vm82, %v1482
    %1861 = vst.msk [vmem:[%s8 + $0xd0] sm:$0xff] %vm82, %v1484
    %1862 = vst.msk [vmem:[%s8 + $0xd8] sm:$0xff] %vm82, %v1486
    %1863 = vst.msk [vmem:[%s8 + $0xe0] sm:$0xff] %vm82, %v1488
    %1864 = vst.msk [vmem:[%s8 + $0xe8] sm:$0xff] %vm82, %v1490
    %1865 = vst.msk [vmem:[%s8 + $0xf0] sm:$0xff] %vm82, %v1492
    %1866 = vst.msk [vmem:[%s8 + $0xf8] sm:$0xff] %vm82, %v1494
    // Predicated region
    $region34: #{triangle_multiplicative_update.3} parent=1 // pred_check
      _
    $region35: #{triangle_multiplicative_update.3} parent=1 // pred_check_branch
      %1868 = sbr.rel (0) target = $region37
    $region36: #{triangle_multiplicative_update.3} parent=1 // pred_region
      _
    $region37: #{triangle_multiplicative_update.3} parent=1 // pred_fallthru
      _
    // Predicated region
    $region38: #{triangle_multiplicative_update.3} parent=1 // pred_check
      _
    $region39: #{triangle_multiplicative_update.3} parent=1 // pred_check_branch
      %1870 = sbr.rel (0) target = $region41
    $region40: #{triangle_multiplicative_update.3} parent=1 // pred_region
      _
    $region41: #{triangle_multiplicative_update.3} parent=1 // pred_fallthru
      _
    // Predicated region
    $region42: #{triangle_multiplicative_update.3} parent=1 // pred_check
      _
    $region43: #{triangle_multiplicative_update.3} parent=1 // pred_check_branch
      %1872 = sbr.rel (0) target = $region45
    $region44: #{triangle_multiplicative_update.3} parent=1 // pred_region
      _
    $region45: #{triangle_multiplicative_update.3} parent=1 // pred_fallthru
      _
    // Predicated region
    $region46: #{triangle_multiplicative_update.3} parent=1 // pred_check
      _
    $region47: #{triangle_multiplicative_update.3} parent=1 // pred_check_branch
      %1874 = sbr.rel (0) target = $region49
    $region48: #{triangle_multiplicative_update.3} parent=1 // pred_region
      _
    $region49: #{triangle_multiplicative_update.3} parent=1 // pred_fallthru
      _
    // Predicated region
    $region50: #{triangle_multiplicative_update.3} parent=1 // pred_check
      _
    $region51: #{triangle_multiplicative_update.3} parent=1 // pred_check_branch
      %1876 = sbr.rel (0) target = $region53
    $region52: #{triangle_multiplicative_update.3} parent=1 // pred_region
      _
    $region53: #{triangle_multiplicative_update.3} parent=1 // pred_fallthru
      _
    // Predicated region
    $region54: #{triangle_multiplicative_update.3} parent=1 // pred_check
      _
    $region55: #{triangle_multiplicative_update.3} parent=1 // pred_check_branch
      %1878 = sbr.rel (0) target = $region57
    $region56: #{triangle_multiplicative_update.3} parent=1 // pred_region
      _
    $region57: #{triangle_multiplicative_update.3} parent=1 // pred_fallthru
      _
    %1879 = vsyncpa [#allocation3], 1
    %1880 = vsyncpa [#allocation5], 1

// kernel: triangle_multiplicative_update.5
$region0: #{triangle_multiplicative_update.5}
  #allocation0 [shape = 'u32[]', space=smem, size = 0x4, offset = 0x4, fixed_abs, tag = 'smem constant byte address 0x4 - core index']
  #allocation1 [shape = 'u32[144,128]{1,0:T(1,128)}', space=vmem, size = 0x12000, scoped, tag = 'internal scratch']
  %s0 = inlined_call_operand.vmem [shape: bf16[32,256], index: 0, kind: input, shape index: {}]
  %s1 = inlined_call_operand.vmem [shape: f32[256,32], index: 1, kind: input, shape index: {}]
  %s2 = inlined_call_operand.vmem [shape: f32[1,32], index: 2, kind: input, shape index: {}]
  %s3 = inlined_call_operand.vmem [shape: f32[1,32], index: 3, kind: input, shape index: {}]
  %s4 = inlined_call_operand.vmem [shape: f32[32,32], index: 4, kind: input, shape index: {}]
  %s5 = inlined_call_operand.vmem [shape: f32[1,32], index: 5, kind: input, shape index: {}]
  %s6 = inlined_call_operand.hbm [shape: f32[256,32], index: 6, kind: output, shape index: {}]
  %s7 = sld [smem:[#allocation0]]
  $region34: #{triangle_multiplicative_update.5} parent=0
    _
  %s9 = ssub.s32 1, %s7
  %s10 = scalar_select 0, %s9, %s7
  $region1: #{triangle_multiplicative_update.5} parent=0
    #allocation2 [shape = 'u8[131072]{0}', space=vmem, size = 0x20000, scoped, tag = 'output window, operand 0, single buffered']
    #allocation3 [shape = 's32[1]{0}', space=sflag, size = 0x4, scoped, tag = 'scoped memory for triangle_multiplicative_update.5']
    %11 = vsyncpa [#allocation3], 0
    // Predicated region
    $region2: #{triangle_multiplicative_update.5} parent=1 // pred_check
      _
    $region3: #{triangle_multiplicative_update.5} parent=1 // pred_check_branch
      %13 = sbr.rel (0) target = $region5
    $region4: #{triangle_multiplicative_update.5} parent=1 // pred_region
      _
    $region5: #{triangle_multiplicative_update.5} parent=1 // pred_fallthru
      _
    // Predicated region
    $region6: #{triangle_multiplicative_update.5} parent=1 // pred_check
      _
    $region7: #{triangle_multiplicative_update.5} parent=1 // pred_check_branch
      %15 = sbr.rel (0) target = $region9
    $region8: #{triangle_multiplicative_update.5} parent=1 // pred_region
      _
    $region9: #{triangle_multiplicative_update.5} parent=1 // pred_fallthru
      _
    // Predicated region
    $region10: #{triangle_multiplicative_update.5} parent=1 // pred_check
      _
    $region11: #{triangle_multiplicative_update.5} parent=1 // pred_check_branch
      %17 = sbr.rel (0) target = $region13
    $region12: #{triangle_multiplicative_update.5} parent=1 // pred_region
      _
    $region13: #{triangle_multiplicative_update.5} parent=1 // pred_fallthru
      _
    // Predicated region
    $region14: #{triangle_multiplicative_update.5} parent=1 // pred_check
      _
    $region15: #{triangle_multiplicative_update.5} parent=1 // pred_check_branch
      %19 = sbr.rel (0) target = $region17
    $region16: #{triangle_multiplicative_update.5} parent=1 // pred_region
      _
    $region17: #{triangle_multiplicative_update.5} parent=1 // pred_fallthru
      _
    // Predicated region
    $region18: #{triangle_multiplicative_update.5} parent=1 // pred_check
      _
    $region19: #{triangle_multiplicative_update.5} parent=1 // pred_check_branch
      %21 = sbr.rel (0) target = $region21
    $region20: #{triangle_multiplicative_update.5} parent=1 // pred_region
      _
    $region21: #{triangle_multiplicative_update.5} parent=1 // pred_fallthru
      _
    // Predicated region
    $region22: #{triangle_multiplicative_update.5} parent=1 // pred_check
      _
    $region23: #{triangle_multiplicative_update.5} parent=1 // pred_check_branch
      %23 = sbr.rel (0) target = $region25
    $region24: #{triangle_multiplicative_update.5} parent=1 // pred_region
      _
    $region25: #{triangle_multiplicative_update.5} parent=1 // pred_fallthru
      _
    %v24 = vld [vmem:[%s0] sm:$0xff]
    %v25 = vld [vmem:[%s0 + $0x8] sm:$0xff]
    %v26 = vld [vmem:[%s0 + $0x10] sm:$0xff]
    %v27 = vld [vmem:[%s0 + $0x18] sm:$0xff]
    %v28 = vunpack.c.l.bf16 %v24
    %v29 = vunpack.c.h.bf16 %v24
    %v30 = vunpack.c.l.bf16 %v25
    %v31 = vunpack.c.h.bf16 %v25
    %v32 = vunpack.c.l.bf16 %v26
    %v33 = vunpack.c.h.bf16 %v26
    %v34 = vunpack.c.l.bf16 %v27
    %v35 = vunpack.c.h.bf16 %v27
    %36 = vxpose.xlu0.b32.start [1/16] %v28, 128
    %37 = vxpose.xlu0.b32.cont [2/16] %v30, 128
    %38 = vxpose.xlu0.b32.cont [3/16] %v32, 128
    %39 = vxpose.xlu0.b32.cont [4/16] %v34, 128
    %40 = vxpose.xlu0.b32.cont [5/16] 0.0, 128
    %41 = vxpose.xlu0.b32.cont [6/16] 0.0, 128
    %42 = vxpose.xlu0.b32.cont [7/16] 0.0, 128
    %43 = vxpose.xlu0.b32.cont [8/16] 0.0, 128
    %44 = vxpose.xlu0.b32.cont [9/16] 0.0, 128
    %45 = vxpose.xlu0.b32.cont [10/16] 0.0, 128
    %46 = vxpose.xlu0.b32.cont [11/16] 0.0, 128
    %47 = vxpose.xlu0.b32.cont [12/16] 0.0, 128
    %48 = vxpose.xlu0.b32.cont [13/16] 0.0, 128
    %49 = vxpose.xlu0.b32.cont [14/16] 0.0, 128
    %50 = vxpose.xlu0.b32.cont [15/16] 0.0, 128
    %51 = vxpose.xlu0.b32.end [16/16] 0.0, 128
    %v52 = vpop.trf.xlu0
    %v53 = vpop.trf.xlu0
    %v54 = vpop.trf.xlu0
    %v55 = vpop.trf.xlu0
    %v56 = vpop.trf.xlu0
    %v57 = vpop.trf.xlu0
    %v58 = vpop.trf.xlu0
    %v59 = vpop.trf.xlu0
    %v60 = vpop.trf.xlu0
    %v61 = vpop.trf.xlu0
    %v62 = vpop.trf.xlu0
    %v63 = vpop.trf.xlu0
    %v64 = vpop.trf.xlu0
    %v65 = vpop.trf.xlu0
    %v66 = vpop.trf.xlu0
    %v67 = vpop.trf.xlu0
    %68 = vxpose.xlu0.b32.start [1/16] %v29, 128
    %69 = vxpose.xlu0.b32.cont [2/16] %v31, 128
    %70 = vxpose.xlu0.b32.cont [3/16] %v33, 128
    %71 = vxpose.xlu0.b32.cont [4/16] %v35, 128
    %72 = vxpose.xlu0.b32.cont [5/16] 0.0, 128
    %73 = vxpose.xlu0.b32.cont [6/16] 0.0, 128
    %74 = vxpose.xlu0.b32.cont [7/16] 0.0, 128
    %75 = vxpose.xlu0.b32.cont [8/16] 0.0, 128
    %76 = vxpose.xlu0.b32.cont [9/16] 0.0, 128
    %77 = vxpose.xlu0.b32.cont [10/16] 0.0, 128
    %78 = vxpose.xlu0.b32.cont [11/16] 0.0, 128
    %79 = vxpose.xlu0.b32.cont [12/16] 0.0, 128
    %80 = vxpose.xlu0.b32.cont [13/16] 0.0, 128
    %81 = vxpose.xlu0.b32.cont [14/16] 0.0, 128
    %82 = vxpose.xlu0.b32.cont [15/16] 0.0, 128
    %83 = vxpose.xlu0.b32.end [16/16] 0.0, 128
    %v84 = vpop.trf.xlu0
    %v85 = vpop.trf.xlu0
    %v86 = vpop.trf.xlu0
    %v87 = vpop.trf.xlu0
    %v88 = vpop.trf.xlu0
    %v89 = vpop.trf.xlu0
    %v90 = vpop.trf.xlu0
    %v91 = vpop.trf.xlu0
    %v92 = vpop.trf.xlu0
    %v93 = vpop.trf.xlu0
    %v94 = vpop.trf.xlu0
    %v95 = vpop.trf.xlu0
    %v96 = vpop.trf.xlu0
    %v97 = vpop.trf.xlu0
    %v98 = vpop.trf.xlu0
    %v99 = vpop.trf.xlu0
    %vm100 = vcmask 261120
    %v101 = vsel %vm100, %v52, 0.0
    %102 = vadd.xlane.f32.xlu0 %v101
    %v103 = vpop.xlane.xlu0 %102
    %v104 = vsel %vm100, %v53, 0.0
    %105 = vadd.xlane.f32.xlu0 %v104
    %v106 = vpop.xlane.xlu0 %105
    %v107 = vsel %vm100, %v54, 0.0
    %108 = vadd.xlane.f32.xlu0 %v107
    %v109 = vpop.xlane.xlu0 %108
    %v110 = vsel %vm100, %v55, 0.0
    %111 = vadd.xlane.f32.xlu0 %v110
    %v112 = vpop.xlane.xlu0 %111
    %v113 = vsel %vm100, %v56, 0.0
    %114 = vadd.xlane.f32.xlu0 %v113
    %v115 = vpop.xlane.xlu0 %114
    %v116 = vsel %vm100, %v57, 0.0
    %117 = vadd.xlane.f32.xlu0 %v116
    %v118 = vpop.xlane.xlu0 %117
    %v119 = vsel %vm100, %v58, 0.0
    %120 = vadd.xlane.f32.xlu0 %v119
    %v121 = vpop.xlane.xlu0 %120
    %v122 = vsel %vm100, %v59, 0.0
    %123 = vadd.xlane.f32.xlu0 %v122
    %v124 = vpop.xlane.xlu0 %123
    %v125 = vsel %vm100, %v60, 0.0
    %126 = vadd.xlane.f32.xlu0 %v125
    %v127 = vpop.xlane.xlu0 %126
    %v128 = vsel %vm100, %v61, 0.0
    %129 = vadd.xlane.f32.xlu0 %v128
    %v130 = vpop.xlane.xlu0 %129
    %v131 = vsel %vm100, %v62, 0.0
    %132 = vadd.xlane.f32.xlu0 %v131
    %v133 = vpop.xlane.xlu0 %132
    %v134 = vsel %vm100, %v63, 0.0
    %135 = vadd.xlane.f32.xlu0 %v134
    %v136 = vpop.xlane.xlu0 %135
    %v137 = vsel %vm100, %v64, 0.0
    %138 = vadd.xlane.f32.xlu0 %v137
    %v139 = vpop.xlane.xlu0 %138
    %v140 = vsel %vm100, %v65, 0.0
    %141 = vadd.xlane.f32.xlu0 %v140
    %v142 = vpop.xlane.xlu0 %141
    %v143 = vsel %vm100, %v66, 0.0
    %144 = vadd.xlane.f32.xlu0 %v143
    %v145 = vpop.xlane.xlu0 %144
    %v146 = vsel %vm100, %v67, 0.0
    %147 = vadd.xlane.f32.xlu0 %v146
    %v148 = vpop.xlane.xlu0 %147
    %v149 = vsel %vm100, %v84, 0.0
    %150 = vadd.xlane.f32.xlu0 %v149
    %v151 = vpop.xlane.xlu0 %150
    %v152 = vsel %vm100, %v85, 0.0
    %153 = vadd.xlane.f32.xlu0 %v152
    %v154 = vpop.xlane.xlu0 %153
    %v155 = vsel %vm100, %v86, 0.0
    %156 = vadd.xlane.f32.xlu0 %v155
    %v157 = vpop.xlane.xlu0 %156
    %v158 = vsel %vm100, %v87, 0.0
    %159 = vadd.xlane.f32.xlu0 %v158
    %v160 = vpop.xlane.xlu0 %159
    %v161 = vsel %vm100, %v88, 0.0
    %162 = vadd.xlane.f32.xlu0 %v161
    %v163 = vpop.xlane.xlu0 %162
    %v164 = vsel %vm100, %v89, 0.0
    %165 = vadd.xlane.f32.xlu0 %v164
    %v166 = vpop.xlane.xlu0 %165
    %v167 = vsel %vm100, %v90, 0.0
    %168 = vadd.xlane.f32.xlu0 %v167
    %v169 = vpop.xlane.xlu0 %168
    %v170 = vsel %vm100, %v91, 0.0
    %171 = vadd.xlane.f32.xlu0 %v170
    %v172 = vpop.xlane.xlu0 %171
    %v173 = vsel %vm100, %v92, 0.0
    %174 = vadd.xlane.f32.xlu0 %v173
    %v175 = vpop.xlane.xlu0 %174
    %v176 = vsel %vm100, %v93, 0.0
    %177 = vadd.xlane.f32.xlu0 %v176
    %v178 = vpop.xlane.xlu0 %177
    %v179 = vsel %vm100, %v94, 0.0
    %180 = vadd.xlane.f32.xlu0 %v179
    %v181 = vpop.xlane.xlu0 %180
    %v182 = vsel %vm100, %v95, 0.0
    %183 = vadd.xlane.f32.xlu0 %v182
    %v184 = vpop.xlane.xlu0 %183
    %v185 = vsel %vm100, %v96, 0.0
    %186 = vadd.xlane.f32.xlu0 %v185
    %v187 = vpop.xlane.xlu0 %186
    %v188 = vsel %vm100, %v97, 0.0
    %189 = vadd.xlane.f32.xlu0 %v188
    %v190 = vpop.xlane.xlu0 %189
    %v191 = vsel %vm100, %v98, 0.0
    %192 = vadd.xlane.f32.xlu0 %v191
    %v193 = vpop.xlane.xlu0 %192
    %v194 = vsel %vm100, %v99, 0.0
    %195 = vadd.xlane.f32.xlu0 %v194
    %v196 = vpop.xlane.xlu0 %195
    %v197 = vrcp.pop 32.0
    %v198 = vmul.f32 %v103, %v197
    %v199 = vmul.f32 %v106, %v197
    %v200 = vmul.f32 %v109, %v197
    %v201 = vmul.f32 %v112, %v197
    %v202 = vmul.f32 %v115, %v197
    %v203 = vmul.f32 %v118, %v197
    %v204 = vmul.f32 %v121, %v197
    %v205 = vmul.f32 %v124, %v197
    %v206 = vmul.f32 %v127, %v197
    %v207 = vmul.f32 %v130, %v197
    %v208 = vmul.f32 %v133, %v197
    %v209 = vmul.f32 %v136, %v197
    %v210 = vmul.f32 %v139, %v197
    %v211 = vmul.f32 %v142, %v197
    %v212 = vmul.f32 %v145, %v197
    %v213 = vmul.f32 %v148, %v197
    %v214 = vmul.f32 %v151, %v197
    %v215 = vmul.f32 %v154, %v197
    %v216 = vmul.f32 %v157, %v197
    %v217 = vmul.f32 %v160, %v197
    %v218 = vmul.f32 %v163, %v197
    %v219 = vmul.f32 %v166, %v197
    %v220 = vmul.f32 %v169, %v197
    %v221 = vmul.f32 %v172, %v197
    %v222 = vmul.f32 %v175, %v197
    %v223 = vmul.f32 %v178, %v197
    %v224 = vmul.f32 %v181, %v197
    %v225 = vmul.f32 %v184, %v197
    %v226 = vmul.f32 %v187, %v197
    %v227 = vmul.f32 %v190, %v197
    %v228 = vmul.f32 %v193, %v197
    %v229 = vmul.f32 %v196, %v197
    %v230 = vsub.f32 %v52, %v198
    %v231 = vsub.f32 %v53, %v199
    %v232 = vsub.f32 %v54, %v200
    %v233 = vsub.f32 %v55, %v201
    %v234 = vsub.f32 %v56, %v202
    %v235 = vsub.f32 %v57, %v203
    %v236 = vsub.f32 %v58, %v204
    %v237 = vsub.f32 %v59, %v205
    %v238 = vsub.f32 %v60, %v206
    %v239 = vsub.f32 %v61, %v207
    %v240 = vsub.f32 %v62, %v208
    %v241 = vsub.f32 %v63, %v209
    %v242 = vsub.f32 %v64, %v210
    %v243 = vsub.f32 %v65, %v211
    %v244 = vsub.f32 %v66, %v212
    %v245 = vsub.f32 %v67, %v213
    %v246 = vsub.f32 %v84, %v214
    %v247 = vsub.f32 %v85, %v215
    %v248 = vsub.f32 %v86, %v216
    %v249 = vsub.f32 %v87, %v217
    %v250 = vsub.f32 %v88, %v218
    %v251 = vsub.f32 %v89, %v219
    %v252 = vsub.f32 %v90, %v220
    %v253 = vsub.f32 %v91, %v221
    %v254 = vsub.f32 %v92, %v222
    %v255 = vsub.f32 %v93, %v223
    %v256 = vsub.f32 %v94, %v224
    %v257 = vsub.f32 %v95, %v225
    %v258 = vsub.f32 %v96, %v226
    %v259 = vsub.f32 %v97, %v227
    %v260 = vsub.f32 %v98, %v228
    %v261 = vsub.f32 %v99, %v229
    %v262 = vmul.f32 %v230, %v230
    %v263 = vmul.f32 %v231, %v231
    %v264 = vmul.f32 %v232, %v232
    %v265 = vmul.f32 %v233, %v233
    %v266 = vmul.f32 %v234, %v234
    %v267 = vmul.f32 %v235, %v235
    %v268 = vmul.f32 %v236, %v236
    %v269 = vmul.f32 %v237, %v237
    %v270 = vmul.f32 %v238, %v238
    %v271 = vmul.f32 %v239, %v239
    %v272 = vmul.f32 %v240, %v240
    %v273 = vmul.f32 %v241, %v241
    %v274 = vmul.f32 %v242, %v242
    %v275 = vmul.f32 %v243, %v243
    %v276 = vmul.f32 %v244, %v244
    %v277 = vmul.f32 %v245, %v245
    %v278 = vmul.f32 %v246, %v246
    %v279 = vmul.f32 %v247, %v247
    %v280 = vmul.f32 %v248, %v248
    %v281 = vmul.f32 %v249, %v249
    %v282 = vmul.f32 %v250, %v250
    %v283 = vmul.f32 %v251, %v251
    %v284 = vmul.f32 %v252, %v252
    %v285 = vmul.f32 %v253, %v253
    %v286 = vmul.f32 %v254, %v254
    %v287 = vmul.f32 %v255, %v255
    %v288 = vmul.f32 %v256, %v256
    %v289 = vmul.f32 %v257, %v257
    %v290 = vmul.f32 %v258, %v258
    %v291 = vmul.f32 %v259, %v259
    %v292 = vmul.f32 %v260, %v260
    %v293 = vmul.f32 %v261, %v261
    %v294 = vsel %vm100, %v262, 0.0
    %295 = vadd.xlane.f32.xlu0 %v294
    %v296 = vpop.xlane.xlu0 %295
    %v297 = vsel %vm100, %v263, 0.0
    %298 = vadd.xlane.f32.xlu0 %v297
    %v299 = vpop.xlane.xlu0 %298
    %v300 = vsel %vm100, %v264, 0.0
    %301 = vadd.xlane.f32.xlu0 %v300
    %v302 = vpop.xlane.xlu0 %301
    %v303 = vsel %vm100, %v265, 0.0
    %304 = vadd.xlane.f32.xlu0 %v303
    %v305 = vpop.xlane.xlu0 %304
    %v306 = vsel %vm100, %v266, 0.0
    %307 = vadd.xlane.f32.xlu0 %v306
    %v308 = vpop.xlane.xlu0 %307
    %v309 = vsel %vm100, %v267, 0.0
    %310 = vadd.xlane.f32.xlu0 %v309
    %v311 = vpop.xlane.xlu0 %310
    %v312 = vsel %vm100, %v268, 0.0
    %313 = vadd.xlane.f32.xlu0 %v312
    %v314 = vpop.xlane.xlu0 %313
    %v315 = vsel %vm100, %v269, 0.0
    %316 = vadd.xlane.f32.xlu0 %v315
    %v317 = vpop.xlane.xlu0 %316
    %v318 = vsel %vm100, %v270, 0.0
    %319 = vadd.xlane.f32.xlu0 %v318
    %v320 = vpop.xlane.xlu0 %319
    %v321 = vsel %vm100, %v271, 0.0
    %322 = vadd.xlane.f32.xlu0 %v321
    %v323 = vpop.xlane.xlu0 %322
    %v324 = vsel %vm100, %v272, 0.0
    %325 = vadd.xlane.f32.xlu0 %v324
    %v326 = vpop.xlane.xlu0 %325
    %v327 = vsel %vm100, %v273, 0.0
    %328 = vadd.xlane.f32.xlu0 %v327
    %v329 = vpop.xlane.xlu0 %328
    %v330 = vsel %vm100, %v274, 0.0
    %331 = vadd.xlane.f32.xlu0 %v330
    %v332 = vpop.xlane.xlu0 %331
    %v333 = vsel %vm100, %v275, 0.0
    %334 = vadd.xlane.f32.xlu0 %v333
    %v335 = vpop.xlane.xlu0 %334
    %v336 = vsel %vm100, %v276, 0.0
    %337 = vadd.xlane.f32.xlu0 %v336
    %v338 = vpop.xlane.xlu0 %337
    %v339 = vsel %vm100, %v277, 0.0
    %340 = vadd.xlane.f32.xlu0 %v339
    %v341 = vpop.xlane.xlu0 %340
    %v342 = vsel %vm100, %v278, 0.0
    %343 = vadd.xlane.f32.xlu0 %v342
    %v344 = vpop.xlane.xlu0 %343
    %v345 = vsel %vm100, %v279, 0.0
    %346 = vadd.xlane.f32.xlu0 %v345
    %v347 = vpop.xlane.xlu0 %346
    %v348 = vsel %vm100, %v280, 0.0
    %349 = vadd.xlane.f32.xlu0 %v348
    %v350 = vpop.xlane.xlu0 %349
    %v351 = vsel %vm100, %v281, 0.0
    %352 = vadd.xlane.f32.xlu0 %v351
    %v353 = vpop.xlane.xlu0 %352
    %v354 = vsel %vm100, %v282, 0.0
    %355 = vadd.xlane.f32.xlu0 %v354
    %v356 = vpop.xlane.xlu0 %355
    %v357 = vsel %vm100, %v283, 0.0
    %358 = vadd.xlane.f32.xlu0 %v357
    %v359 = vpop.xlane.xlu0 %358
    %v360 = vsel %vm100, %v284, 0.0
    %361 = vadd.xlane.f32.xlu0 %v360
    %v362 = vpop.xlane.xlu0 %361
    %v363 = vsel %vm100, %v285, 0.0
    %364 = vadd.xlane.f32.xlu0 %v363
    %v365 = vpop.xlane.xlu0 %364
    %v366 = vsel %vm100, %v286, 0.0
    %367 = vadd.xlane.f32.xlu0 %v366
    %v368 = vpop.xlane.xlu0 %367
    %v369 = vsel %vm100, %v287, 0.0
    %370 = vadd.xlane.f32.xlu0 %v369
    %v371 = vpop.xlane.xlu0 %370
    %v372 = vsel %vm100, %v288, 0.0
    %373 = vadd.xlane.f32.xlu0 %v372
    %v374 = vpop.xlane.xlu0 %373
    %v375 = vsel %vm100, %v289, 0.0
    %376 = vadd.xlane.f32.xlu0 %v375
    %v377 = vpop.xlane.xlu0 %376
    %v378 = vsel %vm100, %v290, 0.0
    %379 = vadd.xlane.f32.xlu0 %v378
    %v380 = vpop.xlane.xlu0 %379
    %v381 = vsel %vm100, %v291, 0.0
    %382 = vadd.xlane.f32.xlu0 %v381
    %v383 = vpop.xlane.xlu0 %382
    %v384 = vsel %vm100, %v292, 0.0
    %385 = vadd.xlane.f32.xlu0 %v384
    %v386 = vpop.xlane.xlu0 %385
    %v387 = vsel %vm100, %v293, 0.0
    %388 = vadd.xlane.f32.xlu0 %v387
    %v389 = vpop.xlane.xlu0 %388
    %v390 = vmul.f32 %v296, %v197
    %v391 = vmul.f32 %v299, %v197
    %v392 = vmul.f32 %v302, %v197
    %v393 = vmul.f32 %v305, %v197
    %v394 = vmul.f32 %v308, %v197
    %v395 = vmul.f32 %v311, %v197
    %v396 = vmul.f32 %v314, %v197
    %v397 = vmul.f32 %v317, %v197
    %v398 = vmul.f32 %v320, %v197
    %v399 = vmul.f32 %v323, %v197
    %v400 = vmul.f32 %v326, %v197
    %v401 = vmul.f32 %v329, %v197
    %v402 = vmul.f32 %v332, %v197
    %v403 = vmul.f32 %v335, %v197
    %v404 = vmul.f32 %v338, %v197
    %v405 = vmul.f32 %v341, %v197
    %v406 = vmul.f32 %v344, %v197
    %v407 = vmul.f32 %v347, %v197
    %v408 = vmul.f32 %v350, %v197
    %v409 = vmul.f32 %v353, %v197
    %v410 = vmul.f32 %v356, %v197
    %v411 = vmul.f32 %v359, %v197
    %v412 = vmul.f32 %v362, %v197
    %v413 = vmul.f32 %v365, %v197
    %v414 = vmul.f32 %v368, %v197
    %v415 = vmul.f32 %v371, %v197
    %v416 = vmul.f32 %v374, %v197
    %v417 = vmul.f32 %v377, %v197
    %v418 = vmul.f32 %v380, %v197
    %v419 = vmul.f32 %v383, %v197
    %v420 = vmul.f32 %v386, %v197
    %v421 = vmul.f32 %v389, %v197
    %v422 = vadd.f32 %v390, 1e-05
    %v423 = vadd.f32 %v391, 1e-05
    %v424 = vadd.f32 %v392, 1e-05
    %v425 = vadd.f32 %v393, 1e-05
    %v426 = vadd.f32 %v394, 1e-05
    %v427 = vadd.f32 %v395, 1e-05
    %v428 = vadd.f32 %v396, 1e-05
    %v429 = vadd.f32 %v397, 1e-05
    %v430 = vadd.f32 %v398, 1e-05
    %v431 = vadd.f32 %v399, 1e-05
    %v432 = vadd.f32 %v400, 1e-05
    %v433 = vadd.f32 %v401, 1e-05
    %v434 = vadd.f32 %v402, 1e-05
    %v435 = vadd.f32 %v403, 1e-05
    %v436 = vadd.f32 %v404, 1e-05
    %v437 = vadd.f32 %v405, 1e-05
    %v438 = vadd.f32 %v406, 1e-05
    %v439 = vadd.f32 %v407, 1e-05
    %v440 = vadd.f32 %v408, 1e-05
    %v441 = vadd.f32 %v409, 1e-05
    %v442 = vadd.f32 %v410, 1e-05
    %v443 = vadd.f32 %v411, 1e-05
    %v444 = vadd.f32 %v412, 1e-05
    %v445 = vadd.f32 %v413, 1e-05
    %v446 = vadd.f32 %v414, 1e-05
    %v447 = vadd.f32 %v415, 1e-05
    %v448 = vadd.f32 %v416, 1e-05
    %v449 = vadd.f32 %v417, 1e-05
    %v450 = vadd.f32 %v418, 1e-05
    %v451 = vadd.f32 %v419, 1e-05
    %v452 = vadd.f32 %v420, 1e-05
    %v453 = vadd.f32 %v421, 1e-05
    %v454 = vrsqrt.pop %v422
    %v455 = vrsqrt.pop %v423
    %v456 = vrsqrt.pop %v424
    %v457 = vrsqrt.pop %v425
    %v458 = vrsqrt.pop %v426
    %v459 = vrsqrt.pop %v427
    %v460 = vrsqrt.pop %v428
    %v461 = vrsqrt.pop %v429
    %v462 = vrsqrt.pop %v430
    %v463 = vrsqrt.pop %v431
    %v464 = vrsqrt.pop %v432
    %v465 = vrsqrt.pop %v433
    %v466 = vrsqrt.pop %v434
    %v467 = vrsqrt.pop %v435
    %v468 = vrsqrt.pop %v436
    %v469 = vrsqrt.pop %v437
    %v470 = vrsqrt.pop %v438
    %v471 = vrsqrt.pop %v439
    %v472 = vrsqrt.pop %v440
    %v473 = vrsqrt.pop %v441
    %v474 = vrsqrt.pop %v442
    %v475 = vrsqrt.pop %v443
    %v476 = vrsqrt.pop %v444
    %v477 = vrsqrt.pop %v445
    %v478 = vrsqrt.pop %v446
    %v479 = vrsqrt.pop %v447
    %v480 = vrsqrt.pop %v448
    %v481 = vrsqrt.pop %v449
    %v482 = vrsqrt.pop %v450
    %v483 = vrsqrt.pop %v451
    %v484 = vrsqrt.pop %v452
    %v485 = vrsqrt.pop %v453
    %v486 = vmul.f32 %v230, %v454
    %v487 = vmul.f32 %v231, %v455
    %v488 = vmul.f32 %v232, %v456
    %v489 = vmul.f32 %v233, %v457
    %v490 = vmul.f32 %v234, %v458
    %v491 = vmul.f32 %v235, %v459
    %v492 = vmul.f32 %v236, %v460
    %v493 = vmul.f32 %v237, %v461
    %v494 = vmul.f32 %v238, %v462
    %v495 = vmul.f32 %v239, %v463
    %v496 = vmul.f32 %v240, %v464
    %v497 = vmul.f32 %v241, %v465
    %v498 = vmul.f32 %v242, %v466
    %v499 = vmul.f32 %v243, %v467
    %v500 = vmul.f32 %v244, %v468
    %v501 = vmul.f32 %v245, %v469
    %v502 = vmul.f32 %v246, %v470
    %v503 = vmul.f32 %v247, %v471
    %v504 = vmul.f32 %v248, %v472
    %v505 = vmul.f32 %v249, %v473
    %v506 = vmul.f32 %v250, %v474
    %v507 = vmul.f32 %v251, %v475
    %v508 = vmul.f32 %v252, %v476
    %v509 = vmul.f32 %v253, %v477
    %v510 = vmul.f32 %v254, %v478
    %v511 = vmul.f32 %v255, %v479
    %v512 = vmul.f32 %v256, %v480
    %v513 = vmul.f32 %v257, %v481
    %v514 = vmul.f32 %v258, %v482
    %v515 = vmul.f32 %v259, %v483
    %v516 = vmul.f32 %v260, %v484
    %v517 = vmul.f32 %v261, %v485
    %v518 = vld [vmem:[%s2] sm:$0x1]
    %v520 = vlaneseq
    %v521 = vshrl.u32 %v520, 7
    %v522 = vsub.s32 0, %v521
    %v523 = vrot.slane %v518, %v522
    %v525 = vmul.f32 %v486, %v523
    %v526 = vmul.f32 %v487, %v523
    %v527 = vmul.f32 %v488, %v523
    %v528 = vmul.f32 %v489, %v523
    %v529 = vmul.f32 %v490, %v523
    %v530 = vmul.f32 %v491, %v523
    %v531 = vmul.f32 %v492, %v523
    %v532 = vmul.f32 %v493, %v523
    %v533 = vmul.f32 %v494, %v523
    %v534 = vmul.f32 %v495, %v523
    %v535 = vmul.f32 %v496, %v523
    %v536 = vmul.f32 %v497, %v523
    %v537 = vmul.f32 %v498, %v523
    %v538 = vmul.f32 %v499, %v523
    %v539 = vmul.f32 %v500, %v523
    %v540 = vmul.f32 %v501, %v523
    %v541 = vmul.f32 %v502, %v523
    %v542 = vmul.f32 %v503, %v523
    %v543 = vmul.f32 %v504, %v523
    %v544 = vmul.f32 %v505, %v523
    %v545 = vmul.f32 %v506, %v523
    %v546 = vmul.f32 %v507, %v523
    %v547 = vmul.f32 %v508, %v523
    %v548 = vmul.f32 %v509, %v523
    %v549 = vmul.f32 %v510, %v523
    %v550 = vmul.f32 %v511, %v523
    %v551 = vmul.f32 %v512, %v523
    %v552 = vmul.f32 %v513, %v523
    %v553 = vmul.f32 %v514, %v523
    %v554 = vmul.f32 %v515, %v523
    %v555 = vmul.f32 %v516, %v523
    %v556 = vmul.f32 %v517, %v523
    %v557 = vld [vmem:[%s3] sm:$0x1]
    %v559 = vlaneseq
    %v560 = vshrl.u32 %v559, 7
    %v561 = vsub.s32 0, %v560
    %v562 = vrot.slane %v557, %v561
    %v564 = vadd.f32 %v525, %v562
    %v565 = vadd.f32 %v526, %v562
    %v566 = vadd.f32 %v527, %v562
    %v567 = vadd.f32 %v528, %v562
    %v568 = vadd.f32 %v529, %v562
    %v569 = vadd.f32 %v530, %v562
    %v570 = vadd.f32 %v531, %v562
    %v571 = vadd.f32 %v532, %v562
    %v572 = vadd.f32 %v533, %v562
    %v573 = vadd.f32 %v534, %v562
    %v574 = vadd.f32 %v535, %v562
    %v575 = vadd.f32 %v536, %v562
    %v576 = vadd.f32 %v537, %v562
    %v577 = vadd.f32 %v538, %v562
    %v578 = vadd.f32 %v539, %v562
    %v579 = vadd.f32 %v540, %v562
    %v580 = vadd.f32 %v541, %v562
    %v581 = vadd.f32 %v542, %v562
    %v582 = vadd.f32 %v543, %v562
    %v583 = vadd.f32 %v544, %v562
    %v584 = vadd.f32 %v545, %v562
    %v585 = vadd.f32 %v546, %v562
    %v586 = vadd.f32 %v547, %v562
    %v587 = vadd.f32 %v548, %v562
    %v588 = vadd.f32 %v549, %v562
    %v589 = vadd.f32 %v550, %v562
    %v590 = vadd.f32 %v551, %v562
    %v591 = vadd.f32 %v552, %v562
    %v592 = vadd.f32 %v553, %v562
    %v593 = vadd.f32 %v554, %v562
    %v594 = vadd.f32 %v555, %v562
    %v595 = vadd.f32 %v556, %v562
    %v596 = vld [vmem:[%s4] sm:$0xff]
    %v597 = vld [vmem:[%s4 + $0x8] sm:$0xff]
    %v598 = vld [vmem:[%s4 + $0x10] sm:$0xff]
    %v599 = vld [vmem:[%s4 + $0x18] sm:$0xff]
    %v600 = vld [vmem:[%s5] sm:$0x1]
    %v602 = vlaneseq
    %v603 = vshrl.u32 %v602, 7
    %v604 = vsub.s32 0, %v603
    %v605 = vrot.slane %v600, %v604
    %v608 = vsel %vm100, %v564, 0
    %v611 = vsel %vm100, %v565, 0
    %v614 = vsel %vm100, %v566, 0
    %v617 = vsel %vm100, %v567, 0
    %v620 = vsel %vm100, %v568, 0
    %v623 = vsel %vm100, %v569, 0
    %v626 = vsel %vm100, %v570, 0
    %v629 = vsel %vm100, %v571, 0
    %v632 = vsel %vm100, %v572, 0
    %v635 = vsel %vm100, %v573, 0
    %v638 = vsel %vm100, %v574, 0
    %v641 = vsel %vm100, %v575, 0
    %v644 = vsel %vm100, %v576, 0
    %v647 = vsel %vm100, %v577, 0
    %v650 = vsel %vm100, %v578, 0
    %v653 = vsel %vm100, %v579, 0
    %v656 = vsel %vm100, %v580, 0
    %v659 = vsel %vm100, %v581, 0
    %v662 = vsel %vm100, %v582, 0
    %v665 = vsel %vm100, %v583, 0
    %v668 = vsel %vm100, %v584, 0
    %v671 = vsel %vm100, %v585, 0
    %v674 = vsel %vm100, %v586, 0
    %v677 = vsel %vm100, %v587, 0
    %v680 = vsel %vm100, %v588, 0
    %v683 = vsel %vm100, %v589, 0
    %v686 = vsel %vm100, %v590, 0
    %v689 = vsel %vm100, %v591, 0
    %v692 = vsel %vm100, %v592, 0
    %v695 = vsel %vm100, %v593, 0
    %v698 = vsel %vm100, %v594, 0
    %v701 = vsel %vm100, %v595, 0
    %703 = vmatprep.subr.mxu0 0.0
    %704 = vmatpush1.msra.mxu0 %v596
    %705 = vmatprep.subr.mxu0 0.0
    %706 = vmatpush1.msra.mxu0 %v597
    %707 = vmatprep.subr.mxu0 0.0
    %708 = vmatpush1.msra.mxu0 %v598
    %709 = vmatprep.subr.mxu0 0.0
    %710 = vmatpush1.msra.mxu0 %v599
    %711 = vmatprep.subr.mxu0 0.0
    %712 = vmatpush1.msra.mxu0 0.0
    %713 = vmatprep.subr.mxu0 0.0
    %714 = vmatpush1.msra.mxu0 0.0
    %715 = vmatprep.subr.mxu0 0.0
    %716 = vmatpush1.msra.mxu0 0.0
    %717 = vmatprep.subr.mxu0 0.0
    %718 = vmatpush1.msra.mxu0 0.0
    %719 = vmatprep.subr.mxu0 0.0
    %720 = vmatpush1.msra.mxu0 0.0
    %721 = vmatprep.subr.mxu0 0.0
    %722 = vmatpush1.msra.mxu0 0.0
    %723 = vmatprep.subr.mxu0 0.0
    %724 = vmatpush1.msra.mxu0 0.0
    %725 = vmatprep.subr.mxu0 0.0
    %726 = vmatpush1.msra.mxu0 0.0
    %727 = vmatprep.subr.mxu0 0.0
    %728 = vmatpush1.msra.mxu0 0.0
    %729 = vmatprep.subr.mxu0 0.0
    %730 = vmatpush1.msra.mxu0 0.0
    %731 = vmatprep.subr.mxu0 0.0
    %732 = vmatpush1.msra.mxu0 0.0
    %733 = vmatprep.subr.mxu0 0.0
    %734 = vmatpush1.msra.mxu0 0.0
    %735 = vmatprep.subr.mxu0 0.0
    %736 = vmatpush1.msra.mxu0 0.0
    %737 = vmatprep.subr.mxu0 0.0
    %738 = vmatpush1.msra.mxu0 0.0
    %739 = vmatprep.subr.mxu0 0.0
    %740 = vmatpush1.msra.mxu0 0.0
    %741 = vmatprep.subr.mxu0 0.0
    %742 = vmatpush1.msra.mxu0 0.0
    %743 = vmatprep.subr.mxu0 0.0
    %744 = vmatpush1.msra.mxu0 0.0
    %745 = vmatprep.subr.mxu0 0.0
    %746 = vmatpush1.msra.mxu0 0.0
    %747 = vmatprep.subr.mxu0 0.0
    %748 = vmatpush1.msra.mxu0 0.0
    %749 = vmatprep.subr.mxu0 0.0
    %750 = vmatpush1.msra.mxu0 0.0
    %751 = vmatprep.subr.mxu0 0.0
    %752 = vmatpush1.msra.mxu0 0.0
    %753 = vmatprep.subr.mxu0 0.0
    %754 = vmatpush1.msra.mxu0 0.0
    %755 = vmatprep.subr.mxu0 0.0
    %756 = vmatpush1.msra.mxu0 0.0
    %757 = vmatprep.subr.mxu0 0.0
    %758 = vmatpush1.msra.mxu0 0.0
    %759 = vmatprep.subr.mxu0 0.0
    %760 = vmatpush1.msra.mxu0 0.0
    %761 = vmatprep.subr.mxu0 0.0
    %762 = vmatpush1.msra.mxu0 0.0
    %763 = vmatprep.subr.mxu0 0.0
    %764 = vmatpush1.msra.mxu0 0.0
    %765 = vmatprep.subr.mxu0 0.0
    %766 = vmatpush1.msra.mxu0 0.0
    %767 = vmatprep.mubr.f32.mxu0 0.0
    %768 = vmatmul.mubr.f32.gmra.mrb[0].mxu0 %v608
    %v769 = vpop.f32.mrb[0].mxu0
    %v770 = vadd.f32 %v605, %v769
    %v771 = vpop.f32.mrb[0].mxu0
    %772 = vmatprep.mubr.f32.mxu0 0.0
    %773 = vmatmul.mubr.f32.gmra.mrb[0].mxu0 %v611
    %v774 = vpop.f32.mrb[0].mxu0
    %v775 = vadd.f32 %v605, %v774
    %v776 = vpop.f32.mrb[0].mxu0
    %777 = vmatprep.mubr.f32.mxu0 0.0
    %778 = vmatmul.mubr.f32.gmra.mrb[0].mxu0 %v614
    %v779 = vpop.f32.mrb[0].mxu0
    %v780 = vadd.f32 %v605, %v779
    %v781 = vpop.f32.mrb[0].mxu0
    %782 = vmatprep.mubr.f32.mxu0 0.0
    %783 = vmatmul.mubr.f32.gmra.mrb[0].mxu0 %v617
    %v784 = vpop.f32.mrb[0].mxu0
    %v785 = vadd.f32 %v605, %v784
    %v786 = vpop.f32.mrb[0].mxu0
    %787 = vmatprep.mubr.f32.mxu0 0.0
    %788 = vmatmul.mubr.f32.gmra.mrb[0].mxu0 %v620
    %v789 = vpop.f32.mrb[0].mxu0
    %v790 = vadd.f32 %v605, %v789
    %v791 = vpop.f32.mrb[0].mxu0
    %792 = vmatprep.mubr.f32.mxu0 0.0
    %793 = vmatmul.mubr.f32.gmra.mrb[0].mxu0 %v623
    %v794 = vpop.f32.mrb[0].mxu0
    %v795 = vadd.f32 %v605, %v794
    %v796 = vpop.f32.mrb[0].mxu0
    %797 = vmatprep.mubr.f32.mxu0 0.0
    %798 = vmatmul.mubr.f32.gmra.mrb[0].mxu0 %v626
    %v799 = vpop.f32.mrb[0].mxu0
    %v800 = vadd.f32 %v605, %v799
    %v801 = vpop.f32.mrb[0].mxu0
    %802 = vmatprep.mubr.f32.mxu0 0.0
    %803 = vmatmul.mubr.f32.gmra.mrb[0].mxu0 %v629
    %v804 = vpop.f32.mrb[0].mxu0
    %v805 = vadd.f32 %v605, %v804
    %v806 = vpop.f32.mrb[0].mxu0
    %807 = vmatprep.mubr.f32.mxu0 0.0
    %808 = vmatmul.mubr.f32.gmra.mrb[0].mxu0 %v632
    %v809 = vpop.f32.mrb[0].mxu0
    %v810 = vadd.f32 %v605, %v809
    %v811 = vpop.f32.mrb[0].mxu0
    %812 = vmatprep.mubr.f32.mxu0 0.0
    %813 = vmatmul.mubr.f32.gmra.mrb[0].mxu0 %v635
    %v814 = vpop.f32.mrb[0].mxu0
    %v815 = vadd.f32 %v605, %v814
    %v816 = vpop.f32.mrb[0].mxu0
    %817 = vmatprep.mubr.f32.mxu0 0.0
    %818 = vmatmul.mubr.f32.gmra.mrb[0].mxu0 %v638
    %v819 = vpop.f32.mrb[0].mxu0
    %v820 = vadd.f32 %v605, %v819
    %v821 = vpop.f32.mrb[0].mxu0
    %822 = vmatprep.mubr.f32.mxu0 0.0
    %823 = vmatmul.mubr.f32.gmra.mrb[0].mxu0 %v641
    %v824 = vpop.f32.mrb[0].mxu0
    %v825 = vadd.f32 %v605, %v824
    %v826 = vpop.f32.mrb[0].mxu0
    %827 = vmatprep.mubr.f32.mxu0 0.0
    %828 = vmatmul.mubr.f32.gmra.mrb[0].mxu0 %v644
    %v829 = vpop.f32.mrb[0].mxu0
    %v830 = vadd.f32 %v605, %v829
    %v831 = vpop.f32.mrb[0].mxu0
    %832 = vmatprep.mubr.f32.mxu0 0.0
    %833 = vmatmul.mubr.f32.gmra.mrb[0].mxu0 %v647
    %v834 = vpop.f32.mrb[0].mxu0
    %v835 = vadd.f32 %v605, %v834
    %v836 = vpop.f32.mrb[0].mxu0
    %837 = vmatprep.mubr.f32.mxu0 0.0
    %838 = vmatmul.mubr.f32.gmra.mrb[0].mxu0 %v650
    %v839 = vpop.f32.mrb[0].mxu0
    %v840 = vadd.f32 %v605, %v839
    %v841 = vpop.f32.mrb[0].mxu0
    %842 = vmatprep.mubr.f32.mxu0 0.0
    %843 = vmatmul.mubr.f32.gmra.mrb[0].mxu0 %v653
    %v844 = vpop.f32.mrb[0].mxu0
    %v845 = vadd.f32 %v605, %v844
    %v846 = vpop.f32.mrb[0].mxu0
    %847 = vmatprep.mubr.f32.mxu0 0.0
    %848 = vmatmul.mubr.f32.gmra.mrb[0].mxu0 %v656
    %v849 = vpop.f32.mrb[0].mxu0
    %v850 = vadd.f32 %v605, %v849
    %v851 = vpop.f32.mrb[0].mxu0
    %852 = vmatprep.mubr.f32.mxu0 0.0
    %853 = vmatmul.mubr.f32.gmra.mrb[0].mxu0 %v659
    %v854 = vpop.f32.mrb[0].mxu0
    %v855 = vadd.f32 %v605, %v854
    %v856 = vpop.f32.mrb[0].mxu0
    %857 = vmatprep.mubr.f32.mxu0 0.0
    %858 = vmatmul.mubr.f32.gmra.mrb[0].mxu0 %v662
    %v859 = vpop.f32.mrb[0].mxu0
    %v860 = vadd.f32 %v605, %v859
    %v861 = vpop.f32.mrb[0].mxu0
    %862 = vmatprep.mubr.f32.mxu0 0.0
    %863 = vmatmul.mubr.f32.gmra.mrb[0].mxu0 %v665
    %v864 = vpop.f32.mrb[0].mxu0
    %v865 = vadd.f32 %v605, %v864
    %v866 = vpop.f32.mrb[0].mxu0
    %867 = vmatprep.mubr.f32.mxu0 0.0
    %868 = vmatmul.mubr.f32.gmra.mrb[0].mxu0 %v668
    %v869 = vpop.f32.mrb[0].mxu0
    %v870 = vadd.f32 %v605, %v869
    %v871 = vpop.f32.mrb[0].mxu0
    %872 = vmatprep.mubr.f32.mxu0 0.0
    %873 = vmatmul.mubr.f32.gmra.mrb[0].mxu0 %v671
    %v874 = vpop.f32.mrb[0].mxu0
    %v875 = vadd.f32 %v605, %v874
    %v876 = vpop.f32.mrb[0].mxu0
    %877 = vmatprep.mubr.f32.mxu0 0.0
    %878 = vmatmul.mubr.f32.gmra.mrb[0].mxu0 %v674
    %v879 = vpop.f32.mrb[0].mxu0
    %v880 = vadd.f32 %v605, %v879
    %v881 = vpop.f32.mrb[0].mxu0
    %882 = vmatprep.mubr.f32.mxu0 0.0
    %883 = vmatmul.mubr.f32.gmra.mrb[0].mxu0 %v677
    %v884 = vpop.f32.mrb[0].mxu0
    %v885 = vadd.f32 %v605, %v884
    %v886 = vpop.f32.mrb[0].mxu0
    %887 = vmatprep.mubr.f32.mxu0 0.0
    %888 = vmatmul.mubr.f32.gmra.mrb[0].mxu0 %v680
    %v889 = vpop.f32.mrb[0].mxu0
    %v890 = vadd.f32 %v605, %v889
    %v891 = vpop.f32.mrb[0].mxu0
    %892 = vmatprep.mubr.f32.mxu0 0.0
    %893 = vmatmul.mubr.f32.gmra.mrb[0].mxu0 %v683
    %v894 = vpop.f32.mrb[0].mxu0
    %v895 = vadd.f32 %v605, %v894
    %v896 = vpop.f32.mrb[0].mxu0
    %897 = vmatprep.mubr.f32.mxu0 0.0
    %898 = vmatmul.mubr.f32.gmra.mrb[0].mxu0 %v686
    %v899 = vpop.f32.mrb[0].mxu0
    %v900 = vadd.f32 %v605, %v899
    %v901 = vpop.f32.mrb[0].mxu0
    %902 = vmatprep.mubr.f32.mxu0 0.0
    %903 = vmatmul.mubr.f32.gmra.mrb[0].mxu0 %v689
    %v904 = vpop.f32.mrb[0].mxu0
    %v905 = vadd.f32 %v605, %v904
    %v906 = vpop.f32.mrb[0].mxu0
    %907 = vmatprep.mubr.f32.mxu0 0.0
    %908 = vmatmul.mubr.f32.gmra.mrb[0].mxu0 %v692
    %v909 = vpop.f32.mrb[0].mxu0
    %v910 = vadd.f32 %v605, %v909
    %v911 = vpop.f32.mrb[0].mxu0
    %912 = vmatprep.mubr.f32.mxu0 0.0
    %913 = vmatmul.mubr.f32.gmra.mrb[0].mxu0 %v695
    %v914 = vpop.f32.mrb[0].mxu0
    %v915 = vadd.f32 %v605, %v914
    %v916 = vpop.f32.mrb[0].mxu0
    %917 = vmatprep.mubr.f32.mxu0 0.0
    %918 = vmatmul.mubr.f32.gmra.mrb[0].mxu0 %v698
    %v919 = vpop.f32.mrb[0].mxu0
    %v920 = vadd.f32 %v605, %v919
    %v921 = vpop.f32.mrb[0].mxu0
    %922 = vmatprep.mubr.f32.mxu0 0.0
    %923 = vmatmul.mubr.f32.gmra.mrb[0].mxu0 %v701
    %v924 = vpop.f32.mrb[0].mxu0
    %v925 = vadd.f32 %v605, %v924
    %v926 = vpop.f32.mrb[0].mxu0
    %927 = vdwg.mxu0
    %v928 = vld [vmem:[%s1] sm:$0xff]
    %v929 = vld [vmem:[%s1 + $0x8] sm:$0xff]
    %v930 = vld [vmem:[%s1 + $0x10] sm:$0xff]
    %v931 = vld [vmem:[%s1 + $0x18] sm:$0xff]
    %v932 = vld [vmem:[%s1 + $0x20] sm:$0xff]
    %v933 = vld [vmem:[%s1 + $0x28] sm:$0xff]
    %v934 = vld [vmem:[%s1 + $0x30] sm:$0xff]
    %v935 = vld [vmem:[%s1 + $0x38] sm:$0xff]
    %v936 = vld [vmem:[%s1 + $0x40] sm:$0xff]
    %v937 = vld [vmem:[%s1 + $0x48] sm:$0xff]
    %v938 = vld [vmem:[%s1 + $0x50] sm:$0xff]
    %v939 = vld [vmem:[%s1 + $0x58] sm:$0xff]
    %v940 = vld [vmem:[%s1 + $0x60] sm:$0xff]
    %v941 = vld [vmem:[%s1 + $0x68] sm:$0xff]
    %v942 = vld [vmem:[%s1 + $0x70] sm:$0xff]
    %v943 = vld [vmem:[%s1 + $0x78] sm:$0xff]
    %v944 = vld [vmem:[%s1 + $0x80] sm:$0xff]
    %v945 = vld [vmem:[%s1 + $0x88] sm:$0xff]
    %v946 = vld [vmem:[%s1 + $0x90] sm:$0xff]
    %v947 = vld [vmem:[%s1 + $0x98] sm:$0xff]
    %v948 = vld [vmem:[%s1 + $0xa0] sm:$0xff]
    %v949 = vld [vmem:[%s1 + $0xa8] sm:$0xff]
    %v950 = vld [vmem:[%s1 + $0xb0] sm:$0xff]
    %v951 = vld [vmem:[%s1 + $0xb8] sm:$0xff]
    %v952 = vld [vmem:[%s1 + $0xc0] sm:$0xff]
    %v953 = vld [vmem:[%s1 + $0xc8] sm:$0xff]
    %v954 = vld [vmem:[%s1 + $0xd0] sm:$0xff]
    %v955 = vld [vmem:[%s1 + $0xd8] sm:$0xff]
    %v956 = vld [vmem:[%s1 + $0xe0] sm:$0xff]
    %v957 = vld [vmem:[%s1 + $0xe8] sm:$0xff]
    %v958 = vld [vmem:[%s1 + $0xf0] sm:$0xff]
    %v959 = vld [vmem:[%s1 + $0xf8] sm:$0xff]
    %v960 = vmul.f32 %v770, %v928
    %v961 = vmul.f32 %v775, %v929
    %v962 = vmul.f32 %v780, %v930
    %v963 = vmul.f32 %v785, %v931
    %v964 = vmul.f32 %v790, %v932
    %v965 = vmul.f32 %v795, %v933
    %v966 = vmul.f32 %v800, %v934
    %v967 = vmul.f32 %v805, %v935
    %v968 = vmul.f32 %v810, %v936
    %v969 = vmul.f32 %v815, %v937
    %v970 = vmul.f32 %v820, %v938
    %v971 = vmul.f32 %v825, %v939
    %v972 = vmul.f32 %v830, %v940
    %v973 = vmul.f32 %v835, %v941
    %v974 = vmul.f32 %v840, %v942
    %v975 = vmul.f32 %v845, %v943
    %v976 = vmul.f32 %v850, %v944
    %v977 = vmul.f32 %v855, %v945
    %v978 = vmul.f32 %v860, %v946
    %v979 = vmul.f32 %v865, %v947
    %v980 = vmul.f32 %v870, %v948
    %v981 = vmul.f32 %v875, %v949
    %v982 = vmul.f32 %v880, %v950
    %v983 = vmul.f32 %v885, %v951
    %v984 = vmul.f32 %v890, %v952
    %v985 = vmul.f32 %v895, %v953
    %v986 = vmul.f32 %v900, %v954
    %v987 = vmul.f32 %v905, %v955
    %v988 = vmul.f32 %v910, %v956
    %v989 = vmul.f32 %v915, %v957
    %v990 = vmul.f32 %v920, %v958
    %v991 = vmul.f32 %v925, %v959
    %992 = vst.msk [vmem:[#allocation2] sm:$0xff] %vm100, %v960
    %993 = vst.msk [vmem:[#allocation2 + $0x8] sm:$0xff] %vm100, %v961
    %994 = vst.msk [vmem:[#allocation2 + $0x10] sm:$0xff] %vm100, %v962
    %995 = vst.msk [vmem:[#allocation2 + $0x18] sm:$0xff] %vm100, %v963
    %996 = vst.msk [vmem:[#allocation2 + $0x20] sm:$0xff] %vm100, %v964
    %997 = vst.msk [vmem:[#allocation2 + $0x28] sm:$0xff] %vm100, %v965
    %998 = vst.msk [vmem:[#allocation2 + $0x30] sm:$0xff] %vm100, %v966
    %999 = vst.msk [vmem:[#allocation2 + $0x38] sm:$0xff] %vm100, %v967
    %1000 = vst.msk [vmem:[#allocation2 + $0x40] sm:$0xff] %vm100, %v968
    %1001 = vst.msk [vmem:[#allocation2 + $0x48] sm:$0xff] %vm100, %v969
    %1002 = vst.msk [vmem:[#allocation2 + $0x50] sm:$0xff] %vm100, %v970
    %1003 = vst.msk [vmem:[#allocation2 + $0x58] sm:$0xff] %vm100, %v971
    %1004 = vst.msk [vmem:[#allocation2 + $0x60] sm:$0xff] %vm100, %v972
    %1005 = vst.msk [vmem:[#allocation2 + $0x68] sm:$0xff] %vm100, %v973
    %1006 = vst.msk [vmem:[#allocation2 + $0x70] sm:$0xff] %vm100, %v974
    %1007 = vst.msk [vmem:[#allocation2 + $0x78] sm:$0xff] %vm100, %v975
    %1008 = vst.msk [vmem:[#allocation2 + $0x80] sm:$0xff] %vm100, %v976
    %1009 = vst.msk [vmem:[#allocation2 + $0x88] sm:$0xff] %vm100, %v977
    %1010 = vst.msk [vmem:[#allocation2 + $0x90] sm:$0xff] %vm100, %v978
    %1011 = vst.msk [vmem:[#allocation2 + $0x98] sm:$0xff] %vm100, %v979
    %1012 = vst.msk [vmem:[#allocation2 + $0xa0] sm:$0xff] %vm100, %v980
    %1013 = vst.msk [vmem:[#allocation2 + $0xa8] sm:$0xff] %vm100, %v981
    %1014 = vst.msk [vmem:[#allocation2 + $0xb0] sm:$0xff] %vm100, %v982
    %1015 = vst.msk [vmem:[#allocation2 + $0xb8] sm:$0xff] %vm100, %v983
    %1016 = vst.msk [vmem:[#allocation2 + $0xc0] sm:$0xff] %vm100, %v984
    %1017 = vst.msk [vmem:[#allocation2 + $0xc8] sm:$0xff] %vm100, %v985
    %1018 = vst.msk [vmem:[#allocation2 + $0xd0] sm:$0xff] %vm100, %v986
    %1019 = vst.msk [vmem:[#allocation2 + $0xd8] sm:$0xff] %vm100, %v987
    %1020 = vst.msk [vmem:[#allocation2 + $0xe0] sm:$0xff] %vm100, %v988
    %1021 = vst.msk [vmem:[#allocation2 + $0xe8] sm:$0xff] %vm100, %v989
    %1022 = vst.msk [vmem:[#allocation2 + $0xf0] sm:$0xff] %vm100, %v990
    %1023 = vst.msk [vmem:[#allocation2 + $0xf8] sm:$0xff] %vm100, %v991
    // Predicated region
    $region26: #{triangle_multiplicative_update.5} parent=1 // pred_check
      _
    $region27: #{triangle_multiplicative_update.5} parent=1 // pred_check_branch
      %1025 = sbr.rel (0) target = $region29
    $region28: #{triangle_multiplicative_update.5} parent=1 // pred_region
      %s1027 = ssub.s32 4096, 4096
      %1028 = vsyncadd [#allocation3], %s1027
      %s1029 = sshll.u32 [#allocation2], 4
      %s1030 = int_to_ptr.vmem [resolvable:$true] %s1029
      %1035 = dma.vmem_to_hbm [thread:$0]  %s1030, 4096, %s6, [#allocation3], 128, 128, 8
    $region29: #{triangle_multiplicative_update.5} parent=1 // pred_fallthru
      _
    // Predicated region
    $region30: #{triangle_multiplicative_update.5} parent=1 // pred_check
      _
    $region31: #{triangle_multiplicative_update.5} parent=1 // pred_check_branch
      %1037 = sbr.rel (0) target = $region33
    $region32: #{triangle_multiplicative_update.5} parent=1 // pred_region
      %1038 = dma.done [#allocation3], 4096
    $region33: #{triangle_multiplicative_update.5} parent=1 // pred_fallthru
      _
    %1039 = vsyncpa [#allocation3], 1

</llo_original>
